<compile_context>
chip_gen: v6e
topology: v6e:2x2x1
jax: 0.10.0
libtpu: 0.0.40
codegen_flags: <defaults>
</compile_context>

<pallas_src>
import functools

import jax
import jax.numpy as jnp
from jax import lax
from jax.experimental import pallas as pl
from jax.experimental.pallas import tpu as pltpu

EPS = 1e-5


def _reflect_pad1_into(dst_ref, y):
    """Write y=(n_blk, H, W, C) into dst_ref=(n_blk, H+2, W+2, C), 1-px reflect.

    Every padded row / column / corner is sourced from the in-register value y
    (no read-back from dst_ref), matching jnp.pad(..., mode='reflect').
    """
    _, H, W, _ = y.shape
    dst_ref[:, 1:H + 1, 1:W + 1, :] = y
    # top / bottom edge rows (reflect of rows 1 and H-2)
    dst_ref[:, 0:1, 1:W + 1, :] = y[:, 1:2, :, :]
    dst_ref[:, H + 1:H + 2, 1:W + 1, :] = y[:, H - 2:H - 1, :, :]
    # left / right edge columns (reflect of cols 1 and W-2)
    dst_ref[:, 1:H + 1, 0:1, :] = y[:, :, 1:2, :]
    dst_ref[:, 1:H + 1, W + 1:W + 2, :] = y[:, :, W - 2:W - 1, :]
    # four corners
    dst_ref[:, 0:1, 0:1, :] = y[:, 1:2, 1:2, :]
    dst_ref[:, 0:1, W + 1:W + 2, :] = y[:, 1:2, W - 2:W - 1, :]
    dst_ref[:, H + 1:H + 2, 0:1, :] = y[:, H - 2:H - 1, 1:2, :]
    dst_ref[:, H + 1:H + 2, W + 1:W + 2, :] = y[:, H - 2:H - 1, W - 2:W - 1, :]


def _down_block_kernel(x_ref, wd_ref, w1_ref, w2_ref,
                       sbd_ref, sb1_ref, sb2_ref,
                       o_ref, patches_ref, y0p_ref, y1p_ref, *, K, S):
    """Fused down + conv1 + conv2 + residual for a block of n_blk images.

    x_ref:       (n_blk, Hp, Wp, Cin)     reflect-padded NHWC input block.
    wd_ref:      (patch_w, Cin)           down-conv weights, zero-padded rows.
    w1_ref:      (patch_w, Cout)          conv1 weights, zero-padded rows.
    w2_ref:      (patch_w, Cout)          conv2 weights, zero-padded rows.
    sb*_ref:     (2, C)  f32              row0 = folded BN scale, row1 = bias.
    o_ref:       (n_blk, Cout, Hd*Wd)     lane-dense output block.
    patches_ref: (n_blk, Hd, Wd, patch_w) im2col scratch (reused 3x / step).
    y0p_ref:     (n_blk, Hd+2, Wd+2, Cin) reflect-padded "down" output.
    y1p_ref:     (n_blk, Hd+2, Wd+2, Cout) reflect-padded "conv1" output.
    """
    f32 = jnp.float32
    n_blk, Hdp2, Wdp2, Cin = y0p_ref.shape
    Hd, Wd = Hdp2 - 2, Wdp2 - 2
    Cout = y1p_ref.shape[-1]
    HW = Hd * Wd
    M = n_blk * HW
    pw = patches_ref.shape[-1]
    cdt = patches_ref.dtype

    # Zero the im2col scratch once: the zero-padded weight rows then always
    # multiply finite data (later stages only overwrite their live columns).
    @pl.when(pl.program_id(0) == 0)
    def _():
        patches_ref[...] = jnp.zeros(patches_ref.shape, patches_ref.dtype)

    # ---------------- stage 0: strided "down" conv (Cin -> Cin) -------------
    # Only the strided output positions are read, via strided VMEM slices.
    for kh in range(K):
        for kw in range(K):
            t = kh * K + kw
            tap = x_ref[:, pl.ds(kh, Hd, stride=S), pl.ds(kw, Wd, stride=S), :]
            patches_ref[:, :, :, t * Cin:(t + 1) * Cin] = tap.astype(cdt)
    acc0 = jnp.dot(patches_ref[...].reshape(M, pw), wd_ref[...],
                   preferred_element_type=f32)                      # (M, Cin)
    y0 = jnp.maximum(acc0 * sbd_ref[0:1, :] + sbd_ref[1:2, :], 0.0)
    _reflect_pad1_into(y0p_ref, y0.reshape(n_blk, Hd, Wd, Cin).astype(cdt))

    # ---------------- stage 1: 3x3 conv (Cin -> Cout) -----------------------
    for kh in range(3):
        for kw in range(3):
            t = kh * 3 + kw
            patches_ref[:, :, :, t * Cin:(t + 1) * Cin] = (
                y0p_ref[:, kh:kh + Hd, kw:kw + Wd, :])
    acc1 = jnp.dot(patches_ref[...].reshape(M, pw), w1_ref[...],
                   preferred_element_type=f32)                      # (M, Cout)
    y1 = jnp.maximum(acc1 * sb1_ref[0:1, :] + sb1_ref[1:2, :], 0.0)
    _reflect_pad1_into(y1p_ref, y1.reshape(n_blk, Hd, Wd, Cout).astype(cdt))

    # ------------- stage 2: 3x3 conv (Cout -> Cout) + residual --------------
    for kh in range(3):
        for kw in range(3):
            t = kh * 3 + kw
            patches_ref[:, :, :, t * Cout:(t + 1) * Cout] = (
                y1p_ref[:, kh:kh + Hd, kw:kw + Wd, :])
    acc2 = jnp.dot(patches_ref[...].reshape(M, pw), w2_ref[...],
                   preferred_element_type=f32)                      # (M, Cout)
    y2 = jnp.maximum(acc2 * sb2_ref[0:1, :] + sb2_ref[1:2, :], 0.0)
    res = y1 + y2                                                   # f32 (M, Cout)

    # Lane-dense store: per-image (HW, Cout) -> (Cout, HW) so the last output
    # dim is HW-wide; the wrapper only needs a free reshape to NCHW.
    for nb in range(n_blk):
        o_ref[nb, :, :] = jnp.transpose(
            res[nb * HW:(nb + 1) * HW, :]).astype(o_ref.dtype)


def _fold_bn(p):
    """Fold conv bias + eval-mode BatchNorm into per-channel (scale, bias)."""
    scale = p["gamma"] / jnp.sqrt(p["var"] + EPS)
    bias = p["beta"] + (p["b"] - p["mean"]) * scale
    return scale, bias


def down_conv_block_forward(x_nchw, params, *, k, s, p, n_blk=8,
                            compute_dtype=jnp.float32):
    """DownConvBlock.forward: NCHW in, NCHW out (single fused Pallas kernel)."""
    N, Cin, H, W = x_nchw.shape
    Cout = params["conv1"]["w"].shape[-1]

    # ----- wrapper-side prep: NCHW -> NHWC + reflect pad (contiguous DMA) ---
    x = jnp.transpose(x_nchw, (0, 2, 3, 1)).astype(jnp.float32)    # (N,H,W,Cin)
    xp = jnp.pad(x, ((0, 0), (p, p), (p, p), (0, 0)), mode="reflect")
    Hp, Wp = H + 2 * p, W + 2 * p
    Hd = (Hp - k) // s + 1
    Wd = (Wp - k) // s + 1
    HW = Hd * Wd

    # Batch blocking: n_blk images per grid step; pad batch to a multiple.
    n_blk = max(1, min(n_blk, N))
    G = pl.cdiv(N, n_blk)
    N_pad = G * n_blk
    if N_pad != N:
        xp = jnp.pad(xp, ((0, N_pad - N), (0, 0), (0, 0), (0, 0)))

    # ----- fold BN + bias; flatten + zero-pad weights to patch_w rows -------
    patch_w = max(k * k * Cin, 9 * Cin, 9 * Cout)
    patch_w = -(-patch_w // 128) * 128

    def _prep_w(w, rows):
        w2 = w.reshape(rows, w.shape[-1]).astype(jnp.float32)
        w2 = jnp.pad(w2, ((0, patch_w - rows), (0, 0)))
        return w2.astype(compute_dtype)

    wd2 = _prep_w(params["down"]["w"], k * k * Cin)                 # (pw, Cin)
    w12 = _prep_w(params["conv1"]["w"], 9 * Cin)                    # (pw, Cout)
    w22 = _prep_w(params["conv2"]["w"], 9 * Cout)                   # (pw, Cout)
    sd, bd = _fold_bn(params["down"])
    s1, b1 = _fold_bn(params["conv1"])
    s2, b2 = _fold_bn(params["conv2"])
    sbd = jnp.stack([sd, bd]).astype(jnp.float32)                   # (2, Cin)
    sb1 = jnp.stack([s1, b1]).astype(jnp.float32)                   # (2, Cout)
    sb2 = jnp.stack([s2, b2]).astype(jnp.float32)                   # (2, Cout)

    out = pl.pallas_call(
        functools.partial(_down_block_kernel, K=k, S=s),
        out_shape=jax.ShapeDtypeStruct((N_pad, Cout, HW), jnp.float32),
        grid=(G,),
        in_specs=[
            pl.BlockSpec((n_blk, Hp, Wp, Cin), lambda g: (g, 0, 0, 0)),
            pl.BlockSpec((patch_w, Cin), lambda g: (0, 0)),
            pl.BlockSpec((patch_w, Cout), lambda g: (0, 0)),
            pl.BlockSpec((patch_w, Cout), lambda g: (0, 0)),
            pl.BlockSpec((2, Cin), lambda g: (0, 0)),
            pl.BlockSpec((2, Cout), lambda g: (0, 0)),
            pl.BlockSpec((2, Cout), lambda g: (0, 0)),
        ],
        out_specs=pl.BlockSpec((n_blk, Cout, HW), lambda g: (g, 0, 0)),
        scratch_shapes=[
            pltpu.VMEM((n_blk, Hd, Wd, patch_w), compute_dtype),    # im2col
            pltpu.VMEM((n_blk, Hd + 2, Wd + 2, Cin), compute_dtype),  # pad y0
            pltpu.VMEM((n_blk, Hd + 2, Wd + 2, Cout), compute_dtype),  # pad y1
        ],
        compiler_params=pltpu.CompilerParams(
            dimension_semantics=("parallel",)),
    )(xp, wd2, w12, w22, sbd, sb1, sb2)

    # (N_pad, Cout, Hd*Wd) -> (N, Cout, Hd, Wd): drop batch padding + free
    # reshape (output is already channel-major / lane-dense -> no transpose).
    return out[:N].reshape(N, Cout, Hd, Wd)


# ---------------- pure-JAX reference (for correctness check) ----------------
def _ref_conv_bn_relu(x_nchw, prm, *, k, s, pad):
    xp = jnp.pad(x_nchw, ((0, 0), (0, 0), (pad, pad), (pad, pad)),
                 mode="reflect")
    w_oihw = jnp.transpose(prm["w"], (3, 2, 0, 1))
    y = lax.conv_general_dilated(
        xp, w_oihw, (s, s), "VALID",
        dimension_numbers=("NCHW", "OIHW", "NCHW"),
        precision=lax.Precision.HIGHEST)
    y = y + prm["b"][None, :, None, None]
    y = (prm["gamma"][None, :, None, None]
         * (y - prm["mean"][None, :, None, None])
         / jnp.sqrt(prm["var"][None, :, None, None] + EPS)
         + prm["beta"][None, :, None, None])
    return jnp.maximum(y, 0.0)


def _ref_forward(x_nchw, params, *, k, s, p):
    y = _ref_conv_bn_relu(x_nchw, params["down"], k=k, s=s, pad=p)
    y = _ref_conv_bn_relu(y, params["conv1"], k=3, s=1, pad=1)
    return y + _ref_conv_bn_relu(y, params["conv2"], k=3, s=1, pad=1)


# ---------------------------- parameter init --------------------------------
def _make_layer_params(key, k, cin, cout):
    k1, k2, k3, k4, k5, k6 = jax.random.split(key, 6)
    return dict(
        w=0.1 * jax.random.normal(k1, (k, k, cin, cout), jnp.float32),  # HWIO
        b=0.1 * jax.random.normal(k2, (cout,), jnp.float32),
        gamma=1.0 + 0.1 * jax.random.normal(k3, (cout,), jnp.float32),
        beta=0.1 * jax.random.normal(k4, (cout,), jnp.float32),
        mean=0.1 * jax.random.normal(k5, (cout,), jnp.float32),
        var=jax.random.uniform(k6, (cout,), jnp.float32, 0.5, 1.5),
    )


if __name__ == "__main__":
    d_in, d_out = 4, 8
    H, W = 16, 16
    key = jax.random.PRNGKey(0)

    # (K, S, P, N, n_blk, compute_dtype, tol)
    configs = [
        (4, 2, 1, 2, 8, jnp.float32, 2e-3),    # UTAE default str_conv_k=4
        (3, 2, 1, 5, 2, jnp.float32, 2e-3),    # multi-step grid + batch pad
        (4, 2, 1, 4, 4, jnp.bfloat16, 5e-2),   # bf16 MXU path (v6e/v7x)
    ]
    for (K, S, P, N, NB, CDT, TOL) in configs:
        key, kx, kd, k1, k2 = jax.random.split(key, 5)
        x = jax.random.normal(kx, (N, d_in, H, W), jnp.float32)   # NCHW input

        params = dict(
            down=_make_layer_params(kd, K, d_in, d_in),
            conv1=_make_layer_params(k1, 3, d_in, d_out),
            conv2=_make_layer_params(k2, 3, d_out, d_out),
        )

        fwd = jax.jit(functools.partial(
            down_conv_block_forward, k=K, s=S, p=P, n_blk=NB,
            compute_dtype=CDT))
        out = jax.block_until_ready(fwd(x, params))

        ref = _ref_forward(x, params, k=K, s=S, p=P)
        assert out.shape == (N, d_out, H // S, W // S), out.shape
        err = float(jnp.max(jnp.abs(out - ref)))
        assert jnp.allclose(out, ref, atol=TOL, rtol=TOL), (str(CDT), err)

    print("KERNEL_OK")
</pallas_src>

<mosaic_0001>
module attributes {stable_mosaic.version = 11 : i64} {
  func.func @_down_block_kernel(%arg0: i32, %arg1: memref<2x18x18x4xf32, #tpu.memory_space<vmem>>, %arg2: memref<128x4xf32, #tpu.memory_space<vmem>>, %arg3: memref<128x8xf32, #tpu.memory_space<vmem>>, %arg4: memref<128x8xf32, #tpu.memory_space<vmem>>, %arg5: memref<2x4xf32, #tpu.memory_space<vmem>>, %arg6: memref<2x8xf32, #tpu.memory_space<vmem>>, %arg7: memref<2x8xf32, #tpu.memory_space<vmem>>, %arg8: memref<2x8x64xf32, #tpu.memory_space<vmem>>, %arg9: memref<2x8x8x128xf32, #tpu.memory_space<vmem>>, %arg10: memref<2x10x10x4xf32, #tpu.memory_space<vmem>>, %arg11: memref<2x10x10x8xf32, #tpu.memory_space<vmem>>) attributes {dimension_semantics = [#tpu.dimension_semantics<parallel>], iteration_bounds = array<i64: 1>, scalar_prefetch = 0 : i64, scratch_operands = 3 : i64, tpu.core_type = #tpu.core_type<tc>, window_params = [{transform_indices = @transform_0, window_bounds = array<i64: 2, 18, 18, 4>}, {pipeline_mode = #tpu.pipeline_mode<synchronous>, transform_indices = @transform_1, window_bounds = array<i64: 128, 4>}, {pipeline_mode = #tpu.pipeline_mode<synchronous>, transform_indices = @transform_2, window_bounds = array<i64: 128, 8>}, {pipeline_mode = #tpu.pipeline_mode<synchronous>, transform_indices = @transform_3, window_bounds = array<i64: 128, 8>}, {pipeline_mode = #tpu.pipeline_mode<synchronous>, transform_indices = @transform_4, window_bounds = array<i64: 2, 4>}, {pipeline_mode = #tpu.pipeline_mode<synchronous>, transform_indices = @transform_5, window_bounds = array<i64: 2, 8>}, {pipeline_mode = #tpu.pipeline_mode<synchronous>, transform_indices = @transform_6, window_bounds = array<i64: 2, 8>}, {transform_indices = @transform_7, window_bounds = array<i64: 2, 8, 64>}]} {
    %c0_i32 = arith.constant 0 : i32
    %0 = arith.cmpi eq, %arg0, %c0_i32 : i32
    %1 = arith.extui %0 : i1 to i32
    %c0_i32_0 = arith.constant 0 : i32
    %2 = arith.cmpi ne, %1, %c0_i32_0 : i32
    scf.if %2 {
      %cst_365 = arith.constant 0.000000e+00 : f32
      %154 = vector.broadcast %cst_365 : f32 to vector<2x8x8x128xf32>
      %c0_366 = arith.constant 0 : index
      %c0_367 = arith.constant 0 : index
      %c0_368 = arith.constant 0 : index
      %c0_369 = arith.constant 0 : index
      %155 = vector.load %arg9[%c0_366, %c0_367, %c0_368, %c0_369] : memref<2x8x8x128xf32, #tpu.memory_space<vmem>>, vector<2x8x8x128xf32>
      tpu.vector_store %arg9[%c0_366, %c0_367, %c0_368, %c0_369], %154 {strides = array<i32>} : memref<2x8x8x128xf32, #tpu.memory_space<vmem>>, vector<2x8x8x128xf32>,
    } else {
    }
    %c0 = arith.constant 0 : index
    %c0_1 = arith.constant 0 : index
    %c0_2 = arith.constant 0 : index
    %c0_3 = arith.constant 0 : index
    %3 = tpu.strided_load %arg1[%c0, %c0_1, %c0_2, %c0_3] {strides = array<i32: 1, 2, 2, 1>} : memref<2x18x18x4xf32, #tpu.memory_space<vmem>>, vector<2x8x8x4xf32>
    %c0_4 = arith.constant 0 : index
    %c0_5 = arith.constant 0 : index
    %c0_6 = arith.constant 0 : index
    %c0_7 = arith.constant 0 : index
    %4 = vector.load %arg9[%c0_4, %c0_5, %c0_6, %c0_7] : memref<2x8x8x128xf32, #tpu.memory_space<vmem>>, vector<2x8x8x4xf32>
    tpu.vector_store %arg9[%c0_4, %c0_5, %c0_6, %c0_7], %3 {strides = array<i32>} : memref<2x8x8x128xf32, #tpu.memory_space<vmem>>, vector<2x8x8x4xf32>,
    %c0_8 = arith.constant 0 : index
    %c0_9 = arith.constant 0 : index
    %c1 = arith.constant 1 : index
    %c0_10 = arith.constant 0 : index
    %5 = tpu.strided_load %arg1[%c0_8, %c0_9, %c1, %c0_10] {strides = array<i32: 1, 2, 2, 1>} : memref<2x18x18x4xf32, #tpu.memory_space<vmem>>, vector<2x8x8x4xf32>
    %c0_11 = arith.constant 0 : index
    %c0_12 = arith.constant 0 : index
    %c0_13 = arith.constant 0 : index
    %c4 = arith.constant 4 : index
    %6 = vector.load %arg9[%c0_11, %c0_12, %c0_13, %c4] : memref<2x8x8x128xf32, #tpu.memory_space<vmem>>, vector<2x8x8x4xf32>
    tpu.vector_store %arg9[%c0_11, %c0_12, %c0_13, %c4], %5 {strides = array<i32>} : memref<2x8x8x128xf32, #tpu.memory_space<vmem>>, vector<2x8x8x4xf32>,
    %c0_14 = arith.constant 0 : index
    %c0_15 = arith.constant 0 : index
    %c2 = arith.constant 2 : index
    %c0_16 = arith.constant 0 : index
    %7 = tpu.strided_load %arg1[%c0_14, %c0_15, %c2, %c0_16] {strides = array<i32: 1, 2, 2, 1>} : memref<2x18x18x4xf32, #tpu.memory_space<vmem>>, vector<2x8x8x4xf32>
    %c0_17 = arith.constant 0 : index
    %c0_18 = arith.constant 0 : index
    %c0_19 = arith.constant 0 : index
    %c8 = arith.constant 8 : index
    %8 = vector.load %arg9[%c0_17, %c0_18, %c0_19, %c8] : memref<2x8x8x128xf32, #tpu.memory_space<vmem>>, vector<2x8x8x4xf32>
    tpu.vector_store %arg9[%c0_17, %c0_18, %c0_19, %c8], %7 {strides = array<i32>} : memref<2x8x8x128xf32, #tpu.memory_space<vmem>>, vector<2x8x8x4xf32>,
    %c0_20 = arith.constant 0 : index
    %c0_21 = arith.constant 0 : index
    %c3 = arith.constant 3 : index
    %c0_22 = arith.constant 0 : index
    %9 = tpu.strided_load %arg1[%c0_20, %c0_21, %c3, %c0_22] {strides = array<i32: 1, 2, 2, 1>} : memref<2x18x18x4xf32, #tpu.memory_space<vmem>>, vector<2x8x8x4xf32>
    %c0_23 = arith.constant 0 : index
    %c0_24 = arith.constant 0 : index
    %c0_25 = arith.constant 0 : index
    %c12 = arith.constant 12 : index
    %10 = vector.load %arg9[%c0_23, %c0_24, %c0_25, %c12] : memref<2x8x8x128xf32, #tpu.memory_space<vmem>>, vector<2x8x8x4xf32>
    tpu.vector_store %arg9[%c0_23, %c0_24, %c0_25, %c12], %9 {strides = array<i32>} : memref<2x8x8x128xf32, #tpu.memory_space<vmem>>, vector<2x8x8x4xf32>,
    %c0_26 = arith.constant 0 : index
    %c1_27 = arith.constant 1 : index
    %c0_28 = arith.constant 0 : index
    %c0_29 = arith.constant 0 : index
    %11 = tpu.strided_load %arg1[%c0_26, %c1_27, %c0_28, %c0_29] {strides = array<i32: 1, 2, 2, 1>} : memref<2x18x18x4xf32, #tpu.memory_space<vmem>>, vector<2x8x8x4xf32>
    %c0_30 = arith.constant 0 : index
    %c0_31 = arith.constant 0 : index
    %c0_32 = arith.constant 0 : index
    %c16 = arith.constant 16 : index
    %12 = vector.load %arg9[%c0_30, %c0_31, %c0_32, %c16] : memref<2x8x8x128xf32, #tpu.memory_space<vmem>>, vector<2x8x8x4xf32>
    tpu.vector_store %arg9[%c0_30, %c0_31, %c0_32, %c16], %11 {strides = array<i32>} : memref<2x8x8x128xf32, #tpu.memory_space<vmem>>, vector<2x8x8x4xf32>,
    %c0_33 = arith.constant 0 : index
    %c1_34 = arith.constant 1 : index
    %c1_35 = arith.constant 1 : index
    %c0_36 = arith.constant 0 : index
    %13 = tpu.strided_load %arg1[%c0_33, %c1_34, %c1_35, %c0_36] {strides = array<i32: 1, 2, 2, 1>} : memref<2x18x18x4xf32, #tpu.memory_space<vmem>>, vector<2x8x8x4xf32>
    %c0_37 = arith.constant 0 : index
    %c0_38 = arith.constant 0 : index
    %c0_39 = arith.constant 0 : index
    %c20 = arith.constant 20 : index
    %14 = vector.load %arg9[%c0_37, %c0_38, %c0_39, %c20] : memref<2x8x8x128xf32, #tpu.memory_space<vmem>>, vector<2x8x8x4xf32>
    tpu.vector_store %arg9[%c0_37, %c0_38, %c0_39, %c20], %13 {strides = array<i32>} : memref<2x8x8x128xf32, #tpu.memory_space<vmem>>, vector<2x8x8x4xf32>,
    %c0_40 = arith.constant 0 : index
    %c1_41 = arith.constant 1 : index
    %c2_42 = arith.constant 2 : index
    %c0_43 = arith.constant 0 : index
    %15 = tpu.strided_load %arg1[%c0_40, %c1_41, %c2_42, %c0_43] {strides = array<i32: 1, 2, 2, 1>} : memref<2x18x18x4xf32, #tpu.memory_space<vmem>>, vector<2x8x8x4xf32>
    %c0_44 = arith.constant 0 : index
    %c0_45 = arith.constant 0 : index
    %c0_46 = arith.constant 0 : index
    %c24 = arith.constant 24 : index
    %16 = vector.load %arg9[%c0_44, %c0_45, %c0_46, %c24] : memref<2x8x8x128xf32, #tpu.memory_space<vmem>>, vector<2x8x8x4xf32>
    tpu.vector_store %arg9[%c0_44, %c0_45, %c0_46, %c24], %15 {strides = array<i32>} : memref<2x8x8x128xf32, #tpu.memory_space<vmem>>, vector<2x8x8x4xf32>,
    %c0_47 = arith.constant 0 : index
    %c1_48 = arith.constant 1 : index
    %c3_49 = arith.constant 3 : index
    %c0_50 = arith.constant 0 : index
    %17 = tpu.strided_load %arg1[%c0_47, %c1_48, %c3_49, %c0_50] {strides = array<i32: 1, 2, 2, 1>} : memref<2x18x18x4xf32, #tpu.memory_space<vmem>>, vector<2x8x8x4xf32>
    %c0_51 = arith.constant 0 : index
    %c0_52 = arith.constant 0 : index
    %c0_53 = arith.constant 0 : index
    %c28 = arith.constant 28 : index
    %18 = vector.load %arg9[%c0_51, %c0_52, %c0_53, %c28] : memref<2x8x8x128xf32, #tpu.memory_space<vmem>>, vector<2x8x8x4xf32>
    tpu.vector_store %arg9[%c0_51, %c0_52, %c0_53, %c28], %17 {strides = array<i32>} : memref<2x8x8x128xf32, #tpu.memory_space<vmem>>, vector<2x8x8x4xf32>,
    %c0_54 = arith.constant 0 : index
    %c2_55 = arith.constant 2 : index
    %c0_56 = arith.constant 0 : index
    %c0_57 = arith.constant 0 : index
    %19 = tpu.strided_load %arg1[%c0_54, %c2_55, %c0_56, %c0_57] {strides = array<i32: 1, 2, 2, 1>} : memref<2x18x18x4xf32, #tpu.memory_space<vmem>>, vector<2x8x8x4xf32>
    %c0_58 = arith.constant 0 : index
    %c0_59 = arith.constant 0 : index
    %c0_60 = arith.constant 0 : index
    %c32 = arith.constant 32 : index
    %20 = vector.load %arg9[%c0_58, %c0_59, %c0_60, %c32] : memref<2x8x8x128xf32, #tpu.memory_space<vmem>>, vector<2x8x8x4xf32>
    tpu.vector_store %arg9[%c0_58, %c0_59, %c0_60, %c32], %19 {strides = array<i32>} : memref<2x8x8x128xf32, #tpu.memory_space<vmem>>, vector<2x8x8x4xf32>,
    %c0_61 = arith.constant 0 : index
    %c2_62 = arith.constant 2 : index
    %c1_63 = arith.constant 1 : index
    %c0_64 = arith.constant 0 : index
    %21 = tpu.strided_load %arg1[%c0_61, %c2_62, %c1_63, %c0_64] {strides = array<i32: 1, 2, 2, 1>} : memref<2x18x18x4xf32, #tpu.memory_space<vmem>>, vector<2x8x8x4xf32>
    %c0_65 = arith.constant 0 : index
    %c0_66 = arith.constant 0 : index
    %c0_67 = arith.constant 0 : index
    %c36 = arith.constant 36 : index
    %22 = vector.load %arg9[%c0_65, %c0_66, %c0_67, %c36] : memref<2x8x8x128xf32, #tpu.memory_space<vmem>>, vector<2x8x8x4xf32>
    tpu.vector_store %arg9[%c0_65, %c0_66, %c0_67, %c36], %21 {strides = array<i32>} : memref<2x8x8x128xf32, #tpu.memory_space<vmem>>, vector<2x8x8x4xf32>,
    %c0_68 = arith.constant 0 : index
    %c2_69 = arith.constant 2 : index
    %c2_70 = arith.constant 2 : index
    %c0_71 = arith.constant 0 : index
    %23 = tpu.strided_load %arg1[%c0_68, %c2_69, %c2_70, %c0_71] {strides = array<i32: 1, 2, 2, 1>} : memref<2x18x18x4xf32, #tpu.memory_space<vmem>>, vector<2x8x8x4xf32>
    %c0_72 = arith.constant 0 : index
    %c0_73 = arith.constant 0 : index
    %c0_74 = arith.constant 0 : index
    %c40 = arith.constant 40 : index
    %24 = vector.load %arg9[%c0_72, %c0_73, %c0_74, %c40] : memref<2x8x8x128xf32, #tpu.memory_space<vmem>>, vector<2x8x8x4xf32>
    tpu.vector_store %arg9[%c0_72, %c0_73, %c0_74, %c40], %23 {strides = array<i32>} : memref<2x8x8x128xf32, #tpu.memory_space<vmem>>, vector<2x8x8x4xf32>,
    %c0_75 = arith.constant 0 : index
    %c2_76 = arith.constant 2 : index
    %c3_77 = arith.constant 3 : index
    %c0_78 = arith.constant 0 : index
    %25 = tpu.strided_load %arg1[%c0_75, %c2_76, %c3_77, %c0_78] {strides = array<i32: 1, 2, 2, 1>} : memref<2x18x18x4xf32, #tpu.memory_space<vmem>>, vector<2x8x8x4xf32>
    %c0_79 = arith.constant 0 : index
    %c0_80 = arith.constant 0 : index
    %c0_81 = arith.constant 0 : index
    %c44 = arith.constant 44 : index
    %26 = vector.load %arg9[%c0_79, %c0_80, %c0_81, %c44] : memref<2x8x8x128xf32, #tpu.memory_space<vmem>>, vector<2x8x8x4xf32>
    tpu.vector_store %arg9[%c0_79, %c0_80, %c0_81, %c44], %25 {strides = array<i32>} : memref<2x8x8x128xf32, #tpu.memory_space<vmem>>, vector<2x8x8x4xf32>,
    %c0_82 = arith.constant 0 : index
    %c3_83 = arith.constant 3 : index
    %c0_84 = arith.constant 0 : index
    %c0_85 = arith.constant 0 : index
    %27 = tpu.strided_load %arg1[%c0_82, %c3_83, %c0_84, %c0_85] {strides = array<i32: 1, 2, 2, 1>} : memref<2x18x18x4xf32, #tpu.memory_space<vmem>>, vector<2x8x8x4xf32>
    %c0_86 = arith.constant 0 : index
    %c0_87 = arith.constant 0 : index
    %c0_88 = arith.constant 0 : index
    %c48 = arith.constant 48 : index
    %28 = vector.load %arg9[%c0_86, %c0_87, %c0_88, %c48] : memref<2x8x8x128xf32, #tpu.memory_space<vmem>>, vector<2x8x8x4xf32>
    tpu.vector_store %arg9[%c0_86, %c0_87, %c0_88, %c48], %27 {strides = array<i32>} : memref<2x8x8x128xf32, #tpu.memory_space<vmem>>, vector<2x8x8x4xf32>,
    %c0_89 = arith.constant 0 : index
    %c3_90 = arith.constant 3 : index
    %c1_91 = arith.constant 1 : index
    %c0_92 = arith.constant 0 : index
    %29 = tpu.strided_load %arg1[%c0_89, %c3_90, %c1_91, %c0_92] {strides = array<i32: 1, 2, 2, 1>} : memref<2x18x18x4xf32, #tpu.memory_space<vmem>>, vector<2x8x8x4xf32>
    %c0_93 = arith.constant 0 : index
    %c0_94 = arith.constant 0 : index
    %c0_95 = arith.constant 0 : index
    %c52 = arith.constant 52 : index
    %30 = vector.load %arg9[%c0_93, %c0_94, %c0_95, %c52] : memref<2x8x8x128xf32, #tpu.memory_space<vmem>>, vector<2x8x8x4xf32>
    tpu.vector_store %arg9[%c0_93, %c0_94, %c0_95, %c52], %29 {strides = array<i32>} : memref<2x8x8x128xf32, #tpu.memory_space<vmem>>, vector<2x8x8x4xf32>,
    %c0_96 = arith.constant 0 : index
    %c3_97 = arith.constant 3 : index
    %c2_98 = arith.constant 2 : index
    %c0_99 = arith.constant 0 : index
    %31 = tpu.strided_load %arg1[%c0_96, %c3_97, %c2_98, %c0_99] {strides = array<i32: 1, 2, 2, 1>} : memref<2x18x18x4xf32, #tpu.memory_space<vmem>>, vector<2x8x8x4xf32>
    %c0_100 = arith.constant 0 : index
    %c0_101 = arith.constant 0 : index
    %c0_102 = arith.constant 0 : index
    %c56 = arith.constant 56 : index
    %32 = vector.load %arg9[%c0_100, %c0_101, %c0_102, %c56] : memref<2x8x8x128xf32, #tpu.memory_space<vmem>>, vector<2x8x8x4xf32>
    tpu.vector_store %arg9[%c0_100, %c0_101, %c0_102, %c56], %31 {strides = array<i32>} : memref<2x8x8x128xf32, #tpu.memory_space<vmem>>, vector<2x8x8x4xf32>,
    %c0_103 = arith.constant 0 : index
    %c3_104 = arith.constant 3 : index
    %c3_105 = arith.constant 3 : index
    %c0_106 = arith.constant 0 : index
    %33 = tpu.strided_load %arg1[%c0_103, %c3_104, %c3_105, %c0_106] {strides = array<i32: 1, 2, 2, 1>} : memref<2x18x18x4xf32, #tpu.memory_space<vmem>>, vector<2x8x8x4xf32>
    %c0_107 = arith.constant 0 : index
    %c0_108 = arith.constant 0 : index
    %c0_109 = arith.constant 0 : index
    %c60 = arith.constant 60 : index
    %34 = vector.load %arg9[%c0_107, %c0_108, %c0_109, %c60] : memref<2x8x8x128xf32, #tpu.memory_space<vmem>>, vector<2x8x8x4xf32>
    tpu.vector_store %arg9[%c0_107, %c0_108, %c0_109, %c60], %33 {strides = array<i32>} : memref<2x8x8x128xf32, #tpu.memory_space<vmem>>, vector<2x8x8x4xf32>,
    %c0_110 = arith.constant 0 : index
    %c0_111 = arith.constant 0 : index
    %c0_112 = arith.constant 0 : index
    %c0_113 = arith.constant 0 : index
    %35 = vector.load %arg9[%c0_110, %c0_111, %c0_112, %c0_113] : memref<2x8x8x128xf32, #tpu.memory_space<vmem>>, vector<2x8x8x128xf32>
    %36 = vector.shape_cast %35 : vector<2x8x8x128xf32> to vector<128x128xf32>
    %c0_114 = arith.constant 0 : index
    %c0_115 = arith.constant 0 : index
    %37 = vector.load %arg2[%c0_114, %c0_115] : memref<128x4xf32, #tpu.memory_space<vmem>>, vector<128x4xf32>
    %cst = arith.constant dense<0.000000e+00> : vector<128x4xf32>
    %38 = tpu.matmul %36, %37, %cst {dimension_numbers = #tpu.dot_dimension_numbers<[1], [0], [0], [1], [0, 0, 1, 1], [], []>} : vector<128x128xf32>, vector<128x4xf32>, vector<128x4xf32> -> vector<128x4xf32>
    %c0_116 = arith.constant 0 : index
    %c0_117 = arith.constant 0 : index
    %39 = vector.load %arg5[%c0_116, %c0_117] : memref<2x4xf32, #tpu.memory_space<vmem>>, vector<1x4xf32>
    %40 = vector.broadcast %39 : vector<1x4xf32> to vector<128x4xf32>
    %41 = arith.mulf %38, %40 : vector<128x4xf32>
    %c1_118 = arith.constant 1 : index
    %c0_119 = arith.constant 0 : index
    %42 = vector.load %arg5[%c1_118, %c0_119] : memref<2x4xf32, #tpu.memory_space<vmem>>, vector<1x4xf32>
    %43 = vector.broadcast %42 : vector<1x4xf32> to vector<128x4xf32>
    %44 = arith.addf %41, %43 : vector<128x4xf32>
    %cst_120 = arith.constant 0.000000e+00 : f32
    %45 = vector.broadcast %cst_120 : f32 to vector<128x4xf32>
    %46 = arith.maximumf %44, %45 : vector<128x4xf32>
    %47 = vector.shape_cast %46 : vector<128x4xf32> to vector<2x8x8x4xf32>
    %c0_121 = arith.constant 0 : index
    %c1_122 = arith.constant 1 : index
    %c1_123 = arith.constant 1 : index
    %c0_124 = arith.constant 0 : index
    %48 = vector.load %arg10[%c0_121, %c1_122, %c1_123, %c0_124] : memref<2x10x10x4xf32, #tpu.memory_space<vmem>>, vector<2x8x8x4xf32>
    tpu.vector_store %arg10[%c0_121, %c1_122, %c1_123, %c0_124], %47 {strides = array<i32>} : memref<2x10x10x4xf32, #tpu.memory_space<vmem>>, vector<2x8x8x4xf32>,
    %49 = vector.extract_strided_slice %47 {offsets = [0, 1, 0, 0], sizes = [2, 1, 8, 4], strides = [1, 1, 1, 1]} : vector<2x8x8x4xf32> to vector<2x1x8x4xf32>
    %c0_125 = arith.constant 0 : index
    %c0_126 = arith.constant 0 : index
    %c1_127 = arith.constant 1 : index
    %c0_128 = arith.constant 0 : index
    %50 = vector.load %arg10[%c0_125, %c0_126, %c1_127, %c0_128] : memref<2x10x10x4xf32, #tpu.memory_space<vmem>>, vector<2x1x8x4xf32>
    tpu.vector_store %arg10[%c0_125, %c0_126, %c1_127, %c0_128], %49 {strides = array<i32>} : memref<2x10x10x4xf32, #tpu.memory_space<vmem>>, vector<2x1x8x4xf32>,
    %51 = vector.extract_strided_slice %47 {offsets = [0, 6, 0, 0], sizes = [2, 1, 8, 4], strides = [1, 1, 1, 1]} : vector<2x8x8x4xf32> to vector<2x1x8x4xf32>
    %c0_129 = arith.constant 0 : index
    %c9 = arith.constant 9 : index
    %c1_130 = arith.constant 1 : index
    %c0_131 = arith.constant 0 : index
    %52 = vector.load %arg10[%c0_129, %c9, %c1_130, %c0_131] : memref<2x10x10x4xf32, #tpu.memory_space<vmem>>, vector<2x1x8x4xf32>
    tpu.vector_store %arg10[%c0_129, %c9, %c1_130, %c0_131], %51 {strides = array<i32>} : memref<2x10x10x4xf32, #tpu.memory_space<vmem>>, vector<2x1x8x4xf32>,
    %53 = vector.extract_strided_slice %47 {offsets = [0, 0, 1, 0], sizes = [2, 8, 1, 4], strides = [1, 1, 1, 1]} : vector<2x8x8x4xf32> to vector<2x8x1x4xf32>
    %c0_132 = arith.constant 0 : index
    %c1_133 = arith.constant 1 : index
    %c0_134 = arith.constant 0 : index
    %c0_135 = arith.constant 0 : index
    %54 = vector.load %arg10[%c0_132, %c1_133, %c0_134, %c0_135] : memref<2x10x10x4xf32, #tpu.memory_space<vmem>>, vector<2x8x1x4xf32>
    tpu.vector_store %arg10[%c0_132, %c1_133, %c0_134, %c0_135], %53 {strides = array<i32>} : memref<2x10x10x4xf32, #tpu.memory_space<vmem>>, vector<2x8x1x4xf32>,
    %55 = vector.extract_strided_slice %47 {offsets = [0, 0, 6, 0], sizes = [2, 8, 1, 4], strides = [1, 1, 1, 1]} : vector<2x8x8x4xf32> to vector<2x8x1x4xf32>
    %c0_136 = arith.constant 0 : index
    %c1_137 = arith.constant 1 : index
    %c9_138 = arith.constant 9 : index
    %c0_139 = arith.constant 0 : index
    %56 = vector.load %arg10[%c0_136, %c1_137, %c9_138, %c0_139] : memref<2x10x10x4xf32, #tpu.memory_space<vmem>>, vector<2x8x1x4xf32>
    tpu.vector_store %arg10[%c0_136, %c1_137, %c9_138, %c0_139], %55 {strides = array<i32>} : memref<2x10x10x4xf32, #tpu.memory_space<vmem>>, vector<2x8x1x4xf32>,
    %57 = vector.extract_strided_slice %47 {offsets = [0, 1, 1, 0], sizes = [2, 1, 1, 4], strides = [1, 1, 1, 1]} : vector<2x8x8x4xf32> to vector<2x1x1x4xf32>
    %c0_140 = arith.constant 0 : index
    %c0_141 = arith.constant 0 : index
    %c0_142 = arith.constant 0 : index
    %c0_143 = arith.constant 0 : index
    %58 = vector.load %arg10[%c0_140, %c0_141, %c0_142, %c0_143] : memref<2x10x10x4xf32, #tpu.memory_space<vmem>>, vector<2x1x1x4xf32>
    tpu.vector_store %arg10[%c0_140, %c0_141, %c0_142, %c0_143], %57 {strides = array<i32>} : memref<2x10x10x4xf32, #tpu.memory_space<vmem>>, vector<2x1x1x4xf32>,
    %59 = vector.extract_strided_slice %47 {offsets = [0, 1, 6, 0], sizes = [2, 1, 1, 4], strides = [1, 1, 1, 1]} : vector<2x8x8x4xf32> to vector<2x1x1x4xf32>
    %c0_144 = arith.constant 0 : index
    %c0_145 = arith.constant 0 : index
    %c9_146 = arith.constant 9 : index
    %c0_147 = arith.constant 0 : index
    %60 = vector.load %arg10[%c0_144, %c0_145, %c9_146, %c0_147] : memref<2x10x10x4xf32, #tpu.memory_space<vmem>>, vector<2x1x1x4xf32>
    tpu.vector_store %arg10[%c0_144, %c0_145, %c9_146, %c0_147], %59 {strides = array<i32>} : memref<2x10x10x4xf32, #tpu.memory_space<vmem>>, vector<2x1x1x4xf32>,
    %61 = vector.extract_strided_slice %47 {offsets = [0, 6, 1, 0], sizes = [2, 1, 1, 4], strides = [1, 1, 1, 1]} : vector<2x8x8x4xf32> to vector<2x1x1x4xf32>
    %c0_148 = arith.constant 0 : index
    %c9_149 = arith.constant 9 : index
    %c0_150 = arith.constant 0 : index
    %c0_151 = arith.constant 0 : index
    %62 = vector.load %arg10[%c0_148, %c9_149, %c0_150, %c0_151] : memref<2x10x10x4xf32, #tpu.memory_space<vmem>>, vector<2x1x1x4xf32>
    tpu.vector_store %arg10[%c0_148, %c9_149, %c0_150, %c0_151], %61 {strides = array<i32>} : memref<2x10x10x4xf32, #tpu.memory_space<vmem>>, vector<2x1x1x4xf32>,
    %63 = vector.extract_strided_slice %47 {offsets = [0, 6, 6, 0], sizes = [2, 1, 1, 4], strides = [1, 1, 1, 1]} : vector<2x8x8x4xf32> to vector<2x1x1x4xf32>
    %c0_152 = arith.constant 0 : index
    %c9_153 = arith.constant 9 : index
    %c9_154 = arith.constant 9 : index
    %c0_155 = arith.constant 0 : index
    %64 = vector.load %arg10[%c0_152, %c9_153, %c9_154, %c0_155] : memref<2x10x10x4xf32, #tpu.memory_space<vmem>>, vector<2x1x1x4xf32>
    tpu.vector_store %arg10[%c0_152, %c9_153, %c9_154, %c0_155], %63 {strides = array<i32>} : memref<2x10x10x4xf32, #tpu.memory_space<vmem>>, vector<2x1x1x4xf32>,
    %c0_156 = arith.constant 0 : index
    %c0_157 = arith.constant 0 : index
    %c0_158 = arith.constant 0 : index
    %c0_159 = arith.constant 0 : index
    %65 = vector.load %arg10[%c0_156, %c0_157, %c0_158, %c0_159] : memref<2x10x10x4xf32, #tpu.memory_space<vmem>>, vector<2x8x8x4xf32>
    %c0_160 = arith.constant 0 : index
    %c0_161 = arith.constant 0 : index
    %c0_162 = arith.constant 0 : index
    %c0_163 = arith.constant 0 : index
    %66 = vector.load %arg9[%c0_160, %c0_161, %c0_162, %c0_163] : memref<2x8x8x128xf32, #tpu.memory_space<vmem>>, vector<2x8x8x4xf32>
    tpu.vector_store %arg9[%c0_160, %c0_161, %c0_162, %c0_163], %65 {strides = array<i32>} : memref<2x8x8x128xf32, #tpu.memory_space<vmem>>, vector<2x8x8x4xf32>,
    %c0_164 = arith.constant 0 : index
    %c0_165 = arith.constant 0 : index
    %c1_166 = arith.constant 1 : index
    %c0_167 = arith.constant 0 : index
    %67 = vector.load %arg10[%c0_164, %c0_165, %c1_166, %c0_167] : memref<2x10x10x4xf32, #tpu.memory_space<vmem>>, vector<2x8x8x4xf32>
    %c0_168 = arith.constant 0 : index
    %c0_169 = arith.constant 0 : index
    %c0_170 = arith.constant 0 : index
    %c4_171 = arith.constant 4 : index
    %68 = vector.load %arg9[%c0_168, %c0_169, %c0_170, %c4_171] : memref<2x8x8x128xf32, #tpu.memory_space<vmem>>, vector<2x8x8x4xf32>
    tpu.vector_store %arg9[%c0_168, %c0_169, %c0_170, %c4_171], %67 {strides = array<i32>} : memref<2x8x8x128xf32, #tpu.memory_space<vmem>>, vector<2x8x8x4xf32>,
    %c0_172 = arith.constant 0 : index
    %c0_173 = arith.constant 0 : index
    %c2_174 = arith.constant 2 : index
    %c0_175 = arith.constant 0 : index
    %69 = vector.load %arg10[%c0_172, %c0_173, %c2_174, %c0_175] : memref<2x10x10x4xf32, #tpu.memory_space<vmem>>, vector<2x8x8x4xf32>
    %c0_176 = arith.constant 0 : index
    %c0_177 = arith.constant 0 : index
    %c0_178 = arith.constant 0 : index
    %c8_179 = arith.constant 8 : index
    %70 = vector.load %arg9[%c0_176, %c0_177, %c0_178, %c8_179] : memref<2x8x8x128xf32, #tpu.memory_space<vmem>>, vector<2x8x8x4xf32>
    tpu.vector_store %arg9[%c0_176, %c0_177, %c0_178, %c8_179], %69 {strides = array<i32>} : memref<2x8x8x128xf32, #tpu.memory_space<vmem>>, vector<2x8x8x4xf32>,
    %c0_180 = arith.constant 0 : index
    %c1_181 = arith.constant 1 : index
    %c0_182 = arith.constant 0 : index
    %c0_183 = arith.constant 0 : index
    %71 = vector.load %arg10[%c0_180, %c1_181, %c0_182, %c0_183] : memref<2x10x10x4xf32, #tpu.memory_space<vmem>>, vector<2x8x8x4xf32>
    %c0_184 = arith.constant 0 : index
    %c0_185 = arith.constant 0 : index
    %c0_186 = arith.constant 0 : index
    %c12_187 = arith.constant 12 : index
    %72 = vector.load %arg9[%c0_184, %c0_185, %c0_186, %c12_187] : memref<2x8x8x128xf32, #tpu.memory_space<vmem>>, vector<2x8x8x4xf32>
    tpu.vector_store %arg9[%c0_184, %c0_185, %c0_186, %c12_187], %71 {strides = array<i32>} : memref<2x8x8x128xf32, #tpu.memory_space<vmem>>, vector<2x8x8x4xf32>,
    %c0_188 = arith.constant 0 : index
    %c1_189 = arith.constant 1 : index
    %c1_190 = arith.constant 1 : index
    %c0_191 = arith.constant 0 : index
    %73 = vector.load %arg10[%c0_188, %c1_189, %c1_190, %c0_191] : memref<2x10x10x4xf32, #tpu.memory_space<vmem>>, vector<2x8x8x4xf32>
    %c0_192 = arith.constant 0 : index
    %c0_193 = arith.constant 0 : index
    %c0_194 = arith.constant 0 : index
    %c16_195 = arith.constant 16 : index
    %74 = vector.load %arg9[%c0_192, %c0_193, %c0_194, %c16_195] : memref<2x8x8x128xf32, #tpu.memory_space<vmem>>, vector<2x8x8x4xf32>
    tpu.vector_store %arg9[%c0_192, %c0_193, %c0_194, %c16_195], %73 {strides = array<i32>} : memref<2x8x8x128xf32, #tpu.memory_space<vmem>>, vector<2x8x8x4xf32>,
    %c0_196 = arith.constant 0 : index
    %c1_197 = arith.constant 1 : index
    %c2_198 = arith.constant 2 : index
    %c0_199 = arith.constant 0 : index
    %75 = vector.load %arg10[%c0_196, %c1_197, %c2_198, %c0_199] : memref<2x10x10x4xf32, #tpu.memory_space<vmem>>, vector<2x8x8x4xf32>
    %c0_200 = arith.constant 0 : index
    %c0_201 = arith.constant 0 : index
    %c0_202 = arith.constant 0 : index
    %c20_203 = arith.constant 20 : index
    %76 = vector.load %arg9[%c0_200, %c0_201, %c0_202, %c20_203] : memref<2x8x8x128xf32, #tpu.memory_space<vmem>>, vector<2x8x8x4xf32>
    tpu.vector_store %arg9[%c0_200, %c0_201, %c0_202, %c20_203], %75 {strides = array<i32>} : memref<2x8x8x128xf32, #tpu.memory_space<vmem>>, vector<2x8x8x4xf32>,
    %c0_204 = arith.constant 0 : index
    %c2_205 = arith.constant 2 : index
    %c0_206 = arith.constant 0 : index
    %c0_207 = arith.constant 0 : index
    %77 = vector.load %arg10[%c0_204, %c2_205, %c0_206, %c0_207] : memref<2x10x10x4xf32, #tpu.memory_space<vmem>>, vector<2x8x8x4xf32>
    %c0_208 = arith.constant 0 : index
    %c0_209 = arith.constant 0 : index
    %c0_210 = arith.constant 0 : index
    %c24_211 = arith.constant 24 : index
    %78 = vector.load %arg9[%c0_208, %c0_209, %c0_210, %c24_211] : memref<2x8x8x128xf32, #tpu.memory_space<vmem>>, vector<2x8x8x4xf32>
    tpu.vector_store %arg9[%c0_208, %c0_209, %c0_210, %c24_211], %77 {strides = array<i32>} : memref<2x8x8x128xf32, #tpu.memory_space<vmem>>, vector<2x8x8x4xf32>,
    %c0_212 = arith.constant 0 : index
    %c2_213 = arith.constant 2 : index
    %c1_214 = arith.constant 1 : index
    %c0_215 = arith.constant 0 : index
    %79 = vector.load %arg10[%c0_212, %c2_213, %c1_214, %c0_215] : memref<2x10x10x4xf32, #tpu.memory_space<vmem>>, vector<2x8x8x4xf32>
    %c0_216 = arith.constant 0 : index
    %c0_217 = arith.constant 0 : index
    %c0_218 = arith.constant 0 : index
    %c28_219 = arith.constant 28 : index
    %80 = vector.load %arg9[%c0_216, %c0_217, %c0_218, %c28_219] : memref<2x8x8x128xf32, #tpu.memory_space<vmem>>, vector<2x8x8x4xf32>
    tpu.vector_store %arg9[%c0_216, %c0_217, %c0_218, %c28_219], %79 {strides = array<i32>} : memref<2x8x8x128xf32, #tpu.memory_space<vmem>>, vector<2x8x8x4xf32>,
    %c0_220 = arith.constant 0 : index
    %c2_221 = arith.constant 2 : index
    %c2_222 = arith.constant 2 : index
    %c0_223 = arith.constant 0 : index
    %81 = vector.load %arg10[%c0_220, %c2_221, %c2_222, %c0_223] : memref<2x10x10x4xf32, #tpu.memory_space<vmem>>, vector<2x8x8x4xf32>
    %c0_224 = arith.constant 0 : index
    %c0_225 = arith.constant 0 : index
    %c0_226 = arith.constant 0 : index
    %c32_227 = arith.constant 32 : index
    %82 = vector.load %arg9[%c0_224, %c0_225, %c0_226, %c32_227] : memref<2x8x8x128xf32, #tpu.memory_space<vmem>>, vector<2x8x8x4xf32>
    tpu.vector_store %arg9[%c0_224, %c0_225, %c0_226, %c32_227], %81 {strides = array<i32>} : memref<2x8x8x128xf32, #tpu.memory_space<vmem>>, vector<2x8x8x4xf32>,
    %c0_228 = arith.constant 0 : index
    %c0_229 = arith.constant 0 : index
    %c0_230 = arith.constant 0 : index
    %c0_231 = arith.constant 0 : index
    %83 = vector.load %arg9[%c0_228, %c0_229, %c0_230, %c0_231] : memref<2x8x8x128xf32, #tpu.memory_space<vmem>>, vector<2x8x8x128xf32>
    %84 = vector.shape_cast %83 : vector<2x8x8x128xf32> to vector<128x128xf32>
    %c0_232 = arith.constant 0 : index
    %c0_233 = arith.constant 0 : index
    %85 = vector.load %arg3[%c0_232, %c0_233] : memref<128x8xf32, #tpu.memory_space<vmem>>, vector<128x8xf32>
    %cst_234 = arith.constant dense<0.000000e+00> : vector<128x8xf32>
    %86 = tpu.matmul %84, %85, %cst_234 {dimension_numbers = #tpu.dot_dimension_numbers<[1], [0], [0], [1], [0, 0, 1, 1], [], []>} : vector<128x128xf32>, vector<128x8xf32>, vector<128x8xf32> -> vector<128x8xf32>
    %c0_235 = arith.constant 0 : index
    %c0_236 = arith.constant 0 : index
    %87 = vector.load %arg6[%c0_235, %c0_236] : memref<2x8xf32, #tpu.memory_space<vmem>>, vector<1x8xf32>
    %88 = vector.broadcast %87 : vector<1x8xf32> to vector<128x8xf32>
    %89 = arith.mulf %86, %88 : vector<128x8xf32>
    %c1_237 = arith.constant 1 : index
    %c0_238 = arith.constant 0 : index
    %90 = vector.load %arg6[%c1_237, %c0_238] : memref<2x8xf32, #tpu.memory_space<vmem>>, vector<1x8xf32>
    %91 = vector.broadcast %90 : vector<1x8xf32> to vector<128x8xf32>
    %92 = arith.addf %89, %91 : vector<128x8xf32>
    %cst_239 = arith.constant 0.000000e+00 : f32
    %93 = vector.broadcast %cst_239 : f32 to vector<128x8xf32>
    %94 = arith.maximumf %92, %93 : vector<128x8xf32>
    %95 = vector.shape_cast %94 : vector<128x8xf32> to vector<2x8x8x8xf32>
    %c0_240 = arith.constant 0 : index
    %c1_241 = arith.constant 1 : index
    %c1_242 = arith.constant 1 : index
    %c0_243 = arith.constant 0 : index
    %96 = vector.load %arg11[%c0_240, %c1_241, %c1_242, %c0_243] : memref<2x10x10x8xf32, #tpu.memory_space<vmem>>, vector<2x8x8x8xf32>
    tpu.vector_store %arg11[%c0_240, %c1_241, %c1_242, %c0_243], %95 {strides = array<i32>} : memref<2x10x10x8xf32, #tpu.memory_space<vmem>>, vector<2x8x8x8xf32>,
    %97 = vector.extract_strided_slice %95 {offsets = [0, 1, 0, 0], sizes = [2, 1, 8, 8], strides = [1, 1, 1, 1]} : vector<2x8x8x8xf32> to vector<2x1x8x8xf32>
    %c0_244 = arith.constant 0 : index
    %c0_245 = arith.constant 0 : index
    %c1_246 = arith.constant 1 : index
    %c0_247 = arith.constant 0 : index
    %98 = vector.load %arg11[%c0_244, %c0_245, %c1_246, %c0_247] : memref<2x10x10x8xf32, #tpu.memory_space<vmem>>, vector<2x1x8x8xf32>
    tpu.vector_store %arg11[%c0_244, %c0_245, %c1_246, %c0_247], %97 {strides = array<i32>} : memref<2x10x10x8xf32, #tpu.memory_space<vmem>>, vector<2x1x8x8xf32>,
    %99 = vector.extract_strided_slice %95 {offsets = [0, 6, 0, 0], sizes = [2, 1, 8, 8], strides = [1, 1, 1, 1]} : vector<2x8x8x8xf32> to vector<2x1x8x8xf32>
    %c0_248 = arith.constant 0 : index
    %c9_249 = arith.constant 9 : index
    %c1_250 = arith.constant 1 : index
    %c0_251 = arith.constant 0 : index
    %100 = vector.load %arg11[%c0_248, %c9_249, %c1_250, %c0_251] : memref<2x10x10x8xf32, #tpu.memory_space<vmem>>, vector<2x1x8x8xf32>
    tpu.vector_store %arg11[%c0_248, %c9_249, %c1_250, %c0_251], %99 {strides = array<i32>} : memref<2x10x10x8xf32, #tpu.memory_space<vmem>>, vector<2x1x8x8xf32>,
    %101 = vector.extract_strided_slice %95 {offsets = [0, 0, 1, 0], sizes = [2, 8, 1, 8], strides = [1, 1, 1, 1]} : vector<2x8x8x8xf32> to vector<2x8x1x8xf32>
    %c0_252 = arith.constant 0 : index
    %c1_253 = arith.constant 1 : index
    %c0_254 = arith.constant 0 : index
    %c0_255 = arith.constant 0 : index
    %102 = vector.load %arg11[%c0_252, %c1_253, %c0_254, %c0_255] : memref<2x10x10x8xf32, #tpu.memory_space<vmem>>, vector<2x8x1x8xf32>
    tpu.vector_store %arg11[%c0_252, %c1_253, %c0_254, %c0_255], %101 {strides = array<i32>} : memref<2x10x10x8xf32, #tpu.memory_space<vmem>>, vector<2x8x1x8xf32>,
    %103 = vector.extract_strided_slice %95 {offsets = [0, 0, 6, 0], sizes = [2, 8, 1, 8], strides = [1, 1, 1, 1]} : vector<2x8x8x8xf32> to vector<2x8x1x8xf32>
    %c0_256 = arith.constant 0 : index
    %c1_257 = arith.constant 1 : index
    %c9_258 = arith.constant 9 : index
    %c0_259 = arith.constant 0 : index
    %104 = vector.load %arg11[%c0_256, %c1_257, %c9_258, %c0_259] : memref<2x10x10x8xf32, #tpu.memory_space<vmem>>, vector<2x8x1x8xf32>
    tpu.vector_store %arg11[%c0_256, %c1_257, %c9_258, %c0_259], %103 {strides = array<i32>} : memref<2x10x10x8xf32, #tpu.memory_space<vmem>>, vector<2x8x1x8xf32>,
    %105 = vector.extract_strided_slice %95 {offsets = [0, 1, 1, 0], sizes = [2, 1, 1, 8], strides = [1, 1, 1, 1]} : vector<2x8x8x8xf32> to vector<2x1x1x8xf32>
    %c0_260 = arith.constant 0 : index
    %c0_261 = arith.constant 0 : index
    %c0_262 = arith.constant 0 : index
    %c0_263 = arith.constant 0 : index
    %106 = vector.load %arg11[%c0_260, %c0_261, %c0_262, %c0_263] : memref<2x10x10x8xf32, #tpu.memory_space<vmem>>, vector<2x1x1x8xf32>
    tpu.vector_store %arg11[%c0_260, %c0_261, %c0_262, %c0_263], %105 {strides = array<i32>} : memref<2x10x10x8xf32, #tpu.memory_space<vmem>>, vector<2x1x1x8xf32>,
    %107 = vector.extract_strided_slice %95 {offsets = [0, 1, 6, 0], sizes = [2, 1, 1, 8], strides = [1, 1, 1, 1]} : vector<2x8x8x8xf32> to vector<2x1x1x8xf32>
    %c0_264 = arith.constant 0 : index
    %c0_265 = arith.constant 0 : index
    %c9_266 = arith.constant 9 : index
    %c0_267 = arith.constant 0 : index
    %108 = vector.load %arg11[%c0_264, %c0_265, %c9_266, %c0_267] : memref<2x10x10x8xf32, #tpu.memory_space<vmem>>, vector<2x1x1x8xf32>
    tpu.vector_store %arg11[%c0_264, %c0_265, %c9_266, %c0_267], %107 {strides = array<i32>} : memref<2x10x10x8xf32, #tpu.memory_space<vmem>>, vector<2x1x1x8xf32>,
    %109 = vector.extract_strided_slice %95 {offsets = [0, 6, 1, 0], sizes = [2, 1, 1, 8], strides = [1, 1, 1, 1]} : vector<2x8x8x8xf32> to vector<2x1x1x8xf32>
    %c0_268 = arith.constant 0 : index
    %c9_269 = arith.constant 9 : index
    %c0_270 = arith.constant 0 : index
    %c0_271 = arith.constant 0 : index
    %110 = vector.load %arg11[%c0_268, %c9_269, %c0_270, %c0_271] : memref<2x10x10x8xf32, #tpu.memory_space<vmem>>, vector<2x1x1x8xf32>
    tpu.vector_store %arg11[%c0_268, %c9_269, %c0_270, %c0_271], %109 {strides = array<i32>} : memref<2x10x10x8xf32, #tpu.memory_space<vmem>>, vector<2x1x1x8xf32>,
    %111 = vector.extract_strided_slice %95 {offsets = [0, 6, 6, 0], sizes = [2, 1, 1, 8], strides = [1, 1, 1, 1]} : vector<2x8x8x8xf32> to vector<2x1x1x8xf32>
    %c0_272 = arith.constant 0 : index
    %c9_273 = arith.constant 9 : index
    %c9_274 = arith.constant 9 : index
    %c0_275 = arith.constant 0 : index
    %112 = vector.load %arg11[%c0_272, %c9_273, %c9_274, %c0_275] : memref<2x10x10x8xf32, #tpu.memory_space<vmem>>, vector<2x1x1x8xf32>
    tpu.vector_store %arg11[%c0_272, %c9_273, %c9_274, %c0_275], %111 {strides = array<i32>} : memref<2x10x10x8xf32, #tpu.memory_space<vmem>>, vector<2x1x1x8xf32>,
    %c0_276 = arith.constant 0 : index
    %c0_277 = arith.constant 0 : index
    %c0_278 = arith.constant 0 : index
    %c0_279 = arith.constant 0 : index
    %113 = vector.load %arg11[%c0_276, %c0_277, %c0_278, %c0_279] : memref<2x10x10x8xf32, #tpu.memory_space<vmem>>, vector<2x8x8x8xf32>
    %c0_280 = arith.constant 0 : index
    %c0_281 = arith.constant 0 : index
    %c0_282 = arith.constant 0 : index
    %c0_283 = arith.constant 0 : index
    %114 = vector.load %arg9[%c0_280, %c0_281, %c0_282, %c0_283] : memref<2x8x8x128xf32, #tpu.memory_space<vmem>>, vector<2x8x8x8xf32>
    tpu.vector_store %arg9[%c0_280, %c0_281, %c0_282, %c0_283], %113 {strides = array<i32>} : memref<2x8x8x128xf32, #tpu.memory_space<vmem>>, vector<2x8x8x8xf32>,
    %c0_284 = arith.constant 0 : index
    %c0_285 = arith.constant 0 : index
    %c1_286 = arith.constant 1 : index
    %c0_287 = arith.constant 0 : index
    %115 = vector.load %arg11[%c0_284, %c0_285, %c1_286, %c0_287] : memref<2x10x10x8xf32, #tpu.memory_space<vmem>>, vector<2x8x8x8xf32>
    %c0_288 = arith.constant 0 : index
    %c0_289 = arith.constant 0 : index
    %c0_290 = arith.constant 0 : index
    %c8_291 = arith.constant 8 : index
    %116 = vector.load %arg9[%c0_288, %c0_289, %c0_290, %c8_291] : memref<2x8x8x128xf32, #tpu.memory_space<vmem>>, vector<2x8x8x8xf32>
    tpu.vector_store %arg9[%c0_288, %c0_289, %c0_290, %c8_291], %115 {strides = array<i32>} : memref<2x8x8x128xf32, #tpu.memory_space<vmem>>, vector<2x8x8x8xf32>,
    %c0_292 = arith.constant 0 : index
    %c0_293 = arith.constant 0 : index
    %c2_294 = arith.constant 2 : index
    %c0_295 = arith.constant 0 : index
    %117 = vector.load %arg11[%c0_292, %c0_293, %c2_294, %c0_295] : memref<2x10x10x8xf32, #tpu.memory_space<vmem>>, vector<2x8x8x8xf32>
    %c0_296 = arith.constant 0 : index
    %c0_297 = arith.constant 0 : index
    %c0_298 = arith.constant 0 : index
    %c16_299 = arith.constant 16 : index
    %118 = vector.load %arg9[%c0_296, %c0_297, %c0_298, %c16_299] : memref<2x8x8x128xf32, #tpu.memory_space<vmem>>, vector<2x8x8x8xf32>
    tpu.vector_store %arg9[%c0_296, %c0_297, %c0_298, %c16_299], %117 {strides = array<i32>} : memref<2x8x8x128xf32, #tpu.memory_space<vmem>>, vector<2x8x8x8xf32>,
    %c0_300 = arith.constant 0 : index
    %c1_301 = arith.constant 1 : index
    %c0_302 = arith.constant 0 : index
    %c0_303 = arith.constant 0 : index
    %119 = vector.load %arg11[%c0_300, %c1_301, %c0_302, %c0_303] : memref<2x10x10x8xf32, #tpu.memory_space<vmem>>, vector<2x8x8x8xf32>
    %c0_304 = arith.constant 0 : index
    %c0_305 = arith.constant 0 : index
    %c0_306 = arith.constant 0 : index
    %c24_307 = arith.constant 24 : index
    %120 = vector.load %arg9[%c0_304, %c0_305, %c0_306, %c24_307] : memref<2x8x8x128xf32, #tpu.memory_space<vmem>>, vector<2x8x8x8xf32>
    tpu.vector_store %arg9[%c0_304, %c0_305, %c0_306, %c24_307], %119 {strides = array<i32>} : memref<2x8x8x128xf32, #tpu.memory_space<vmem>>, vector<2x8x8x8xf32>,
    %c0_308 = arith.constant 0 : index
    %c1_309 = arith.constant 1 : index
    %c1_310 = arith.constant 1 : index
    %c0_311 = arith.constant 0 : index
    %121 = vector.load %arg11[%c0_308, %c1_309, %c1_310, %c0_311] : memref<2x10x10x8xf32, #tpu.memory_space<vmem>>, vector<2x8x8x8xf32>
    %c0_312 = arith.constant 0 : index
    %c0_313 = arith.constant 0 : index
    %c0_314 = arith.constant 0 : index
    %c32_315 = arith.constant 32 : index
    %122 = vector.load %arg9[%c0_312, %c0_313, %c0_314, %c32_315] : memref<2x8x8x128xf32, #tpu.memory_space<vmem>>, vector<2x8x8x8xf32>
    tpu.vector_store %arg9[%c0_312, %c0_313, %c0_314, %c32_315], %121 {strides = array<i32>} : memref<2x8x8x128xf32, #tpu.memory_space<vmem>>, vector<2x8x8x8xf32>,
    %c0_316 = arith.constant 0 : index
    %c1_317 = arith.constant 1 : index
    %c2_318 = arith.constant 2 : index
    %c0_319 = arith.constant 0 : index
    %123 = vector.load %arg11[%c0_316, %c1_317, %c2_318, %c0_319] : memref<2x10x10x8xf32, #tpu.memory_space<vmem>>, vector<2x8x8x8xf32>
    %c0_320 = arith.constant 0 : index
    %c0_321 = arith.constant 0 : index
    %c0_322 = arith.constant 0 : index
    %c40_323 = arith.constant 40 : index
    %124 = vector.load %arg9[%c0_320, %c0_321, %c0_322, %c40_323] : memref<2x8x8x128xf32, #tpu.memory_space<vmem>>, vector<2x8x8x8xf32>
    tpu.vector_store %arg9[%c0_320, %c0_321, %c0_322, %c40_323], %123 {strides = array<i32>} : memref<2x8x8x128xf32, #tpu.memory_space<vmem>>, vector<2x8x8x8xf32>,
    %c0_324 = arith.constant 0 : index
    %c2_325 = arith.constant 2 : index
    %c0_326 = arith.constant 0 : index
    %c0_327 = arith.constant 0 : index
    %125 = vector.load %arg11[%c0_324, %c2_325, %c0_326, %c0_327] : memref<2x10x10x8xf32, #tpu.memory_space<vmem>>, vector<2x8x8x8xf32>
    %c0_328 = arith.constant 0 : index
    %c0_329 = arith.constant 0 : index
    %c0_330 = arith.constant 0 : index
    %c48_331 = arith.constant 48 : index
    %126 = vector.load %arg9[%c0_328, %c0_329, %c0_330, %c48_331] : memref<2x8x8x128xf32, #tpu.memory_space<vmem>>, vector<2x8x8x8xf32>
    tpu.vector_store %arg9[%c0_328, %c0_329, %c0_330, %c48_331], %125 {strides = array<i32>} : memref<2x8x8x128xf32, #tpu.memory_space<vmem>>, vector<2x8x8x8xf32>,
    %c0_332 = arith.constant 0 : index
    %c2_333 = arith.constant 2 : index
    %c1_334 = arith.constant 1 : index
    %c0_335 = arith.constant 0 : index
    %127 = vector.load %arg11[%c0_332, %c2_333, %c1_334, %c0_335] : memref<2x10x10x8xf32, #tpu.memory_space<vmem>>, vector<2x8x8x8xf32>
    %c0_336 = arith.constant 0 : index
    %c0_337 = arith.constant 0 : index
    %c0_338 = arith.constant 0 : index
    %c56_339 = arith.constant 56 : index
    %128 = vector.load %arg9[%c0_336, %c0_337, %c0_338, %c56_339] : memref<2x8x8x128xf32, #tpu.memory_space<vmem>>, vector<2x8x8x8xf32>
    tpu.vector_store %arg9[%c0_336, %c0_337, %c0_338, %c56_339], %127 {strides = array<i32>} : memref<2x8x8x128xf32, #tpu.memory_space<vmem>>, vector<2x8x8x8xf32>,
    %c0_340 = arith.constant 0 : index
    %c2_341 = arith.constant 2 : index
    %c2_342 = arith.constant 2 : index
    %c0_343 = arith.constant 0 : index
    %129 = vector.load %arg11[%c0_340, %c2_341, %c2_342, %c0_343] : memref<2x10x10x8xf32, #tpu.memory_space<vmem>>, vector<2x8x8x8xf32>
    %c0_344 = arith.constant 0 : index
    %c0_345 = arith.constant 0 : index
    %c0_346 = arith.constant 0 : index
    %c64 = arith.constant 64 : index
    %130 = vector.load %arg9[%c0_344, %c0_345, %c0_346, %c64] : memref<2x8x8x128xf32, #tpu.memory_space<vmem>>, vector<2x8x8x8xf32>
    tpu.vector_store %arg9[%c0_344, %c0_345, %c0_346, %c64], %129 {strides = array<i32>} : memref<2x8x8x128xf32, #tpu.memory_space<vmem>>, vector<2x8x8x8xf32>,
    %c0_347 = arith.constant 0 : index
    %c0_348 = arith.constant 0 : index
    %c0_349 = arith.constant 0 : index
    %c0_350 = arith.constant 0 : index
    %131 = vector.load %arg9[%c0_347, %c0_348, %c0_349, %c0_350] : memref<2x8x8x128xf32, #tpu.memory_space<vmem>>, vector<2x8x8x128xf32>
    %132 = vector.shape_cast %131 : vector<2x8x8x128xf32> to vector<128x128xf32>
    %c0_351 = arith.constant 0 : index
    %c0_352 = arith.constant 0 : index
    %133 = vector.load %arg4[%c0_351, %c0_352] : memref<128x8xf32, #tpu.memory_space<vmem>>, vector<128x8xf32>
    %cst_353 = arith.constant dense<0.000000e+00> : vector<128x8xf32>
    %134 = tpu.matmul %132, %133, %cst_353 {dimension_numbers = #tpu.dot_dimension_numbers<[1], [0], [0], [1], [0, 0, 1, 1], [], []>} : vector<128x128xf32>, vector<128x8xf32>, vector<128x8xf32> -> vector<128x8xf32>
    %c0_354 = arith.constant 0 : index
    %c0_355 = arith.constant 0 : index
    %135 = vector.load %arg7[%c0_354, %c0_355] : memref<2x8xf32, #tpu.memory_space<vmem>>, vector<1x8xf32>
    %136 = vector.broadcast %135 : vector<1x8xf32> to vector<128x8xf32>
    %137 = arith.mulf %134, %136 : vector<128x8xf32>
    %c1_356 = arith.constant 1 : index
    %c0_357 = arith.constant 0 : index
    %138 = vector.load %arg7[%c1_356, %c0_357] : memref<2x8xf32, #tpu.memory_space<vmem>>, vector<1x8xf32>
    %139 = vector.broadcast %138 : vector<1x8xf32> to vector<128x8xf32>
    %140 = arith.addf %137, %139 : vector<128x8xf32>
    %cst_358 = arith.constant 0.000000e+00 : f32
    %141 = vector.broadcast %cst_358 : f32 to vector<128x8xf32>
    %142 = arith.maximumf %140, %141 : vector<128x8xf32>
    %143 = arith.addf %94, %142 : vector<128x8xf32>
    %144 = vector.extract_strided_slice %143 {offsets = [0, 0], sizes = [64, 8], strides = [1, 1]} : vector<128x8xf32> to vector<64x8xf32>
    %145 = tpu.transpose %144, [1, 0] : vector<64x8xf32> -> vector<8x64xf32>
    %c0_359 = arith.constant 0 : index
    %c0_360 = arith.constant 0 : index
    %c0_361 = arith.constant 0 : index
    %146 = vector.load %arg8[%c0_359, %c0_360, %c0_361] : memref<2x8x64xf32, #tpu.memory_space<vmem>>, vector<1x8x64xf32>
    %147 = vector.shape_cast %146 : vector<1x8x64xf32> to vector<8x64xf32>
    %148 = vector.shape_cast %145 : vector<8x64xf32> to vector<1x8x64xf32>
    tpu.vector_store %arg8[%c0_359, %c0_360, %c0_361], %148 {strides = array<i32>} : memref<2x8x64xf32, #tpu.memory_space<vmem>>, vector<1x8x64xf32>,
    %149 = vector.extract_strided_slice %143 {offsets = [64, 0], sizes = [64, 8], strides = [1, 1]} : vector<128x8xf32> to vector<64x8xf32>
    %150 = tpu.transpose %149, [1, 0] : vector<64x8xf32> -> vector<8x64xf32>
    %c1_362 = arith.constant 1 : index
    %c0_363 = arith.constant 0 : index
    %c0_364 = arith.constant 0 : index
    %151 = vector.load %arg8[%c1_362, %c0_363, %c0_364] : memref<2x8x64xf32, #tpu.memory_space<vmem>>, vector<1x8x64xf32>
    %152 = vector.shape_cast %151 : vector<1x8x64xf32> to vector<8x64xf32>
    %153 = vector.shape_cast %150 : vector<8x64xf32> to vector<1x8x64xf32>
    tpu.vector_store %arg8[%c1_362, %c0_363, %c0_364], %153 {strides = array<i32>} : memref<2x8x64xf32, #tpu.memory_space<vmem>>, vector<1x8x64xf32>,
    return
  }
  func.func @transform_0(%arg0: i32) -> (i32, i32, i32, i32) {
    %c0_i32 = arith.constant 0 : i32
    %c0_i32_0 = arith.constant 0 : i32
    %c0_i32_1 = arith.constant 0 : i32
    %c0_i32_2 = arith.constant 0 : i32
    return %arg0, %c0_i32, %c0_i32_0, %c0_i32_1 : i32, i32, i32, i32
  }
  func.func @transform_1(%arg0: i32) -> (i32, i32) {
    %c0_i32 = arith.constant 0 : i32
    %c0_i32_0 = arith.constant 0 : i32
    %c0_i32_1 = arith.constant 0 : i32
    return %c0_i32, %c0_i32_0 : i32, i32
  }
  func.func @transform_2(%arg0: i32) -> (i32, i32) {
    %c0_i32 = arith.constant 0 : i32
    %c0_i32_0 = arith.constant 0 : i32
    %c0_i32_1 = arith.constant 0 : i32
    return %c0_i32, %c0_i32_0 : i32, i32
  }
  func.func @transform_3(%arg0: i32) -> (i32, i32) {
    %c0_i32 = arith.constant 0 : i32
    %c0_i32_0 = arith.constant 0 : i32
    %c0_i32_1 = arith.constant 0 : i32
    return %c0_i32, %c0_i32_0 : i32, i32
  }
  func.func @transform_4(%arg0: i32) -> (i32, i32) {
    %c0_i32 = arith.constant 0 : i32
    %c0_i32_0 = arith.constant 0 : i32
    %c0_i32_1 = arith.constant 0 : i32
    return %c0_i32, %c0_i32_0 : i32, i32
  }
  func.func @transform_5(%arg0: i32) -> (i32, i32) {
    %c0_i32 = arith.constant 0 : i32
    %c0_i32_0 = arith.constant 0 : i32
    %c0_i32_1 = arith.constant 0 : i32
    return %c0_i32, %c0_i32_0 : i32, i32
  }
  func.func @transform_6(%arg0: i32) -> (i32, i32) {
    %c0_i32 = arith.constant 0 : i32
    %c0_i32_0 = arith.constant 0 : i32
    %c0_i32_1 = arith.constant 0 : i32
    return %c0_i32, %c0_i32_0 : i32, i32
  }
  func.func @transform_7(%arg0: i32) -> (i32, i32, i32) {
    %c0_i32 = arith.constant 0 : i32
    %c0_i32_0 = arith.constant 0 : i32
    %c0_i32_1 = arith.constant 0 : i32
    return %arg0, %c0_i32, %c0_i32_0 : i32, i32, i32
  }
}

</mosaic_0001>

<llo_original>
// kernel: down_conv_block_forward.1
$region0: #{down_conv_block_forward.1}
  #allocation0 [shape = 'u32[]', space=smem, size = 0x4, offset = 0x4, fixed_abs, tag = 'smem constant byte address 0x4 - core index']
  #allocation1 [shape = 'u32[144,128]{1,0:T(1,128)}', space=vmem, size = 0x12000, scoped, tag = 'internal scratch']
  #allocation2 [shape = 'f32[2,8,8,128]{3,2,1,0:T(8,128)}', space=vmem, size = 0x10000, scoped, tag = 'scratch operand']
  #allocation3 [shape = 'f32[2,10,10,4]{3,2,1,0:T(8,128)}', space=vmem, size = 0x28000, scoped, tag = 'scratch operand']
  #allocation4 [shape = 'f32[2,10,10,8]{3,2,1,0:T(8,128)}', space=vmem, size = 0x28000, scoped, tag = 'scratch operand']
  %s0 = inlined_call_operand.vmem [shape: f32[2,18,18,4], index: 0, kind: input, shape index: {}]
  %s1 = inlined_call_operand.vmem [shape: f32[128,4], index: 1, kind: input, shape index: {}]
  %s2 = inlined_call_operand.vmem [shape: f32[128,8], index: 2, kind: input, shape index: {}]
  %s3 = inlined_call_operand.vmem [shape: f32[128,8], index: 3, kind: input, shape index: {}]
  %s4 = inlined_call_operand.vmem [shape: f32[2,4], index: 4, kind: input, shape index: {}]
  %s5 = inlined_call_operand.vmem [shape: f32[2,8], index: 5, kind: input, shape index: {}]
  %s6 = inlined_call_operand.vmem [shape: f32[2,8], index: 6, kind: input, shape index: {}]
  %s7 = inlined_call_operand.vmem [shape: f32[2,8,64], index: 7, kind: output, shape index: {}]
  %s8 = sld [smem:[#allocation0]]
  $region42: #{down_conv_block_forward.1} parent=0
    _
  %s10 = ssub.s32 1, %s8
  %s11 = scalar_select 0, %s10, %s8
  // Predicated region
  $region2: #{down_conv_block_forward.1} parent=0 // pred_check
    _
  $region3: #{down_conv_block_forward.1} parent=0 // pred_check_branch
    %13 = sbr.rel (0) target = $region5
  $region4: #{down_conv_block_forward.1} parent=0 // pred_region
    _
  $region5: #{down_conv_block_forward.1} parent=0 // pred_fallthru
    _
  // Predicated region
  $region6: #{down_conv_block_forward.1} parent=0 // pred_check
    _
  $region7: #{down_conv_block_forward.1} parent=0 // pred_check_branch
    %15 = sbr.rel (0) target = $region9
  $region8: #{down_conv_block_forward.1} parent=0 // pred_region
    _
  $region9: #{down_conv_block_forward.1} parent=0 // pred_fallthru
    _
  // Predicated region
  $region10: #{down_conv_block_forward.1} parent=0 // pred_check
    _
  $region11: #{down_conv_block_forward.1} parent=0 // pred_check_branch
    %17 = sbr.rel (0) target = $region13
  $region12: #{down_conv_block_forward.1} parent=0 // pred_region
    _
  $region13: #{down_conv_block_forward.1} parent=0 // pred_fallthru
    _
  // Predicated region
  $region14: #{down_conv_block_forward.1} parent=0 // pred_check
    _
  $region15: #{down_conv_block_forward.1} parent=0 // pred_check_branch
    %19 = sbr.rel (0) target = $region17
  $region16: #{down_conv_block_forward.1} parent=0 // pred_region
    _
  $region17: #{down_conv_block_forward.1} parent=0 // pred_fallthru
    _
  // Predicated region
  $region18: #{down_conv_block_forward.1} parent=0 // pred_check
    _
  $region19: #{down_conv_block_forward.1} parent=0 // pred_check_branch
    %21 = sbr.rel (0) target = $region21
  $region20: #{down_conv_block_forward.1} parent=0 // pred_region
    _
  $region21: #{down_conv_block_forward.1} parent=0 // pred_fallthru
    _
  // Predicated region
  $region22: #{down_conv_block_forward.1} parent=0 // pred_check
    _
  $region23: #{down_conv_block_forward.1} parent=0 // pred_check_branch
    %23 = sbr.rel (0) target = $region25
  $region24: #{down_conv_block_forward.1} parent=0 // pred_region
    _
  $region25: #{down_conv_block_forward.1} parent=0 // pred_fallthru
    _
  // Predicated region
  $region26: #{down_conv_block_forward.1} parent=0 // pred_check
    _
  $region27: #{down_conv_block_forward.1} parent=0 // pred_check_branch
    %25 = sbr.rel (0) target = $region29
  $region28: #{down_conv_block_forward.1} parent=0 // pred_region
    _
  $region29: #{down_conv_block_forward.1} parent=0 // pred_fallthru
    _
  %p26 = scmp.eq.s32.totalorder 0, 0
  // Predicated region
  $region30: #{down_conv_block_forward.1} parent=0 // pred_check
    %p27 = pneg %p26
  $region31: #{down_conv_block_forward.1} parent=0 // pred_check_branch
    %29 = sbr.rel (%p27) target = $region33
  $region32: #{down_conv_block_forward.1} parent=0 // pred_region
    %30 = vst [vmem:[#allocation2] sm:$0xff] 0.0
    %31 = vst [vmem:[#allocation2 + $0x8] sm:$0xff] 0.0
    %32 = vst [vmem:[#allocation2 + $0x10] sm:$0xff] 0.0
    %33 = vst [vmem:[#allocation2 + $0x18] sm:$0xff] 0.0
    %34 = vst [vmem:[#allocation2 + $0x20] sm:$0xff] 0.0
    %35 = vst [vmem:[#allocation2 + $0x28] sm:$0xff] 0.0
    %36 = vst [vmem:[#allocation2 + $0x30] sm:$0xff] 0.0
    %37 = vst [vmem:[#allocation2 + $0x38] sm:$0xff] 0.0
    %38 = vst [vmem:[#allocation2 + $0x40] sm:$0xff] 0.0
    %39 = vst [vmem:[#allocation2 + $0x48] sm:$0xff] 0.0
    %40 = vst [vmem:[#allocation2 + $0x50] sm:$0xff] 0.0
    %41 = vst [vmem:[#allocation2 + $0x58] sm:$0xff] 0.0
    %42 = vst [vmem:[#allocation2 + $0x60] sm:$0xff] 0.0
    %43 = vst [vmem:[#allocation2 + $0x68] sm:$0xff] 0.0
    %44 = vst [vmem:[#allocation2 + $0x70] sm:$0xff] 0.0
    %45 = vst [vmem:[#allocation2 + $0x78] sm:$0xff] 0.0
  $region33: #{down_conv_block_forward.1} parent=0 // pred_fallthru
    _
  %v46 = vld [vmem:[%s0] ss:$2 sm:$0xff]
  %s47 = scalar_lea.vmem %s0, 48
  %v48 = vld [vmem:[%s47] ss:$2 sm:$0xff]
  %s49 = scalar_lea.vmem %s0, 96
  %v50 = vld [vmem:[%s49] ss:$2 sm:$0xff]
  %s51 = scalar_lea.vmem %s0, 144
  %v52 = vld [vmem:[%s51] ss:$2 sm:$0xff]
  %s53 = scalar_lea.vmem %s0, 192
  %v54 = vld [vmem:[%s53] ss:$2 sm:$0xff]
  %s55 = scalar_lea.vmem %s0, 240
  %v56 = vld [vmem:[%s55] ss:$2 sm:$0xff]
  %s57 = scalar_lea.vmem %s0, 288
  %v58 = vld [vmem:[%s57] ss:$2 sm:$0xff]
  %s59 = scalar_lea.vmem %s0, 336
  %v60 = vld [vmem:[%s59] ss:$2 sm:$0xff]
  %s61 = scalar_lea.vmem %s0, 432
  %v62 = vld [vmem:[%s61] ss:$2 sm:$0xff]
  %s63 = scalar_lea.vmem %s0, 480
  %v64 = vld [vmem:[%s63] ss:$2 sm:$0xff]
  %s65 = scalar_lea.vmem %s0, 528
  %v66 = vld [vmem:[%s65] ss:$2 sm:$0xff]
  %s67 = scalar_lea.vmem %s0, 576
  %v68 = vld [vmem:[%s67] ss:$2 sm:$0xff]
  %s69 = scalar_lea.vmem %s0, 624
  %v70 = vld [vmem:[%s69] ss:$2 sm:$0xff]
  %s71 = scalar_lea.vmem %s0, 672
  %v72 = vld [vmem:[%s71] ss:$2 sm:$0xff]
  %s73 = scalar_lea.vmem %s0, 720
  %v74 = vld [vmem:[%s73] ss:$2 sm:$0xff]
  %s75 = scalar_lea.vmem %s0, 768
  %v76 = vld [vmem:[%s75] ss:$2 sm:$0xff]
  %vm77 = vcmask 31744
  %78 = vst.msk [vmem:[#allocation2] sm:$0xff] %vm77, %v46
  %79 = vst.msk [vmem:[#allocation2 + $0x8] sm:$0xff] %vm77, %v48
  %80 = vst.msk [vmem:[#allocation2 + $0x10] sm:$0xff] %vm77, %v50
  %81 = vst.msk [vmem:[#allocation2 + $0x18] sm:$0xff] %vm77, %v52
  %82 = vst.msk [vmem:[#allocation2 + $0x20] sm:$0xff] %vm77, %v54
  %83 = vst.msk [vmem:[#allocation2 + $0x28] sm:$0xff] %vm77, %v56
  %84 = vst.msk [vmem:[#allocation2 + $0x30] sm:$0xff] %vm77, %v58
  %85 = vst.msk [vmem:[#allocation2 + $0x38] sm:$0xff] %vm77, %v60
  %86 = vst.msk [vmem:[#allocation2 + $0x40] sm:$0xff] %vm77, %v62
  %87 = vst.msk [vmem:[#allocation2 + $0x48] sm:$0xff] %vm77, %v64
  %88 = vst.msk [vmem:[#allocation2 + $0x50] sm:$0xff] %vm77, %v66
  %89 = vst.msk [vmem:[#allocation2 + $0x58] sm:$0xff] %vm77, %v68
  %90 = vst.msk [vmem:[#allocation2 + $0x60] sm:$0xff] %vm77, %v70
  %91 = vst.msk [vmem:[#allocation2 + $0x68] sm:$0xff] %vm77, %v72
  %92 = vst.msk [vmem:[#allocation2 + $0x70] sm:$0xff] %vm77, %v74
  %93 = vst.msk [vmem:[#allocation2 + $0x78] sm:$0xff] %vm77, %v76
  %s94 = scalar_lea.vmem %s0, 1
  %v95 = vld [vmem:[%s94] ss:$2 sm:$0xff]
  %s96 = scalar_lea.vmem %s0, 49
  %v97 = vld [vmem:[%s96] ss:$2 sm:$0xff]
  %s98 = scalar_lea.vmem %s0, 97
  %v99 = vld [vmem:[%s98] ss:$2 sm:$0xff]
  %s100 = scalar_lea.vmem %s0, 145
  %v101 = vld [vmem:[%s100] ss:$2 sm:$0xff]
  %s102 = scalar_lea.vmem %s0, 193
  %v103 = vld [vmem:[%s102] ss:$2 sm:$0xff]
  %s104 = scalar_lea.vmem %s0, 241
  %v105 = vld [vmem:[%s104] ss:$2 sm:$0xff]
  %s106 = scalar_lea.vmem %s0, 289
  %v107 = vld [vmem:[%s106] ss:$2 sm:$0xff]
  %s108 = scalar_lea.vmem %s0, 337
  %v109 = vld [vmem:[%s108] ss:$2 sm:$0xff]
  %s110 = scalar_lea.vmem %s0, 433
  %v111 = vld [vmem:[%s110] ss:$2 sm:$0xff]
  %s112 = scalar_lea.vmem %s0, 481
  %v113 = vld [vmem:[%s112] ss:$2 sm:$0xff]
  %s114 = scalar_lea.vmem %s0, 529
  %v115 = vld [vmem:[%s114] ss:$2 sm:$0xff]
  %s116 = scalar_lea.vmem %s0, 577
  %v117 = vld [vmem:[%s116] ss:$2 sm:$0xff]
  %s118 = scalar_lea.vmem %s0, 625
  %v119 = vld [vmem:[%s118] ss:$2 sm:$0xff]
  %s120 = scalar_lea.vmem %s0, 673
  %v121 = vld [vmem:[%s120] ss:$2 sm:$0xff]
  %s122 = scalar_lea.vmem %s0, 721
  %v123 = vld [vmem:[%s122] ss:$2 sm:$0xff]
  %s124 = scalar_lea.vmem %s0, 769
  %v125 = vld [vmem:[%s124] ss:$2 sm:$0xff]
  %142 = vrot.lane.b32.xlu0 %v95, 4
  %v143 = vpop.permute.xlu0 %142
  %144 = vrot.lane.b32.xlu0 %v97, 4
  %v145 = vpop.permute.xlu0 %144
  %146 = vrot.lane.b32.xlu0 %v99, 4
  %v147 = vpop.permute.xlu0 %146
  %148 = vrot.lane.b32.xlu0 %v101, 4
  %v149 = vpop.permute.xlu0 %148
  %150 = vrot.lane.b32.xlu0 %v103, 4
  %v151 = vpop.permute.xlu0 %150
  %152 = vrot.lane.b32.xlu0 %v105, 4
  %v153 = vpop.permute.xlu0 %152
  %154 = vrot.lane.b32.xlu0 %v107, 4
  %v155 = vpop.permute.xlu0 %154
  %156 = vrot.lane.b32.xlu0 %v109, 4
  %v157 = vpop.permute.xlu0 %156
  %158 = vrot.lane.b32.xlu0 %v111, 4
  %v159 = vpop.permute.xlu0 %158
  %160 = vrot.lane.b32.xlu0 %v113, 4
  %v161 = vpop.permute.xlu0 %160
  %162 = vrot.lane.b32.xlu0 %v115, 4
  %v163 = vpop.permute.xlu0 %162
  %164 = vrot.lane.b32.xlu0 %v117, 4
  %v165 = vpop.permute.xlu0 %164
  %166 = vrot.lane.b32.xlu0 %v119, 4
  %v167 = vpop.permute.xlu0 %166
  %168 = vrot.lane.b32.xlu0 %v121, 4
  %v169 = vpop.permute.xlu0 %168
  %170 = vrot.lane.b32.xlu0 %v123, 4
  %v171 = vpop.permute.xlu0 %170
  %172 = vrot.lane.b32.xlu0 %v125, 4
  %v173 = vpop.permute.xlu0 %172
  %vm190 = vcmask 64544
  %191 = vst.msk [vmem:[#allocation2] sm:$0xff] %vm190, %v143
  %192 = vst.msk [vmem:[#allocation2 + $0x8] sm:$0xff] %vm190, %v145
  %193 = vst.msk [vmem:[#allocation2 + $0x10] sm:$0xff] %vm190, %v147
  %194 = vst.msk [vmem:[#allocation2 + $0x18] sm:$0xff] %vm190, %v149
  %195 = vst.msk [vmem:[#allocation2 + $0x20] sm:$0xff] %vm190, %v151
  %196 = vst.msk [vmem:[#allocation2 + $0x28] sm:$0xff] %vm190, %v153
  %197 = vst.msk [vmem:[#allocation2 + $0x30] sm:$0xff] %vm190, %v155
  %198 = vst.msk [vmem:[#allocation2 + $0x38] sm:$0xff] %vm190, %v157
  %199 = vst.msk [vmem:[#allocation2 + $0x40] sm:$0xff] %vm190, %v159
  %200 = vst.msk [vmem:[#allocation2 + $0x48] sm:$0xff] %vm190, %v161
  %201 = vst.msk [vmem:[#allocation2 + $0x50] sm:$0xff] %vm190, %v163
  %202 = vst.msk [vmem:[#allocation2 + $0x58] sm:$0xff] %vm190, %v165
  %203 = vst.msk [vmem:[#allocation2 + $0x60] sm:$0xff] %vm190, %v167
  %204 = vst.msk [vmem:[#allocation2 + $0x68] sm:$0xff] %vm190, %v169
  %205 = vst.msk [vmem:[#allocation2 + $0x70] sm:$0xff] %vm190, %v171
  %206 = vst.msk [vmem:[#allocation2 + $0x78] sm:$0xff] %vm190, %v173
  %s207 = scalar_lea.vmem %s0, 2
  %v208 = vld [vmem:[%s207] ss:$2 sm:$0xff]
  %s209 = scalar_lea.vmem %s0, 50
  %v210 = vld [vmem:[%s209] ss:$2 sm:$0xff]
  %s211 = scalar_lea.vmem %s0, 98
  %v212 = vld [vmem:[%s211] ss:$2 sm:$0xff]
  %s213 = scalar_lea.vmem %s0, 146
  %v214 = vld [vmem:[%s213] ss:$2 sm:$0xff]
  %s215 = scalar_lea.vmem %s0, 194
  %v216 = vld [vmem:[%s215] ss:$2 sm:$0xff]
  %s217 = scalar_lea.vmem %s0, 242
  %v218 = vld [vmem:[%s217] ss:$2 sm:$0xff]
  %s219 = scalar_lea.vmem %s0, 290
  %v220 = vld [vmem:[%s219] ss:$2 sm:$0xff]
  %s221 = scalar_lea.vmem %s0, 338
  %v222 = vld [vmem:[%s221] ss:$2 sm:$0xff]
  %s223 = scalar_lea.vmem %s0, 434
  %v224 = vld [vmem:[%s223] ss:$2 sm:$0xff]
  %s225 = scalar_lea.vmem %s0, 482
  %v226 = vld [vmem:[%s225] ss:$2 sm:$0xff]
  %s227 = scalar_lea.vmem %s0, 530
  %v228 = vld [vmem:[%s227] ss:$2 sm:$0xff]
  %s229 = scalar_lea.vmem %s0, 578
  %v230 = vld [vmem:[%s229] ss:$2 sm:$0xff]
  %s231 = scalar_lea.vmem %s0, 626
  %v232 = vld [vmem:[%s231] ss:$2 sm:$0xff]
  %s233 = scalar_lea.vmem %s0, 674
  %v234 = vld [vmem:[%s233] ss:$2 sm:$0xff]
  %s235 = scalar_lea.vmem %s0, 722
  %v236 = vld [vmem:[%s235] ss:$2 sm:$0xff]
  %s237 = scalar_lea.vmem %s0, 770
  %v238 = vld [vmem:[%s237] ss:$2 sm:$0xff]
  %255 = vrot.lane.b32.xlu0 %v208, 8
  %v256 = vpop.permute.xlu0 %255
  %257 = vrot.lane.b32.xlu0 %v210, 8
  %v258 = vpop.permute.xlu0 %257
  %259 = vrot.lane.b32.xlu0 %v212, 8
  %v260 = vpop.permute.xlu0 %259
  %261 = vrot.lane.b32.xlu0 %v214, 8
  %v262 = vpop.permute.xlu0 %261
  %263 = vrot.lane.b32.xlu0 %v216, 8
  %v264 = vpop.permute.xlu0 %263
  %265 = vrot.lane.b32.xlu0 %v218, 8
  %v266 = vpop.permute.xlu0 %265
  %267 = vrot.lane.b32.xlu0 %v220, 8
  %v268 = vpop.permute.xlu0 %267
  %269 = vrot.lane.b32.xlu0 %v222, 8
  %v270 = vpop.permute.xlu0 %269
  %271 = vrot.lane.b32.xlu0 %v224, 8
  %v272 = vpop.permute.xlu0 %271
  %273 = vrot.lane.b32.xlu0 %v226, 8
  %v274 = vpop.permute.xlu0 %273
  %275 = vrot.lane.b32.xlu0 %v228, 8
  %v276 = vpop.permute.xlu0 %275
  %277 = vrot.lane.b32.xlu0 %v230, 8
  %v278 = vpop.permute.xlu0 %277
  %279 = vrot.lane.b32.xlu0 %v232, 8
  %v280 = vpop.permute.xlu0 %279
  %281 = vrot.lane.b32.xlu0 %v234, 8
  %v282 = vpop.permute.xlu0 %281
  %283 = vrot.lane.b32.xlu0 %v236, 8
  %v284 = vpop.permute.xlu0 %283
  %285 = vrot.lane.b32.xlu0 %v238, 8
  %v286 = vpop.permute.xlu0 %285
  %vm303 = vcmask 97344
  %304 = vst.msk [vmem:[#allocation2] sm:$0xff] %vm303, %v256
  %305 = vst.msk [vmem:[#allocation2 + $0x8] sm:$0xff] %vm303, %v258
  %306 = vst.msk [vmem:[#allocation2 + $0x10] sm:$0xff] %vm303, %v260
  %307 = vst.msk [vmem:[#allocation2 + $0x18] sm:$0xff] %vm303, %v262
  %308 = vst.msk [vmem:[#allocation2 + $0x20] sm:$0xff] %vm303, %v264
  %309 = vst.msk [vmem:[#allocation2 + $0x28] sm:$0xff] %vm303, %v266
  %310 = vst.msk [vmem:[#allocation2 + $0x30] sm:$0xff] %vm303, %v268
  %311 = vst.msk [vmem:[#allocation2 + $0x38] sm:$0xff] %vm303, %v270
  %312 = vst.msk [vmem:[#allocation2 + $0x40] sm:$0xff] %vm303, %v272
  %313 = vst.msk [vmem:[#allocation2 + $0x48] sm:$0xff] %vm303, %v274
  %314 = vst.msk [vmem:[#allocation2 + $0x50] sm:$0xff] %vm303, %v276
  %315 = vst.msk [vmem:[#allocation2 + $0x58] sm:$0xff] %vm303, %v278
  %316 = vst.msk [vmem:[#allocation2 + $0x60] sm:$0xff] %vm303, %v280
  %317 = vst.msk [vmem:[#allocation2 + $0x68] sm:$0xff] %vm303, %v282
  %318 = vst.msk [vmem:[#allocation2 + $0x70] sm:$0xff] %vm303, %v284
  %319 = vst.msk [vmem:[#allocation2 + $0x78] sm:$0xff] %vm303, %v286
  %s320 = scalar_lea.vmem %s0, 3
  %v321 = vld [vmem:[%s320] ss:$2 sm:$0xff]
  %s322 = scalar_lea.vmem %s0, 51
  %v323 = vld [vmem:[%s322] ss:$2 sm:$0xff]
  %s324 = scalar_lea.vmem %s0, 99
  %v325 = vld [vmem:[%s324] ss:$2 sm:$0xff]
  %s326 = scalar_lea.vmem %s0, 147
  %v327 = vld [vmem:[%s326] ss:$2 sm:$0xff]
  %s328 = scalar_lea.vmem %s0, 195
  %v329 = vld [vmem:[%s328] ss:$2 sm:$0xff]
  %s330 = scalar_lea.vmem %s0, 243
  %v331 = vld [vmem:[%s330] ss:$2 sm:$0xff]
  %s332 = scalar_lea.vmem %s0, 291
  %v333 = vld [vmem:[%s332] ss:$2 sm:$0xff]
  %s334 = scalar_lea.vmem %s0, 339
  %v335 = vld [vmem:[%s334] ss:$2 sm:$0xff]
  %s336 = scalar_lea.vmem %s0, 435
  %v337 = vld [vmem:[%s336] ss:$2 sm:$0xff]
  %s338 = scalar_lea.vmem %s0, 483
  %v339 = vld [vmem:[%s338] ss:$2 sm:$0xff]
  %s340 = scalar_lea.vmem %s0, 531
  %v341 = vld [vmem:[%s340] ss:$2 sm:$0xff]
  %s342 = scalar_lea.vmem %s0, 579
  %v343 = vld [vmem:[%s342] ss:$2 sm:$0xff]
  %s344 = scalar_lea.vmem %s0, 627
  %v345 = vld [vmem:[%s344] ss:$2 sm:$0xff]
  %s346 = scalar_lea.vmem %s0, 675
  %v347 = vld [vmem:[%s346] ss:$2 sm:$0xff]
  %s348 = scalar_lea.vmem %s0, 723
  %v349 = vld [vmem:[%s348] ss:$2 sm:$0xff]
  %s350 = scalar_lea.vmem %s0, 771
  %v351 = vld [vmem:[%s350] ss:$2 sm:$0xff]
  %368 = vrot.lane.b32.xlu0 %v321, 12
  %v369 = vpop.permute.xlu0 %368
  %370 = vrot.lane.b32.xlu0 %v323, 12
  %v371 = vpop.permute.xlu0 %370
  %372 = vrot.lane.b32.xlu0 %v325, 12
  %v373 = vpop.permute.xlu0 %372
  %374 = vrot.lane.b32.xlu0 %v327, 12
  %v375 = vpop.permute.xlu0 %374
  %376 = vrot.lane.b32.xlu0 %v329, 12
  %v377 = vpop.permute.xlu0 %376
  %378 = vrot.lane.b32.xlu0 %v331, 12
  %v379 = vpop.permute.xlu0 %378
  %380 = vrot.lane.b32.xlu0 %v333, 12
  %v381 = vpop.permute.xlu0 %380
  %382 = vrot.lane.b32.xlu0 %v335, 12
  %v383 = vpop.permute.xlu0 %382
  %384 = vrot.lane.b32.xlu0 %v337, 12
  %v385 = vpop.permute.xlu0 %384
  %386 = vrot.lane.b32.xlu0 %v339, 12
  %v387 = vpop.permute.xlu0 %386
  %388 = vrot.lane.b32.xlu0 %v341, 12
  %v389 = vpop.permute.xlu0 %388
  %390 = vrot.lane.b32.xlu0 %v343, 12
  %v391 = vpop.permute.xlu0 %390
  %392 = vrot.lane.b32.xlu0 %v345, 12
  %v393 = vpop.permute.xlu0 %392
  %394 = vrot.lane.b32.xlu0 %v347, 12
  %v395 = vpop.permute.xlu0 %394
  %396 = vrot.lane.b32.xlu0 %v349, 12
  %v397 = vpop.permute.xlu0 %396
  %398 = vrot.lane.b32.xlu0 %v351, 12
  %v399 = vpop.permute.xlu0 %398
  %vm416 = vcmask 130144
  %417 = vst.msk [vmem:[#allocation2] sm:$0xff] %vm416, %v369
  %418 = vst.msk [vmem:[#allocation2 + $0x8] sm:$0xff] %vm416, %v371
  %419 = vst.msk [vmem:[#allocation2 + $0x10] sm:$0xff] %vm416, %v373
  %420 = vst.msk [vmem:[#allocation2 + $0x18] sm:$0xff] %vm416, %v375
  %421 = vst.msk [vmem:[#allocation2 + $0x20] sm:$0xff] %vm416, %v377
  %422 = vst.msk [vmem:[#allocation2 + $0x28] sm:$0xff] %vm416, %v379
  %423 = vst.msk [vmem:[#allocation2 + $0x30] sm:$0xff] %vm416, %v381
  %424 = vst.msk [vmem:[#allocation2 + $0x38] sm:$0xff] %vm416, %v383
  %425 = vst.msk [vmem:[#allocation2 + $0x40] sm:$0xff] %vm416, %v385
  %426 = vst.msk [vmem:[#allocation2 + $0x48] sm:$0xff] %vm416, %v387
  %427 = vst.msk [vmem:[#allocation2 + $0x50] sm:$0xff] %vm416, %v389
  %428 = vst.msk [vmem:[#allocation2 + $0x58] sm:$0xff] %vm416, %v391
  %429 = vst.msk [vmem:[#allocation2 + $0x60] sm:$0xff] %vm416, %v393
  %430 = vst.msk [vmem:[#allocation2 + $0x68] sm:$0xff] %vm416, %v395
  %431 = vst.msk [vmem:[#allocation2 + $0x70] sm:$0xff] %vm416, %v397
  %432 = vst.msk [vmem:[#allocation2 + $0x78] sm:$0xff] %vm416, %v399
  %s433 = scalar_lea.vmem %s0, 24
  %v434 = vld [vmem:[%s433] ss:$2 sm:$0xff]
  %s435 = scalar_lea.vmem %s433, 48
  %v436 = vld [vmem:[%s435] ss:$2 sm:$0xff]
  %s437 = scalar_lea.vmem %s433, 96
  %v438 = vld [vmem:[%s437] ss:$2 sm:$0xff]
  %s439 = scalar_lea.vmem %s433, 144
  %v440 = vld [vmem:[%s439] ss:$2 sm:$0xff]
  %s441 = scalar_lea.vmem %s433, 192
  %v442 = vld [vmem:[%s441] ss:$2 sm:$0xff]
  %s443 = scalar_lea.vmem %s433, 240
  %v444 = vld [vmem:[%s443] ss:$2 sm:$0xff]
  %s445 = scalar_lea.vmem %s433, 288
  %v446 = vld [vmem:[%s445] ss:$2 sm:$0xff]
  %s447 = scalar_lea.vmem %s433, 336
  %v448 = vld [vmem:[%s447] ss:$2 sm:$0xff]
  %s449 = scalar_lea.vmem %s433, 432
  %v450 = vld [vmem:[%s449] ss:$2 sm:$0xff]
  %s451 = scalar_lea.vmem %s433, 480
  %v452 = vld [vmem:[%s451] ss:$2 sm:$0xff]
  %s453 = scalar_lea.vmem %s433, 528
  %v454 = vld [vmem:[%s453] ss:$2 sm:$0xff]
  %s455 = scalar_lea.vmem %s433, 576
  %v456 = vld [vmem:[%s455] ss:$2 sm:$0xff]
  %s457 = scalar_lea.vmem %s433, 624
  %v458 = vld [vmem:[%s457] ss:$2 sm:$0xff]
  %s459 = scalar_lea.vmem %s433, 672
  %v460 = vld [vmem:[%s459] ss:$2 sm:$0xff]
  %s461 = scalar_lea.vmem %s433, 720
  %v462 = vld [vmem:[%s461] ss:$2 sm:$0xff]
  %s463 = scalar_lea.vmem %s433, 768
  %v464 = vld [vmem:[%s463] ss:$2 sm:$0xff]
  %481 = vrot.lane.b32.xlu0 %v434, 16
  %v482 = vpop.permute.xlu0 %481
  %483 = vrot.lane.b32.xlu0 %v436, 16
  %v484 = vpop.permute.xlu0 %483
  %485 = vrot.lane.b32.xlu0 %v438, 16
  %v486 = vpop.permute.xlu0 %485
  %487 = vrot.lane.b32.xlu0 %v440, 16
  %v488 = vpop.permute.xlu0 %487
  %489 = vrot.lane.b32.xlu0 %v442, 16
  %v490 = vpop.permute.xlu0 %489
  %491 = vrot.lane.b32.xlu0 %v444, 16
  %v492 = vpop.permute.xlu0 %491
  %493 = vrot.lane.b32.xlu0 %v446, 16
  %v494 = vpop.permute.xlu0 %493
  %495 = vrot.lane.b32.xlu0 %v448, 16
  %v496 = vpop.permute.xlu0 %495
  %497 = vrot.lane.b32.xlu0 %v450, 16
  %v498 = vpop.permute.xlu0 %497
  %499 = vrot.lane.b32.xlu0 %v452, 16
  %v500 = vpop.permute.xlu0 %499
  %501 = vrot.lane.b32.xlu0 %v454, 16
  %v502 = vpop.permute.xlu0 %501
  %503 = vrot.lane.b32.xlu0 %v456, 16
  %v504 = vpop.permute.xlu0 %503
  %505 = vrot.lane.b32.xlu0 %v458, 16
  %v506 = vpop.permute.xlu0 %505
  %507 = vrot.lane.b32.xlu0 %v460, 16
  %v508 = vpop.permute.xlu0 %507
  %509 = vrot.lane.b32.xlu0 %v462, 16
  %v510 = vpop.permute.xlu0 %509
  %511 = vrot.lane.b32.xlu0 %v464, 16
  %v512 = vpop.permute.xlu0 %511
  %vm529 = vcmask 162944
  %530 = vst.msk [vmem:[#allocation2] sm:$0xff] %vm529, %v482
  %531 = vst.msk [vmem:[#allocation2 + $0x8] sm:$0xff] %vm529, %v484
  %532 = vst.msk [vmem:[#allocation2 + $0x10] sm:$0xff] %vm529, %v486
  %533 = vst.msk [vmem:[#allocation2 + $0x18] sm:$0xff] %vm529, %v488
  %534 = vst.msk [vmem:[#allocation2 + $0x20] sm:$0xff] %vm529, %v490
  %535 = vst.msk [vmem:[#allocation2 + $0x28] sm:$0xff] %vm529, %v492
  %536 = vst.msk [vmem:[#allocation2 + $0x30] sm:$0xff] %vm529, %v494
  %537 = vst.msk [vmem:[#allocation2 + $0x38] sm:$0xff] %vm529, %v496
  %538 = vst.msk [vmem:[#allocation2 + $0x40] sm:$0xff] %vm529, %v498
  %539 = vst.msk [vmem:[#allocation2 + $0x48] sm:$0xff] %vm529, %v500
  %540 = vst.msk [vmem:[#allocation2 + $0x50] sm:$0xff] %vm529, %v502
  %541 = vst.msk [vmem:[#allocation2 + $0x58] sm:$0xff] %vm529, %v504
  %542 = vst.msk [vmem:[#allocation2 + $0x60] sm:$0xff] %vm529, %v506
  %543 = vst.msk [vmem:[#allocation2 + $0x68] sm:$0xff] %vm529, %v508
  %544 = vst.msk [vmem:[#allocation2 + $0x70] sm:$0xff] %vm529, %v510
  %545 = vst.msk [vmem:[#allocation2 + $0x78] sm:$0xff] %vm529, %v512
  %s546 = scalar_lea.vmem %s433, 1
  %v547 = vld [vmem:[%s546] ss:$2 sm:$0xff]
  %s548 = scalar_lea.vmem %s433, 49
  %v549 = vld [vmem:[%s548] ss:$2 sm:$0xff]
  %s550 = scalar_lea.vmem %s433, 97
  %v551 = vld [vmem:[%s550] ss:$2 sm:$0xff]
  %s552 = scalar_lea.vmem %s433, 145
  %v553 = vld [vmem:[%s552] ss:$2 sm:$0xff]
  %s554 = scalar_lea.vmem %s433, 193
  %v555 = vld [vmem:[%s554] ss:$2 sm:$0xff]
  %s556 = scalar_lea.vmem %s433, 241
  %v557 = vld [vmem:[%s556] ss:$2 sm:$0xff]
  %s558 = scalar_lea.vmem %s433, 289
  %v559 = vld [vmem:[%s558] ss:$2 sm:$0xff]
  %s560 = scalar_lea.vmem %s433, 337
  %v561 = vld [vmem:[%s560] ss:$2 sm:$0xff]
  %s562 = scalar_lea.vmem %s433, 433
  %v563 = vld [vmem:[%s562] ss:$2 sm:$0xff]
  %s564 = scalar_lea.vmem %s433, 481
  %v565 = vld [vmem:[%s564] ss:$2 sm:$0xff]
  %s566 = scalar_lea.vmem %s433, 529
  %v567 = vld [vmem:[%s566] ss:$2 sm:$0xff]
  %s568 = scalar_lea.vmem %s433, 577
  %v569 = vld [vmem:[%s568] ss:$2 sm:$0xff]
  %s570 = scalar_lea.vmem %s433, 625
  %v571 = vld [vmem:[%s570] ss:$2 sm:$0xff]
  %s572 = scalar_lea.vmem %s433, 673
  %v573 = vld [vmem:[%s572] ss:$2 sm:$0xff]
  %s574 = scalar_lea.vmem %s433, 721
  %v575 = vld [vmem:[%s574] ss:$2 sm:$0xff]
  %s576 = scalar_lea.vmem %s433, 769
  %v577 = vld [vmem:[%s576] ss:$2 sm:$0xff]
  %594 = vrot.lane.b32.xlu0 %v547, 20
  %v595 = vpop.permute.xlu0 %594
  %596 = vrot.lane.b32.xlu0 %v549, 20
  %v597 = vpop.permute.xlu0 %596
  %598 = vrot.lane.b32.xlu0 %v551, 20
  %v599 = vpop.permute.xlu0 %598
  %600 = vrot.lane.b32.xlu0 %v553, 20
  %v601 = vpop.permute.xlu0 %600
  %602 = vrot.lane.b32.xlu0 %v555, 20
  %v603 = vpop.permute.xlu0 %602
  %604 = vrot.lane.b32.xlu0 %v557, 20
  %v605 = vpop.permute.xlu0 %604
  %606 = vrot.lane.b32.xlu0 %v559, 20
  %v607 = vpop.permute.xlu0 %606
  %608 = vrot.lane.b32.xlu0 %v561, 20
  %v609 = vpop.permute.xlu0 %608
  %610 = vrot.lane.b32.xlu0 %v563, 20
  %v611 = vpop.permute.xlu0 %610
  %612 = vrot.lane.b32.xlu0 %v565, 20
  %v613 = vpop.permute.xlu0 %612
  %614 = vrot.lane.b32.xlu0 %v567, 20
  %v615 = vpop.permute.xlu0 %614
  %616 = vrot.lane.b32.xlu0 %v569, 20
  %v617 = vpop.permute.xlu0 %616
  %618 = vrot.lane.b32.xlu0 %v571, 20
  %v619 = vpop.permute.xlu0 %618
  %620 = vrot.lane.b32.xlu0 %v573, 20
  %v621 = vpop.permute.xlu0 %620
  %622 = vrot.lane.b32.xlu0 %v575, 20
  %v623 = vpop.permute.xlu0 %622
  %624 = vrot.lane.b32.xlu0 %v577, 20
  %v625 = vpop.permute.xlu0 %624
  %vm642 = vcmask 195744
  %643 = vst.msk [vmem:[#allocation2] sm:$0xff] %vm642, %v595
  %644 = vst.msk [vmem:[#allocation2 + $0x8] sm:$0xff] %vm642, %v597
  %645 = vst.msk [vmem:[#allocation2 + $0x10] sm:$0xff] %vm642, %v599
  %646 = vst.msk [vmem:[#allocation2 + $0x18] sm:$0xff] %vm642, %v601
  %647 = vst.msk [vmem:[#allocation2 + $0x20] sm:$0xff] %vm642, %v603
  %648 = vst.msk [vmem:[#allocation2 + $0x28] sm:$0xff] %vm642, %v605
  %649 = vst.msk [vmem:[#allocation2 + $0x30] sm:$0xff] %vm642, %v607
  %650 = vst.msk [vmem:[#allocation2 + $0x38] sm:$0xff] %vm642, %v609
  %651 = vst.msk [vmem:[#allocation2 + $0x40] sm:$0xff] %vm642, %v611
  %652 = vst.msk [vmem:[#allocation2 + $0x48] sm:$0xff] %vm642, %v613
  %653 = vst.msk [vmem:[#allocation2 + $0x50] sm:$0xff] %vm642, %v615
  %654 = vst.msk [vmem:[#allocation2 + $0x58] sm:$0xff] %vm642, %v617
  %655 = vst.msk [vmem:[#allocation2 + $0x60] sm:$0xff] %vm642, %v619
  %656 = vst.msk [vmem:[#allocation2 + $0x68] sm:$0xff] %vm642, %v621
  %657 = vst.msk [vmem:[#allocation2 + $0x70] sm:$0xff] %vm642, %v623
  %658 = vst.msk [vmem:[#allocation2 + $0x78] sm:$0xff] %vm642, %v625
  %s659 = scalar_lea.vmem %s433, 2
  %v660 = vld [vmem:[%s659] ss:$2 sm:$0xff]
  %s661 = scalar_lea.vmem %s433, 50
  %v662 = vld [vmem:[%s661] ss:$2 sm:$0xff]
  %s663 = scalar_lea.vmem %s433, 98
  %v664 = vld [vmem:[%s663] ss:$2 sm:$0xff]
  %s665 = scalar_lea.vmem %s433, 146
  %v666 = vld [vmem:[%s665] ss:$2 sm:$0xff]
  %s667 = scalar_lea.vmem %s433, 194
  %v668 = vld [vmem:[%s667] ss:$2 sm:$0xff]
  %s669 = scalar_lea.vmem %s433, 242
  %v670 = vld [vmem:[%s669] ss:$2 sm:$0xff]
  %s671 = scalar_lea.vmem %s433, 290
  %v672 = vld [vmem:[%s671] ss:$2 sm:$0xff]
  %s673 = scalar_lea.vmem %s433, 338
  %v674 = vld [vmem:[%s673] ss:$2 sm:$0xff]
  %s675 = scalar_lea.vmem %s433, 434
  %v676 = vld [vmem:[%s675] ss:$2 sm:$0xff]
  %s677 = scalar_lea.vmem %s433, 482
  %v678 = vld [vmem:[%s677] ss:$2 sm:$0xff]
  %s679 = scalar_lea.vmem %s433, 530
  %v680 = vld [vmem:[%s679] ss:$2 sm:$0xff]
  %s681 = scalar_lea.vmem %s433, 578
  %v682 = vld [vmem:[%s681] ss:$2 sm:$0xff]
  %s683 = scalar_lea.vmem %s433, 626
  %v684 = vld [vmem:[%s683] ss:$2 sm:$0xff]
  %s685 = scalar_lea.vmem %s433, 674
  %v686 = vld [vmem:[%s685] ss:$2 sm:$0xff]
  %s687 = scalar_lea.vmem %s433, 722
  %v688 = vld [vmem:[%s687] ss:$2 sm:$0xff]
  %s689 = scalar_lea.vmem %s433, 770
  %v690 = vld [vmem:[%s689] ss:$2 sm:$0xff]
  %707 = vrot.lane.b32.xlu0 %v660, 24
  %v708 = vpop.permute.xlu0 %707
  %709 = vrot.lane.b32.xlu0 %v662, 24
  %v710 = vpop.permute.xlu0 %709
  %711 = vrot.lane.b32.xlu0 %v664, 24
  %v712 = vpop.permute.xlu0 %711
  %713 = vrot.lane.b32.xlu0 %v666, 24
  %v714 = vpop.permute.xlu0 %713
  %715 = vrot.lane.b32.xlu0 %v668, 24
  %v716 = vpop.permute.xlu0 %715
  %717 = vrot.lane.b32.xlu0 %v670, 24
  %v718 = vpop.permute.xlu0 %717
  %719 = vrot.lane.b32.xlu0 %v672, 24
  %v720 = vpop.permute.xlu0 %719
  %721 = vrot.lane.b32.xlu0 %v674, 24
  %v722 = vpop.permute.xlu0 %721
  %723 = vrot.lane.b32.xlu0 %v676, 24
  %v724 = vpop.permute.xlu0 %723
  %725 = vrot.lane.b32.xlu0 %v678, 24
  %v726 = vpop.permute.xlu0 %725
  %727 = vrot.lane.b32.xlu0 %v680, 24
  %v728 = vpop.permute.xlu0 %727
  %729 = vrot.lane.b32.xlu0 %v682, 24
  %v730 = vpop.permute.xlu0 %729
  %731 = vrot.lane.b32.xlu0 %v684, 24
  %v732 = vpop.permute.xlu0 %731
  %733 = vrot.lane.b32.xlu0 %v686, 24
  %v734 = vpop.permute.xlu0 %733
  %735 = vrot.lane.b32.xlu0 %v688, 24
  %v736 = vpop.permute.xlu0 %735
  %737 = vrot.lane.b32.xlu0 %v690, 24
  %v738 = vpop.permute.xlu0 %737
  %vm755 = vcmask 228544
  %756 = vst.msk [vmem:[#allocation2] sm:$0xff] %vm755, %v708
  %757 = vst.msk [vmem:[#allocation2 + $0x8] sm:$0xff] %vm755, %v710
  %758 = vst.msk [vmem:[#allocation2 + $0x10] sm:$0xff] %vm755, %v712
  %759 = vst.msk [vmem:[#allocation2 + $0x18] sm:$0xff] %vm755, %v714
  %760 = vst.msk [vmem:[#allocation2 + $0x20] sm:$0xff] %vm755, %v716
  %761 = vst.msk [vmem:[#allocation2 + $0x28] sm:$0xff] %vm755, %v718
  %762 = vst.msk [vmem:[#allocation2 + $0x30] sm:$0xff] %vm755, %v720
  %763 = vst.msk [vmem:[#allocation2 + $0x38] sm:$0xff] %vm755, %v722
  %764 = vst.msk [vmem:[#allocation2 + $0x40] sm:$0xff] %vm755, %v724
  %765 = vst.msk [vmem:[#allocation2 + $0x48] sm:$0xff] %vm755, %v726
  %766 = vst.msk [vmem:[#allocation2 + $0x50] sm:$0xff] %vm755, %v728
  %767 = vst.msk [vmem:[#allocation2 + $0x58] sm:$0xff] %vm755, %v730
  %768 = vst.msk [vmem:[#allocation2 + $0x60] sm:$0xff] %vm755, %v732
  %769 = vst.msk [vmem:[#allocation2 + $0x68] sm:$0xff] %vm755, %v734
  %770 = vst.msk [vmem:[#allocation2 + $0x70] sm:$0xff] %vm755, %v736
  %771 = vst.msk [vmem:[#allocation2 + $0x78] sm:$0xff] %vm755, %v738
  %s772 = scalar_lea.vmem %s433, 3
  %v773 = vld [vmem:[%s772] ss:$2 sm:$0xff]
  %s774 = scalar_lea.vmem %s433, 51
  %v775 = vld [vmem:[%s774] ss:$2 sm:$0xff]
  %s776 = scalar_lea.vmem %s433, 99
  %v777 = vld [vmem:[%s776] ss:$2 sm:$0xff]
  %s778 = scalar_lea.vmem %s433, 147
  %v779 = vld [vmem:[%s778] ss:$2 sm:$0xff]
  %s780 = scalar_lea.vmem %s433, 195
  %v781 = vld [vmem:[%s780] ss:$2 sm:$0xff]
  %s782 = scalar_lea.vmem %s433, 243
  %v783 = vld [vmem:[%s782] ss:$2 sm:$0xff]
  %s784 = scalar_lea.vmem %s433, 291
  %v785 = vld [vmem:[%s784] ss:$2 sm:$0xff]
  %s786 = scalar_lea.vmem %s433, 339
  %v787 = vld [vmem:[%s786] ss:$2 sm:$0xff]
  %s788 = scalar_lea.vmem %s433, 435
  %v789 = vld [vmem:[%s788] ss:$2 sm:$0xff]
  %s790 = scalar_lea.vmem %s433, 483
  %v791 = vld [vmem:[%s790] ss:$2 sm:$0xff]
  %s792 = scalar_lea.vmem %s433, 531
  %v793 = vld [vmem:[%s792] ss:$2 sm:$0xff]
  %s794 = scalar_lea.vmem %s433, 579
  %v795 = vld [vmem:[%s794] ss:$2 sm:$0xff]
  %s796 = scalar_lea.vmem %s433, 627
  %v797 = vld [vmem:[%s796] ss:$2 sm:$0xff]
  %s798 = scalar_lea.vmem %s433, 675
  %v799 = vld [vmem:[%s798] ss:$2 sm:$0xff]
  %s800 = scalar_lea.vmem %s433, 723
  %v801 = vld [vmem:[%s800] ss:$2 sm:$0xff]
  %s802 = scalar_lea.vmem %s433, 771
  %v803 = vld [vmem:[%s802] ss:$2 sm:$0xff]
  %820 = vrot.lane.b32.xlu0 %v773, 28
  %v821 = vpop.permute.xlu0 %820
  %822 = vrot.lane.b32.xlu0 %v775, 28
  %v823 = vpop.permute.xlu0 %822
  %824 = vrot.lane.b32.xlu0 %v777, 28
  %v825 = vpop.permute.xlu0 %824
  %826 = vrot.lane.b32.xlu0 %v779, 28
  %v827 = vpop.permute.xlu0 %826
  %828 = vrot.lane.b32.xlu0 %v781, 28
  %v829 = vpop.permute.xlu0 %828
  %830 = vrot.lane.b32.xlu0 %v783, 28
  %v831 = vpop.permute.xlu0 %830
  %832 = vrot.lane.b32.xlu0 %v785, 28
  %v833 = vpop.permute.xlu0 %832
  %834 = vrot.lane.b32.xlu0 %v787, 28
  %v835 = vpop.permute.xlu0 %834
  %836 = vrot.lane.b32.xlu0 %v789, 28
  %v837 = vpop.permute.xlu0 %836
  %838 = vrot.lane.b32.xlu0 %v791, 28
  %v839 = vpop.permute.xlu0 %838
  %840 = vrot.lane.b32.xlu0 %v793, 28
  %v841 = vpop.permute.xlu0 %840
  %842 = vrot.lane.b32.xlu0 %v795, 28
  %v843 = vpop.permute.xlu0 %842
  %844 = vrot.lane.b32.xlu0 %v797, 28
  %v845 = vpop.permute.xlu0 %844
  %846 = vrot.lane.b32.xlu0 %v799, 28
  %v847 = vpop.permute.xlu0 %846
  %848 = vrot.lane.b32.xlu0 %v801, 28
  %v849 = vpop.permute.xlu0 %848
  %850 = vrot.lane.b32.xlu0 %v803, 28
  %v851 = vpop.permute.xlu0 %850
  %vm868 = vcmask 261344
  %869 = vst.msk [vmem:[#allocation2] sm:$0xff] %vm868, %v821
  %870 = vst.msk [vmem:[#allocation2 + $0x8] sm:$0xff] %vm868, %v823
  %871 = vst.msk [vmem:[#allocation2 + $0x10] sm:$0xff] %vm868, %v825
  %872 = vst.msk [vmem:[#allocation2 + $0x18] sm:$0xff] %vm868, %v827
  %873 = vst.msk [vmem:[#allocation2 + $0x20] sm:$0xff] %vm868, %v829
  %874 = vst.msk [vmem:[#allocation2 + $0x28] sm:$0xff] %vm868, %v831
  %875 = vst.msk [vmem:[#allocation2 + $0x30] sm:$0xff] %vm868, %v833
  %876 = vst.msk [vmem:[#allocation2 + $0x38] sm:$0xff] %vm868, %v835
  %877 = vst.msk [vmem:[#allocation2 + $0x40] sm:$0xff] %vm868, %v837
  %878 = vst.msk [vmem:[#allocation2 + $0x48] sm:$0xff] %vm868, %v839
  %879 = vst.msk [vmem:[#allocation2 + $0x50] sm:$0xff] %vm868, %v841
  %880 = vst.msk [vmem:[#allocation2 + $0x58] sm:$0xff] %vm868, %v843
  %881 = vst.msk [vmem:[#allocation2 + $0x60] sm:$0xff] %vm868, %v845
  %882 = vst.msk [vmem:[#allocation2 + $0x68] sm:$0xff] %vm868, %v847
  %883 = vst.msk [vmem:[#allocation2 + $0x70] sm:$0xff] %vm868, %v849
  %884 = vst.msk [vmem:[#allocation2 + $0x78] sm:$0xff] %vm868, %v851
  %s885 = scalar_lea.vmem %s0, 48
  %v886 = vld [vmem:[%s885] ss:$2 sm:$0xff]
  %s887 = scalar_lea.vmem %s885, 48
  %v888 = vld [vmem:[%s887] ss:$2 sm:$0xff]
  %s889 = scalar_lea.vmem %s885, 96
  %v890 = vld [vmem:[%s889] ss:$2 sm:$0xff]
  %s891 = scalar_lea.vmem %s885, 144
  %v892 = vld [vmem:[%s891] ss:$2 sm:$0xff]
  %s893 = scalar_lea.vmem %s885, 192
  %v894 = vld [vmem:[%s893] ss:$2 sm:$0xff]
  %s895 = scalar_lea.vmem %s885, 240
  %v896 = vld [vmem:[%s895] ss:$2 sm:$0xff]
  %s897 = scalar_lea.vmem %s885, 288
  %v898 = vld [vmem:[%s897] ss:$2 sm:$0xff]
  %s899 = scalar_lea.vmem %s885, 336
  %v900 = vld [vmem:[%s899] ss:$2 sm:$0xff]
  %s901 = scalar_lea.vmem %s885, 432
  %v902 = vld [vmem:[%s901] ss:$2 sm:$0xff]
  %s903 = scalar_lea.vmem %s885, 480
  %v904 = vld [vmem:[%s903] ss:$2 sm:$0xff]
  %s905 = scalar_lea.vmem %s885, 528
  %v906 = vld [vmem:[%s905] ss:$2 sm:$0xff]
  %s907 = scalar_lea.vmem %s885, 576
  %v908 = vld [vmem:[%s907] ss:$2 sm:$0xff]
  %s909 = scalar_lea.vmem %s885, 624
  %v910 = vld [vmem:[%s909] ss:$2 sm:$0xff]
  %s911 = scalar_lea.vmem %s885, 672
  %v912 = vld [vmem:[%s911] ss:$2 sm:$0xff]
  %s913 = scalar_lea.vmem %s885, 720
  %v914 = vld [vmem:[%s913] ss:$2 sm:$0xff]
  %s915 = scalar_lea.vmem %s885, 768
  %v916 = vld [vmem:[%s915] ss:$2 sm:$0xff]
  %933 = vrot.lane.b32.xlu0 %v886, 32
  %v934 = vpop.permute.xlu0 %933
  %935 = vrot.lane.b32.xlu0 %v888, 32
  %v936 = vpop.permute.xlu0 %935
  %937 = vrot.lane.b32.xlu0 %v890, 32
  %v938 = vpop.permute.xlu0 %937
  %939 = vrot.lane.b32.xlu0 %v892, 32
  %v940 = vpop.permute.xlu0 %939
  %941 = vrot.lane.b32.xlu0 %v894, 32
  %v942 = vpop.permute.xlu0 %941
  %943 = vrot.lane.b32.xlu0 %v896, 32
  %v944 = vpop.permute.xlu0 %943
  %945 = vrot.lane.b32.xlu0 %v898, 32
  %v946 = vpop.permute.xlu0 %945
  %947 = vrot.lane.b32.xlu0 %v900, 32
  %v948 = vpop.permute.xlu0 %947
  %949 = vrot.lane.b32.xlu0 %v902, 32
  %v950 = vpop.permute.xlu0 %949
  %951 = vrot.lane.b32.xlu0 %v904, 32
  %v952 = vpop.permute.xlu0 %951
  %953 = vrot.lane.b32.xlu0 %v906, 32
  %v954 = vpop.permute.xlu0 %953
  %955 = vrot.lane.b32.xlu0 %v908, 32
  %v956 = vpop.permute.xlu0 %955
  %957 = vrot.lane.b32.xlu0 %v910, 32
  %v958 = vpop.permute.xlu0 %957
  %959 = vrot.lane.b32.xlu0 %v912, 32
  %v960 = vpop.permute.xlu0 %959
  %961 = vrot.lane.b32.xlu0 %v914, 32
  %v962 = vpop.permute.xlu0 %961
  %963 = vrot.lane.b32.xlu0 %v916, 32
  %v964 = vpop.permute.xlu0 %963
  %vm981 = vcmask 294144
  %982 = vst.msk [vmem:[#allocation2] sm:$0xff] %vm981, %v934
  %983 = vst.msk [vmem:[#allocation2 + $0x8] sm:$0xff] %vm981, %v936
  %984 = vst.msk [vmem:[#allocation2 + $0x10] sm:$0xff] %vm981, %v938
  %985 = vst.msk [vmem:[#allocation2 + $0x18] sm:$0xff] %vm981, %v940
  %986 = vst.msk [vmem:[#allocation2 + $0x20] sm:$0xff] %vm981, %v942
  %987 = vst.msk [vmem:[#allocation2 + $0x28] sm:$0xff] %vm981, %v944
  %988 = vst.msk [vmem:[#allocation2 + $0x30] sm:$0xff] %vm981, %v946
  %989 = vst.msk [vmem:[#allocation2 + $0x38] sm:$0xff] %vm981, %v948
  %990 = vst.msk [vmem:[#allocation2 + $0x40] sm:$0xff] %vm981, %v950
  %991 = vst.msk [vmem:[#allocation2 + $0x48] sm:$0xff] %vm981, %v952
  %992 = vst.msk [vmem:[#allocation2 + $0x50] sm:$0xff] %vm981, %v954
  %993 = vst.msk [vmem:[#allocation2 + $0x58] sm:$0xff] %vm981, %v956
  %994 = vst.msk [vmem:[#allocation2 + $0x60] sm:$0xff] %vm981, %v958
  %995 = vst.msk [vmem:[#allocation2 + $0x68] sm:$0xff] %vm981, %v960
  %996 = vst.msk [vmem:[#allocation2 + $0x70] sm:$0xff] %vm981, %v962
  %997 = vst.msk [vmem:[#allocation2 + $0x78] sm:$0xff] %vm981, %v964
  %s998 = scalar_lea.vmem %s885, 1
  %v999 = vld [vmem:[%s998] ss:$2 sm:$0xff]
  %s1000 = scalar_lea.vmem %s885, 49
  %v1001 = vld [vmem:[%s1000] ss:$2 sm:$0xff]
  %s1002 = scalar_lea.vmem %s885, 97
  %v1003 = vld [vmem:[%s1002] ss:$2 sm:$0xff]
  %s1004 = scalar_lea.vmem %s885, 145
  %v1005 = vld [vmem:[%s1004] ss:$2 sm:$0xff]
  %s1006 = scalar_lea.vmem %s885, 193
  %v1007 = vld [vmem:[%s1006] ss:$2 sm:$0xff]
  %s1008 = scalar_lea.vmem %s885, 241
  %v1009 = vld [vmem:[%s1008] ss:$2 sm:$0xff]
  %s1010 = scalar_lea.vmem %s885, 289
  %v1011 = vld [vmem:[%s1010] ss:$2 sm:$0xff]
  %s1012 = scalar_lea.vmem %s885, 337
  %v1013 = vld [vmem:[%s1012] ss:$2 sm:$0xff]
  %s1014 = scalar_lea.vmem %s885, 433
  %v1015 = vld [vmem:[%s1014] ss:$2 sm:$0xff]
  %s1016 = scalar_lea.vmem %s885, 481
  %v1017 = vld [vmem:[%s1016] ss:$2 sm:$0xff]
  %s1018 = scalar_lea.vmem %s885, 529
  %v1019 = vld [vmem:[%s1018] ss:$2 sm:$0xff]
  %s1020 = scalar_lea.vmem %s885, 577
  %v1021 = vld [vmem:[%s1020] ss:$2 sm:$0xff]
  %s1022 = scalar_lea.vmem %s885, 625
  %v1023 = vld [vmem:[%s1022] ss:$2 sm:$0xff]
  %s1024 = scalar_lea.vmem %s885, 673
  %v1025 = vld [vmem:[%s1024] ss:$2 sm:$0xff]
  %s1026 = scalar_lea.vmem %s885, 721
  %v1027 = vld [vmem:[%s1026] ss:$2 sm:$0xff]
  %s1028 = scalar_lea.vmem %s885, 769
  %v1029 = vld [vmem:[%s1028] ss:$2 sm:$0xff]
  %1046 = vrot.lane.b32.xlu0 %v999, 36
  %v1047 = vpop.permute.xlu0 %1046
  %1048 = vrot.lane.b32.xlu0 %v1001, 36
  %v1049 = vpop.permute.xlu0 %1048
  %1050 = vrot.lane.b32.xlu0 %v1003, 36
  %v1051 = vpop.permute.xlu0 %1050
  %1052 = vrot.lane.b32.xlu0 %v1005, 36
  %v1053 = vpop.permute.xlu0 %1052
  %1054 = vrot.lane.b32.xlu0 %v1007, 36
  %v1055 = vpop.permute.xlu0 %1054
  %1056 = vrot.lane.b32.xlu0 %v1009, 36
  %v1057 = vpop.permute.xlu0 %1056
  %1058 = vrot.lane.b32.xlu0 %v1011, 36
  %v1059 = vpop.permute.xlu0 %1058
  %1060 = vrot.lane.b32.xlu0 %v1013, 36
  %v1061 = vpop.permute.xlu0 %1060
  %1062 = vrot.lane.b32.xlu0 %v1015, 36
  %v1063 = vpop.permute.xlu0 %1062
  %1064 = vrot.lane.b32.xlu0 %v1017, 36
  %v1065 = vpop.permute.xlu0 %1064
  %1066 = vrot.lane.b32.xlu0 %v1019, 36
  %v1067 = vpop.permute.xlu0 %1066
  %1068 = vrot.lane.b32.xlu0 %v1021, 36
  %v1069 = vpop.permute.xlu0 %1068
  %1070 = vrot.lane.b32.xlu0 %v1023, 36
  %v1071 = vpop.permute.xlu0 %1070
  %1072 = vrot.lane.b32.xlu0 %v1025, 36
  %v1073 = vpop.permute.xlu0 %1072
  %1074 = vrot.lane.b32.xlu0 %v1027, 36
  %v1075 = vpop.permute.xlu0 %1074
  %1076 = vrot.lane.b32.xlu0 %v1029, 36
  %v1077 = vpop.permute.xlu0 %1076
  %vm1094 = vcmask 326944
  %1095 = vst.msk [vmem:[#allocation2] sm:$0xff] %vm1094, %v1047
  %1096 = vst.msk [vmem:[#allocation2 + $0x8] sm:$0xff] %vm1094, %v1049
  %1097 = vst.msk [vmem:[#allocation2 + $0x10] sm:$0xff] %vm1094, %v1051
  %1098 = vst.msk [vmem:[#allocation2 + $0x18] sm:$0xff] %vm1094, %v1053
  %1099 = vst.msk [vmem:[#allocation2 + $0x20] sm:$0xff] %vm1094, %v1055
  %1100 = vst.msk [vmem:[#allocation2 + $0x28] sm:$0xff] %vm1094, %v1057
  %1101 = vst.msk [vmem:[#allocation2 + $0x30] sm:$0xff] %vm1094, %v1059
  %1102 = vst.msk [vmem:[#allocation2 + $0x38] sm:$0xff] %vm1094, %v1061
  %1103 = vst.msk [vmem:[#allocation2 + $0x40] sm:$0xff] %vm1094, %v1063
  %1104 = vst.msk [vmem:[#allocation2 + $0x48] sm:$0xff] %vm1094, %v1065
  %1105 = vst.msk [vmem:[#allocation2 + $0x50] sm:$0xff] %vm1094, %v1067
  %1106 = vst.msk [vmem:[#allocation2 + $0x58] sm:$0xff] %vm1094, %v1069
  %1107 = vst.msk [vmem:[#allocation2 + $0x60] sm:$0xff] %vm1094, %v1071
  %1108 = vst.msk [vmem:[#allocation2 + $0x68] sm:$0xff] %vm1094, %v1073
  %1109 = vst.msk [vmem:[#allocation2 + $0x70] sm:$0xff] %vm1094, %v1075
  %1110 = vst.msk [vmem:[#allocation2 + $0x78] sm:$0xff] %vm1094, %v1077
  %s1111 = scalar_lea.vmem %s885, 2
  %v1112 = vld [vmem:[%s1111] ss:$2 sm:$0xff]
  %s1113 = scalar_lea.vmem %s885, 50
  %v1114 = vld [vmem:[%s1113] ss:$2 sm:$0xff]
  %s1115 = scalar_lea.vmem %s885, 98
  %v1116 = vld [vmem:[%s1115] ss:$2 sm:$0xff]
  %s1117 = scalar_lea.vmem %s885, 146
  %v1118 = vld [vmem:[%s1117] ss:$2 sm:$0xff]
  %s1119 = scalar_lea.vmem %s885, 194
  %v1120 = vld [vmem:[%s1119] ss:$2 sm:$0xff]
  %s1121 = scalar_lea.vmem %s885, 242
  %v1122 = vld [vmem:[%s1121] ss:$2 sm:$0xff]
  %s1123 = scalar_lea.vmem %s885, 290
  %v1124 = vld [vmem:[%s1123] ss:$2 sm:$0xff]
  %s1125 = scalar_lea.vmem %s885, 338
  %v1126 = vld [vmem:[%s1125] ss:$2 sm:$0xff]
  %s1127 = scalar_lea.vmem %s885, 434
  %v1128 = vld [vmem:[%s1127] ss:$2 sm:$0xff]
  %s1129 = scalar_lea.vmem %s885, 482
  %v1130 = vld [vmem:[%s1129] ss:$2 sm:$0xff]
  %s1131 = scalar_lea.vmem %s885, 530
  %v1132 = vld [vmem:[%s1131] ss:$2 sm:$0xff]
  %s1133 = scalar_lea.vmem %s885, 578
  %v1134 = vld [vmem:[%s1133] ss:$2 sm:$0xff]
  %s1135 = scalar_lea.vmem %s885, 626
  %v1136 = vld [vmem:[%s1135] ss:$2 sm:$0xff]
  %s1137 = scalar_lea.vmem %s885, 674
  %v1138 = vld [vmem:[%s1137] ss:$2 sm:$0xff]
  %s1139 = scalar_lea.vmem %s885, 722
  %v1140 = vld [vmem:[%s1139] ss:$2 sm:$0xff]
  %s1141 = scalar_lea.vmem %s885, 770
  %v1142 = vld [vmem:[%s1141] ss:$2 sm:$0xff]
  %1159 = vrot.lane.b32.xlu0 %v1112, 40
  %v1160 = vpop.permute.xlu0 %1159
  %1161 = vrot.lane.b32.xlu0 %v1114, 40
  %v1162 = vpop.permute.xlu0 %1161
  %1163 = vrot.lane.b32.xlu0 %v1116, 40
  %v1164 = vpop.permute.xlu0 %1163
  %1165 = vrot.lane.b32.xlu0 %v1118, 40
  %v1166 = vpop.permute.xlu0 %1165
  %1167 = vrot.lane.b32.xlu0 %v1120, 40
  %v1168 = vpop.permute.xlu0 %1167
  %1169 = vrot.lane.b32.xlu0 %v1122, 40
  %v1170 = vpop.permute.xlu0 %1169
  %1171 = vrot.lane.b32.xlu0 %v1124, 40
  %v1172 = vpop.permute.xlu0 %1171
  %1173 = vrot.lane.b32.xlu0 %v1126, 40
  %v1174 = vpop.permute.xlu0 %1173
  %1175 = vrot.lane.b32.xlu0 %v1128, 40
  %v1176 = vpop.permute.xlu0 %1175
  %1177 = vrot.lane.b32.xlu0 %v1130, 40
  %v1178 = vpop.permute.xlu0 %1177
  %1179 = vrot.lane.b32.xlu0 %v1132, 40
  %v1180 = vpop.permute.xlu0 %1179
  %1181 = vrot.lane.b32.xlu0 %v1134, 40
  %v1182 = vpop.permute.xlu0 %1181
  %1183 = vrot.lane.b32.xlu0 %v1136, 40
  %v1184 = vpop.permute.xlu0 %1183
  %1185 = vrot.lane.b32.xlu0 %v1138, 40
  %v1186 = vpop.permute.xlu0 %1185
  %1187 = vrot.lane.b32.xlu0 %v1140, 40
  %v1188 = vpop.permute.xlu0 %1187
  %1189 = vrot.lane.b32.xlu0 %v1142, 40
  %v1190 = vpop.permute.xlu0 %1189
  %vm1207 = vcmask 359744
  %1208 = vst.msk [vmem:[#allocation2] sm:$0xff] %vm1207, %v1160
  %1209 = vst.msk [vmem:[#allocation2 + $0x8] sm:$0xff] %vm1207, %v1162
  %1210 = vst.msk [vmem:[#allocation2 + $0x10] sm:$0xff] %vm1207, %v1164
  %1211 = vst.msk [vmem:[#allocation2 + $0x18] sm:$0xff] %vm1207, %v1166
  %1212 = vst.msk [vmem:[#allocation2 + $0x20] sm:$0xff] %vm1207, %v1168
  %1213 = vst.msk [vmem:[#allocation2 + $0x28] sm:$0xff] %vm1207, %v1170
  %1214 = vst.msk [vmem:[#allocation2 + $0x30] sm:$0xff] %vm1207, %v1172
  %1215 = vst.msk [vmem:[#allocation2 + $0x38] sm:$0xff] %vm1207, %v1174
  %1216 = vst.msk [vmem:[#allocation2 + $0x40] sm:$0xff] %vm1207, %v1176
  %1217 = vst.msk [vmem:[#allocation2 + $0x48] sm:$0xff] %vm1207, %v1178
  %1218 = vst.msk [vmem:[#allocation2 + $0x50] sm:$0xff] %vm1207, %v1180
  %1219 = vst.msk [vmem:[#allocation2 + $0x58] sm:$0xff] %vm1207, %v1182
  %1220 = vst.msk [vmem:[#allocation2 + $0x60] sm:$0xff] %vm1207, %v1184
  %1221 = vst.msk [vmem:[#allocation2 + $0x68] sm:$0xff] %vm1207, %v1186
  %1222 = vst.msk [vmem:[#allocation2 + $0x70] sm:$0xff] %vm1207, %v1188
  %1223 = vst.msk [vmem:[#allocation2 + $0x78] sm:$0xff] %vm1207, %v1190
  %s1224 = scalar_lea.vmem %s885, 3
  %v1225 = vld [vmem:[%s1224] ss:$2 sm:$0xff]
  %s1226 = scalar_lea.vmem %s885, 51
  %v1227 = vld [vmem:[%s1226] ss:$2 sm:$0xff]
  %s1228 = scalar_lea.vmem %s885, 99
  %v1229 = vld [vmem:[%s1228] ss:$2 sm:$0xff]
  %s1230 = scalar_lea.vmem %s885, 147
  %v1231 = vld [vmem:[%s1230] ss:$2 sm:$0xff]
  %s1232 = scalar_lea.vmem %s885, 195
  %v1233 = vld [vmem:[%s1232] ss:$2 sm:$0xff]
  %s1234 = scalar_lea.vmem %s885, 243
  %v1235 = vld [vmem:[%s1234] ss:$2 sm:$0xff]
  %s1236 = scalar_lea.vmem %s885, 291
  %v1237 = vld [vmem:[%s1236] ss:$2 sm:$0xff]
  %s1238 = scalar_lea.vmem %s885, 339
  %v1239 = vld [vmem:[%s1238] ss:$2 sm:$0xff]
  %s1240 = scalar_lea.vmem %s885, 435
  %v1241 = vld [vmem:[%s1240] ss:$2 sm:$0xff]
  %s1242 = scalar_lea.vmem %s885, 483
  %v1243 = vld [vmem:[%s1242] ss:$2 sm:$0xff]
  %s1244 = scalar_lea.vmem %s885, 531
  %v1245 = vld [vmem:[%s1244] ss:$2 sm:$0xff]
  %s1246 = scalar_lea.vmem %s885, 579
  %v1247 = vld [vmem:[%s1246] ss:$2 sm:$0xff]
  %s1248 = scalar_lea.vmem %s885, 627
  %v1249 = vld [vmem:[%s1248] ss:$2 sm:$0xff]
  %s1250 = scalar_lea.vmem %s885, 675
  %v1251 = vld [vmem:[%s1250] ss:$2 sm:$0xff]
  %s1252 = scalar_lea.vmem %s885, 723
  %v1253 = vld [vmem:[%s1252] ss:$2 sm:$0xff]
  %s1254 = scalar_lea.vmem %s885, 771
  %v1255 = vld [vmem:[%s1254] ss:$2 sm:$0xff]
  %1272 = vrot.lane.b32.xlu0 %v1225, 44
  %v1273 = vpop.permute.xlu0 %1272
  %1274 = vrot.lane.b32.xlu0 %v1227, 44
  %v1275 = vpop.permute.xlu0 %1274
  %1276 = vrot.lane.b32.xlu0 %v1229, 44
  %v1277 = vpop.permute.xlu0 %1276
  %1278 = vrot.lane.b32.xlu0 %v1231, 44
  %v1279 = vpop.permute.xlu0 %1278
  %1280 = vrot.lane.b32.xlu0 %v1233, 44
  %v1281 = vpop.permute.xlu0 %1280
  %1282 = vrot.lane.b32.xlu0 %v1235, 44
  %v1283 = vpop.permute.xlu0 %1282
  %1284 = vrot.lane.b32.xlu0 %v1237, 44
  %v1285 = vpop.permute.xlu0 %1284
  %1286 = vrot.lane.b32.xlu0 %v1239, 44
  %v1287 = vpop.permute.xlu0 %1286
  %1288 = vrot.lane.b32.xlu0 %v1241, 44
  %v1289 = vpop.permute.xlu0 %1288
  %1290 = vrot.lane.b32.xlu0 %v1243, 44
  %v1291 = vpop.permute.xlu0 %1290
  %1292 = vrot.lane.b32.xlu0 %v1245, 44
  %v1293 = vpop.permute.xlu0 %1292
  %1294 = vrot.lane.b32.xlu0 %v1247, 44
  %v1295 = vpop.permute.xlu0 %1294
  %1296 = vrot.lane.b32.xlu0 %v1249, 44
  %v1297 = vpop.permute.xlu0 %1296
  %1298 = vrot.lane.b32.xlu0 %v1251, 44
  %v1299 = vpop.permute.xlu0 %1298
  %1300 = vrot.lane.b32.xlu0 %v1253, 44
  %v1301 = vpop.permute.xlu0 %1300
  %1302 = vrot.lane.b32.xlu0 %v1255, 44
  %v1303 = vpop.permute.xlu0 %1302
  %vm1320 = vcmask 392544
  %1321 = vst.msk [vmem:[#allocation2] sm:$0xff] %vm1320, %v1273
  %1322 = vst.msk [vmem:[#allocation2 + $0x8] sm:$0xff] %vm1320, %v1275
  %1323 = vst.msk [vmem:[#allocation2 + $0x10] sm:$0xff] %vm1320, %v1277
  %1324 = vst.msk [vmem:[#allocation2 + $0x18] sm:$0xff] %vm1320, %v1279
  %1325 = vst.msk [vmem:[#allocation2 + $0x20] sm:$0xff] %vm1320, %v1281
  %1326 = vst.msk [vmem:[#allocation2 + $0x28] sm:$0xff] %vm1320, %v1283
  %1327 = vst.msk [vmem:[#allocation2 + $0x30] sm:$0xff] %vm1320, %v1285
  %1328 = vst.msk [vmem:[#allocation2 + $0x38] sm:$0xff] %vm1320, %v1287
  %1329 = vst.msk [vmem:[#allocation2 + $0x40] sm:$0xff] %vm1320, %v1289
  %1330 = vst.msk [vmem:[#allocation2 + $0x48] sm:$0xff] %vm1320, %v1291
  %1331 = vst.msk [vmem:[#allocation2 + $0x50] sm:$0xff] %vm1320, %v1293
  %1332 = vst.msk [vmem:[#allocation2 + $0x58] sm:$0xff] %vm1320, %v1295
  %1333 = vst.msk [vmem:[#allocation2 + $0x60] sm:$0xff] %vm1320, %v1297
  %1334 = vst.msk [vmem:[#allocation2 + $0x68] sm:$0xff] %vm1320, %v1299
  %1335 = vst.msk [vmem:[#allocation2 + $0x70] sm:$0xff] %vm1320, %v1301
  %1336 = vst.msk [vmem:[#allocation2 + $0x78] sm:$0xff] %vm1320, %v1303
  %s1337 = scalar_lea.vmem %s0, 72
  %v1338 = vld [vmem:[%s1337] ss:$2 sm:$0xff]
  %s1339 = scalar_lea.vmem %s1337, 48
  %v1340 = vld [vmem:[%s1339] ss:$2 sm:$0xff]
  %s1341 = scalar_lea.vmem %s1337, 96
  %v1342 = vld [vmem:[%s1341] ss:$2 sm:$0xff]
  %s1343 = scalar_lea.vmem %s1337, 144
  %v1344 = vld [vmem:[%s1343] ss:$2 sm:$0xff]
  %s1345 = scalar_lea.vmem %s1337, 192
  %v1346 = vld [vmem:[%s1345] ss:$2 sm:$0xff]
  %s1347 = scalar_lea.vmem %s1337, 240
  %v1348 = vld [vmem:[%s1347] ss:$2 sm:$0xff]
  %s1349 = scalar_lea.vmem %s1337, 288
  %v1350 = vld [vmem:[%s1349] ss:$2 sm:$0xff]
  %s1351 = scalar_lea.vmem %s1337, 336
  %v1352 = vld [vmem:[%s1351] ss:$2 sm:$0xff]
  %s1353 = scalar_lea.vmem %s1337, 432
  %v1354 = vld [vmem:[%s1353] ss:$2 sm:$0xff]
  %s1355 = scalar_lea.vmem %s1337, 480
  %v1356 = vld [vmem:[%s1355] ss:$2 sm:$0xff]
  %s1357 = scalar_lea.vmem %s1337, 528
  %v1358 = vld [vmem:[%s1357] ss:$2 sm:$0xff]
  %s1359 = scalar_lea.vmem %s1337, 576
  %v1360 = vld [vmem:[%s1359] ss:$2 sm:$0xff]
  %s1361 = scalar_lea.vmem %s1337, 624
  %v1362 = vld [vmem:[%s1361] ss:$2 sm:$0xff]
  %s1363 = scalar_lea.vmem %s1337, 672
  %v1364 = vld [vmem:[%s1363] ss:$2 sm:$0xff]
  %s1365 = scalar_lea.vmem %s1337, 720
  %v1366 = vld [vmem:[%s1365] ss:$2 sm:$0xff]
  %s1367 = scalar_lea.vmem %s1337, 768
  %v1368 = vld [vmem:[%s1367] ss:$2 sm:$0xff]
  %1385 = vrot.lane.b32.xlu0 %v1338, 48
  %v1386 = vpop.permute.xlu0 %1385
  %1387 = vrot.lane.b32.xlu0 %v1340, 48
  %v1388 = vpop.permute.xlu0 %1387
  %1389 = vrot.lane.b32.xlu0 %v1342, 48
  %v1390 = vpop.permute.xlu0 %1389
  %1391 = vrot.lane.b32.xlu0 %v1344, 48
  %v1392 = vpop.permute.xlu0 %1391
  %1393 = vrot.lane.b32.xlu0 %v1346, 48
  %v1394 = vpop.permute.xlu0 %1393
  %1395 = vrot.lane.b32.xlu0 %v1348, 48
  %v1396 = vpop.permute.xlu0 %1395
  %1397 = vrot.lane.b32.xlu0 %v1350, 48
  %v1398 = vpop.permute.xlu0 %1397
  %1399 = vrot.lane.b32.xlu0 %v1352, 48
  %v1400 = vpop.permute.xlu0 %1399
  %1401 = vrot.lane.b32.xlu0 %v1354, 48
  %v1402 = vpop.permute.xlu0 %1401
  %1403 = vrot.lane.b32.xlu0 %v1356, 48
  %v1404 = vpop.permute.xlu0 %1403
  %1405 = vrot.lane.b32.xlu0 %v1358, 48
  %v1406 = vpop.permute.xlu0 %1405
  %1407 = vrot.lane.b32.xlu0 %v1360, 48
  %v1408 = vpop.permute.xlu0 %1407
  %1409 = vrot.lane.b32.xlu0 %v1362, 48
  %v1410 = vpop.permute.xlu0 %1409
  %1411 = vrot.lane.b32.xlu0 %v1364, 48
  %v1412 = vpop.permute.xlu0 %1411
  %1413 = vrot.lane.b32.xlu0 %v1366, 48
  %v1414 = vpop.permute.xlu0 %1413
  %1415 = vrot.lane.b32.xlu0 %v1368, 48
  %v1416 = vpop.permute.xlu0 %1415
  %vm1433 = vcmask 425344
  %1434 = vst.msk [vmem:[#allocation2] sm:$0xff] %vm1433, %v1386
  %1435 = vst.msk [vmem:[#allocation2 + $0x8] sm:$0xff] %vm1433, %v1388
  %1436 = vst.msk [vmem:[#allocation2 + $0x10] sm:$0xff] %vm1433, %v1390
  %1437 = vst.msk [vmem:[#allocation2 + $0x18] sm:$0xff] %vm1433, %v1392
  %1438 = vst.msk [vmem:[#allocation2 + $0x20] sm:$0xff] %vm1433, %v1394
  %1439 = vst.msk [vmem:[#allocation2 + $0x28] sm:$0xff] %vm1433, %v1396
  %1440 = vst.msk [vmem:[#allocation2 + $0x30] sm:$0xff] %vm1433, %v1398
  %1441 = vst.msk [vmem:[#allocation2 + $0x38] sm:$0xff] %vm1433, %v1400
  %1442 = vst.msk [vmem:[#allocation2 + $0x40] sm:$0xff] %vm1433, %v1402
  %1443 = vst.msk [vmem:[#allocation2 + $0x48] sm:$0xff] %vm1433, %v1404
  %1444 = vst.msk [vmem:[#allocation2 + $0x50] sm:$0xff] %vm1433, %v1406
  %1445 = vst.msk [vmem:[#allocation2 + $0x58] sm:$0xff] %vm1433, %v1408
  %1446 = vst.msk [vmem:[#allocation2 + $0x60] sm:$0xff] %vm1433, %v1410
  %1447 = vst.msk [vmem:[#allocation2 + $0x68] sm:$0xff] %vm1433, %v1412
  %1448 = vst.msk [vmem:[#allocation2 + $0x70] sm:$0xff] %vm1433, %v1414
  %1449 = vst.msk [vmem:[#allocation2 + $0x78] sm:$0xff] %vm1433, %v1416
  %s1450 = scalar_lea.vmem %s1337, 1
  %v1451 = vld [vmem:[%s1450] ss:$2 sm:$0xff]
  %s1452 = scalar_lea.vmem %s1337, 49
  %v1453 = vld [vmem:[%s1452] ss:$2 sm:$0xff]
  %s1454 = scalar_lea.vmem %s1337, 97
  %v1455 = vld [vmem:[%s1454] ss:$2 sm:$0xff]
  %s1456 = scalar_lea.vmem %s1337, 145
  %v1457 = vld [vmem:[%s1456] ss:$2 sm:$0xff]
  %s1458 = scalar_lea.vmem %s1337, 193
  %v1459 = vld [vmem:[%s1458] ss:$2 sm:$0xff]
  %s1460 = scalar_lea.vmem %s1337, 241
  %v1461 = vld [vmem:[%s1460] ss:$2 sm:$0xff]
  %s1462 = scalar_lea.vmem %s1337, 289
  %v1463 = vld [vmem:[%s1462] ss:$2 sm:$0xff]
  %s1464 = scalar_lea.vmem %s1337, 337
  %v1465 = vld [vmem:[%s1464] ss:$2 sm:$0xff]
  %s1466 = scalar_lea.vmem %s1337, 433
  %v1467 = vld [vmem:[%s1466] ss:$2 sm:$0xff]
  %s1468 = scalar_lea.vmem %s1337, 481
  %v1469 = vld [vmem:[%s1468] ss:$2 sm:$0xff]
  %s1470 = scalar_lea.vmem %s1337, 529
  %v1471 = vld [vmem:[%s1470] ss:$2 sm:$0xff]
  %s1472 = scalar_lea.vmem %s1337, 577
  %v1473 = vld [vmem:[%s1472] ss:$2 sm:$0xff]
  %s1474 = scalar_lea.vmem %s1337, 625
  %v1475 = vld [vmem:[%s1474] ss:$2 sm:$0xff]
  %s1476 = scalar_lea.vmem %s1337, 673
  %v1477 = vld [vmem:[%s1476] ss:$2 sm:$0xff]
  %s1478 = scalar_lea.vmem %s1337, 721
  %v1479 = vld [vmem:[%s1478] ss:$2 sm:$0xff]
  %s1480 = scalar_lea.vmem %s1337, 769
  %v1481 = vld [vmem:[%s1480] ss:$2 sm:$0xff]
  %1498 = vrot.lane.b32.xlu0 %v1451, 52
  %v1499 = vpop.permute.xlu0 %1498
  %1500 = vrot.lane.b32.xlu0 %v1453, 52
  %v1501 = vpop.permute.xlu0 %1500
  %1502 = vrot.lane.b32.xlu0 %v1455, 52
  %v1503 = vpop.permute.xlu0 %1502
  %1504 = vrot.lane.b32.xlu0 %v1457, 52
  %v1505 = vpop.permute.xlu0 %1504
  %1506 = vrot.lane.b32.xlu0 %v1459, 52
  %v1507 = vpop.permute.xlu0 %1506
  %1508 = vrot.lane.b32.xlu0 %v1461, 52
  %v1509 = vpop.permute.xlu0 %1508
  %1510 = vrot.lane.b32.xlu0 %v1463, 52
  %v1511 = vpop.permute.xlu0 %1510
  %1512 = vrot.lane.b32.xlu0 %v1465, 52
  %v1513 = vpop.permute.xlu0 %1512
  %1514 = vrot.lane.b32.xlu0 %v1467, 52
  %v1515 = vpop.permute.xlu0 %1514
  %1516 = vrot.lane.b32.xlu0 %v1469, 52
  %v1517 = vpop.permute.xlu0 %1516
  %1518 = vrot.lane.b32.xlu0 %v1471, 52
  %v1519 = vpop.permute.xlu0 %1518
  %1520 = vrot.lane.b32.xlu0 %v1473, 52
  %v1521 = vpop.permute.xlu0 %1520
  %1522 = vrot.lane.b32.xlu0 %v1475, 52
  %v1523 = vpop.permute.xlu0 %1522
  %1524 = vrot.lane.b32.xlu0 %v1477, 52
  %v1525 = vpop.permute.xlu0 %1524
  %1526 = vrot.lane.b32.xlu0 %v1479, 52
  %v1527 = vpop.permute.xlu0 %1526
  %1528 = vrot.lane.b32.xlu0 %v1481, 52
  %v1529 = vpop.permute.xlu0 %1528
  %vm1546 = vcmask 458144
  %1547 = vst.msk [vmem:[#allocation2] sm:$0xff] %vm1546, %v1499
  %1548 = vst.msk [vmem:[#allocation2 + $0x8] sm:$0xff] %vm1546, %v1501
  %1549 = vst.msk [vmem:[#allocation2 + $0x10] sm:$0xff] %vm1546, %v1503
  %1550 = vst.msk [vmem:[#allocation2 + $0x18] sm:$0xff] %vm1546, %v1505
  %1551 = vst.msk [vmem:[#allocation2 + $0x20] sm:$0xff] %vm1546, %v1507
  %1552 = vst.msk [vmem:[#allocation2 + $0x28] sm:$0xff] %vm1546, %v1509
  %1553 = vst.msk [vmem:[#allocation2 + $0x30] sm:$0xff] %vm1546, %v1511
  %1554 = vst.msk [vmem:[#allocation2 + $0x38] sm:$0xff] %vm1546, %v1513
  %1555 = vst.msk [vmem:[#allocation2 + $0x40] sm:$0xff] %vm1546, %v1515
  %1556 = vst.msk [vmem:[#allocation2 + $0x48] sm:$0xff] %vm1546, %v1517
  %1557 = vst.msk [vmem:[#allocation2 + $0x50] sm:$0xff] %vm1546, %v1519
  %1558 = vst.msk [vmem:[#allocation2 + $0x58] sm:$0xff] %vm1546, %v1521
  %1559 = vst.msk [vmem:[#allocation2 + $0x60] sm:$0xff] %vm1546, %v1523
  %1560 = vst.msk [vmem:[#allocation2 + $0x68] sm:$0xff] %vm1546, %v1525
  %1561 = vst.msk [vmem:[#allocation2 + $0x70] sm:$0xff] %vm1546, %v1527
  %1562 = vst.msk [vmem:[#allocation2 + $0x78] sm:$0xff] %vm1546, %v1529
  %s1563 = scalar_lea.vmem %s1337, 2
  %v1564 = vld [vmem:[%s1563] ss:$2 sm:$0xff]
  %s1565 = scalar_lea.vmem %s1337, 50
  %v1566 = vld [vmem:[%s1565] ss:$2 sm:$0xff]
  %s1567 = scalar_lea.vmem %s1337, 98
  %v1568 = vld [vmem:[%s1567] ss:$2 sm:$0xff]
  %s1569 = scalar_lea.vmem %s1337, 146
  %v1570 = vld [vmem:[%s1569] ss:$2 sm:$0xff]
  %s1571 = scalar_lea.vmem %s1337, 194
  %v1572 = vld [vmem:[%s1571] ss:$2 sm:$0xff]
  %s1573 = scalar_lea.vmem %s1337, 242
  %v1574 = vld [vmem:[%s1573] ss:$2 sm:$0xff]
  %s1575 = scalar_lea.vmem %s1337, 290
  %v1576 = vld [vmem:[%s1575] ss:$2 sm:$0xff]
  %s1577 = scalar_lea.vmem %s1337, 338
  %v1578 = vld [vmem:[%s1577] ss:$2 sm:$0xff]
  %s1579 = scalar_lea.vmem %s1337, 434
  %v1580 = vld [vmem:[%s1579] ss:$2 sm:$0xff]
  %s1581 = scalar_lea.vmem %s1337, 482
  %v1582 = vld [vmem:[%s1581] ss:$2 sm:$0xff]
  %s1583 = scalar_lea.vmem %s1337, 530
  %v1584 = vld [vmem:[%s1583] ss:$2 sm:$0xff]
  %s1585 = scalar_lea.vmem %s1337, 578
  %v1586 = vld [vmem:[%s1585] ss:$2 sm:$0xff]
  %s1587 = scalar_lea.vmem %s1337, 626
  %v1588 = vld [vmem:[%s1587] ss:$2 sm:$0xff]
  %s1589 = scalar_lea.vmem %s1337, 674
  %v1590 = vld [vmem:[%s1589] ss:$2 sm:$0xff]
  %s1591 = scalar_lea.vmem %s1337, 722
  %v1592 = vld [vmem:[%s1591] ss:$2 sm:$0xff]
  %s1593 = scalar_lea.vmem %s1337, 770
  %v1594 = vld [vmem:[%s1593] ss:$2 sm:$0xff]
  %1611 = vrot.lane.b32.xlu0 %v1564, 56
  %v1612 = vpop.permute.xlu0 %1611
  %1613 = vrot.lane.b32.xlu0 %v1566, 56
  %v1614 = vpop.permute.xlu0 %1613
  %1615 = vrot.lane.b32.xlu0 %v1568, 56
  %v1616 = vpop.permute.xlu0 %1615
  %1617 = vrot.lane.b32.xlu0 %v1570, 56
  %v1618 = vpop.permute.xlu0 %1617
  %1619 = vrot.lane.b32.xlu0 %v1572, 56
  %v1620 = vpop.permute.xlu0 %1619
  %1621 = vrot.lane.b32.xlu0 %v1574, 56
  %v1622 = vpop.permute.xlu0 %1621
  %1623 = vrot.lane.b32.xlu0 %v1576, 56
  %v1624 = vpop.permute.xlu0 %1623
  %1625 = vrot.lane.b32.xlu0 %v1578, 56
  %v1626 = vpop.permute.xlu0 %1625
  %1627 = vrot.lane.b32.xlu0 %v1580, 56
  %v1628 = vpop.permute.xlu0 %1627
  %1629 = vrot.lane.b32.xlu0 %v1582, 56
  %v1630 = vpop.permute.xlu0 %1629
  %1631 = vrot.lane.b32.xlu0 %v1584, 56
  %v1632 = vpop.permute.xlu0 %1631
  %1633 = vrot.lane.b32.xlu0 %v1586, 56
  %v1634 = vpop.permute.xlu0 %1633
  %1635 = vrot.lane.b32.xlu0 %v1588, 56
  %v1636 = vpop.permute.xlu0 %1635
  %1637 = vrot.lane.b32.xlu0 %v1590, 56
  %v1638 = vpop.permute.xlu0 %1637
  %1639 = vrot.lane.b32.xlu0 %v1592, 56
  %v1640 = vpop.permute.xlu0 %1639
  %1641 = vrot.lane.b32.xlu0 %v1594, 56
  %v1642 = vpop.permute.xlu0 %1641
  %vm1659 = vcmask 490944
  %1660 = vst.msk [vmem:[#allocation2] sm:$0xff] %vm1659, %v1612
  %1661 = vst.msk [vmem:[#allocation2 + $0x8] sm:$0xff] %vm1659, %v1614
  %1662 = vst.msk [vmem:[#allocation2 + $0x10] sm:$0xff] %vm1659, %v1616
  %1663 = vst.msk [vmem:[#allocation2 + $0x18] sm:$0xff] %vm1659, %v1618
  %1664 = vst.msk [vmem:[#allocation2 + $0x20] sm:$0xff] %vm1659, %v1620
  %1665 = vst.msk [vmem:[#allocation2 + $0x28] sm:$0xff] %vm1659, %v1622
  %1666 = vst.msk [vmem:[#allocation2 + $0x30] sm:$0xff] %vm1659, %v1624
  %1667 = vst.msk [vmem:[#allocation2 + $0x38] sm:$0xff] %vm1659, %v1626
  %1668 = vst.msk [vmem:[#allocation2 + $0x40] sm:$0xff] %vm1659, %v1628
  %1669 = vst.msk [vmem:[#allocation2 + $0x48] sm:$0xff] %vm1659, %v1630
  %1670 = vst.msk [vmem:[#allocation2 + $0x50] sm:$0xff] %vm1659, %v1632
  %1671 = vst.msk [vmem:[#allocation2 + $0x58] sm:$0xff] %vm1659, %v1634
  %1672 = vst.msk [vmem:[#allocation2 + $0x60] sm:$0xff] %vm1659, %v1636
  %1673 = vst.msk [vmem:[#allocation2 + $0x68] sm:$0xff] %vm1659, %v1638
  %1674 = vst.msk [vmem:[#allocation2 + $0x70] sm:$0xff] %vm1659, %v1640
  %1675 = vst.msk [vmem:[#allocation2 + $0x78] sm:$0xff] %vm1659, %v1642
  %s1676 = scalar_lea.vmem %s1337, 3
  %v1677 = vld [vmem:[%s1676] ss:$2 sm:$0xff]
  %s1678 = scalar_lea.vmem %s1337, 51
  %v1679 = vld [vmem:[%s1678] ss:$2 sm:$0xff]
  %s1680 = scalar_lea.vmem %s1337, 99
  %v1681 = vld [vmem:[%s1680] ss:$2 sm:$0xff]
  %s1682 = scalar_lea.vmem %s1337, 147
  %v1683 = vld [vmem:[%s1682] ss:$2 sm:$0xff]
  %s1684 = scalar_lea.vmem %s1337, 195
  %v1685 = vld [vmem:[%s1684] ss:$2 sm:$0xff]
  %s1686 = scalar_lea.vmem %s1337, 243
  %v1687 = vld [vmem:[%s1686] ss:$2 sm:$0xff]
  %s1688 = scalar_lea.vmem %s1337, 291
  %v1689 = vld [vmem:[%s1688] ss:$2 sm:$0xff]
  %s1690 = scalar_lea.vmem %s1337, 339
  %v1691 = vld [vmem:[%s1690] ss:$2 sm:$0xff]
  %s1692 = scalar_lea.vmem %s1337, 435
  %v1693 = vld [vmem:[%s1692] ss:$2 sm:$0xff]
  %s1694 = scalar_lea.vmem %s1337, 483
  %v1695 = vld [vmem:[%s1694] ss:$2 sm:$0xff]
  %s1696 = scalar_lea.vmem %s1337, 531
  %v1697 = vld [vmem:[%s1696] ss:$2 sm:$0xff]
  %s1698 = scalar_lea.vmem %s1337, 579
  %v1699 = vld [vmem:[%s1698] ss:$2 sm:$0xff]
  %s1700 = scalar_lea.vmem %s1337, 627
  %v1701 = vld [vmem:[%s1700] ss:$2 sm:$0xff]
  %s1702 = scalar_lea.vmem %s1337, 675
  %v1703 = vld [vmem:[%s1702] ss:$2 sm:$0xff]
  %s1704 = scalar_lea.vmem %s1337, 723
  %v1705 = vld [vmem:[%s1704] ss:$2 sm:$0xff]
  %s1706 = scalar_lea.vmem %s1337, 771
  %v1707 = vld [vmem:[%s1706] ss:$2 sm:$0xff]
  %1724 = vrot.lane.b32.xlu0 %v1677, 60
  %v1725 = vpop.permute.xlu0 %1724
  %1726 = vrot.lane.b32.xlu0 %v1679, 60
  %v1727 = vpop.permute.xlu0 %1726
  %1728 = vrot.lane.b32.xlu0 %v1681, 60
  %v1729 = vpop.permute.xlu0 %1728
  %1730 = vrot.lane.b32.xlu0 %v1683, 60
  %v1731 = vpop.permute.xlu0 %1730
  %1732 = vrot.lane.b32.xlu0 %v1685, 60
  %v1733 = vpop.permute.xlu0 %1732
  %1734 = vrot.lane.b32.xlu0 %v1687, 60
  %v1735 = vpop.permute.xlu0 %1734
  %1736 = vrot.lane.b32.xlu0 %v1689, 60
  %v1737 = vpop.permute.xlu0 %1736
  %1738 = vrot.lane.b32.xlu0 %v1691, 60
  %v1739 = vpop.permute.xlu0 %1738
  %1740 = vrot.lane.b32.xlu0 %v1693, 60
  %v1741 = vpop.permute.xlu0 %1740
  %1742 = vrot.lane.b32.xlu0 %v1695, 60
  %v1743 = vpop.permute.xlu0 %1742
  %1744 = vrot.lane.b32.xlu0 %v1697, 60
  %v1745 = vpop.permute.xlu0 %1744
  %1746 = vrot.lane.b32.xlu0 %v1699, 60
  %v1747 = vpop.permute.xlu0 %1746
  %1748 = vrot.lane.b32.xlu0 %v1701, 60
  %v1749 = vpop.permute.xlu0 %1748
  %1750 = vrot.lane.b32.xlu0 %v1703, 60
  %v1751 = vpop.permute.xlu0 %1750
  %1752 = vrot.lane.b32.xlu0 %v1705, 60
  %v1753 = vpop.permute.xlu0 %1752
  %1754 = vrot.lane.b32.xlu0 %v1707, 60
  %v1755 = vpop.permute.xlu0 %1754
  %vm1772 = vcmask 523744
  %1773 = vst.msk [vmem:[#allocation2] sm:$0xff] %vm1772, %v1725
  %1774 = vst.msk [vmem:[#allocation2 + $0x8] sm:$0xff] %vm1772, %v1727
  %1775 = vst.msk [vmem:[#allocation2 + $0x10] sm:$0xff] %vm1772, %v1729
  %1776 = vst.msk [vmem:[#allocation2 + $0x18] sm:$0xff] %vm1772, %v1731
  %1777 = vst.msk [vmem:[#allocation2 + $0x20] sm:$0xff] %vm1772, %v1733
  %1778 = vst.msk [vmem:[#allocation2 + $0x28] sm:$0xff] %vm1772, %v1735
  %1779 = vst.msk [vmem:[#allocation2 + $0x30] sm:$0xff] %vm1772, %v1737
  %1780 = vst.msk [vmem:[#allocation2 + $0x38] sm:$0xff] %vm1772, %v1739
  %1781 = vst.msk [vmem:[#allocation2 + $0x40] sm:$0xff] %vm1772, %v1741
  %1782 = vst.msk [vmem:[#allocation2 + $0x48] sm:$0xff] %vm1772, %v1743
  %1783 = vst.msk [vmem:[#allocation2 + $0x50] sm:$0xff] %vm1772, %v1745
  %1784 = vst.msk [vmem:[#allocation2 + $0x58] sm:$0xff] %vm1772, %v1747
  %1785 = vst.msk [vmem:[#allocation2 + $0x60] sm:$0xff] %vm1772, %v1749
  %1786 = vst.msk [vmem:[#allocation2 + $0x68] sm:$0xff] %vm1772, %v1751
  %1787 = vst.msk [vmem:[#allocation2 + $0x70] sm:$0xff] %vm1772, %v1753
  %1788 = vst.msk [vmem:[#allocation2 + $0x78] sm:$0xff] %vm1772, %v1755
  %v1789 = vld [vmem:[#allocation2] sm:$0xff]
  %v1790 = vld [vmem:[#allocation2 + $0x8] sm:$0xff]
  %v1791 = vld [vmem:[#allocation2 + $0x10] sm:$0xff]
  %v1792 = vld [vmem:[#allocation2 + $0x18] sm:$0xff]
  %v1793 = vld [vmem:[#allocation2 + $0x20] sm:$0xff]
  %v1794 = vld [vmem:[#allocation2 + $0x28] sm:$0xff]
  %v1795 = vld [vmem:[#allocation2 + $0x30] sm:$0xff]
  %v1796 = vld [vmem:[#allocation2 + $0x38] sm:$0xff]
  %v1797 = vld [vmem:[#allocation2 + $0x40] sm:$0xff]
  %v1798 = vld [vmem:[#allocation2 + $0x48] sm:$0xff]
  %v1799 = vld [vmem:[#allocation2 + $0x50] sm:$0xff]
  %v1800 = vld [vmem:[#allocation2 + $0x58] sm:$0xff]
  %v1801 = vld [vmem:[#allocation2 + $0x60] sm:$0xff]
  %v1802 = vld [vmem:[#allocation2 + $0x68] sm:$0xff]
  %v1803 = vld [vmem:[#allocation2 + $0x70] sm:$0xff]
  %v1804 = vld [vmem:[#allocation2 + $0x78] sm:$0xff]
  %v1805 = vld [vmem:[%s1] sm:$0xff]
  %v1806 = vld [vmem:[%s1 + $0x8] sm:$0xff]
  %v1807 = vld [vmem:[%s1 + $0x10] sm:$0xff]
  %v1808 = vld [vmem:[%s1 + $0x18] sm:$0xff]
  %v1809 = vld [vmem:[%s1 + $0x20] sm:$0xff]
  %v1810 = vld [vmem:[%s1 + $0x28] sm:$0xff]
  %v1811 = vld [vmem:[%s1 + $0x30] sm:$0xff]
  %v1812 = vld [vmem:[%s1 + $0x38] sm:$0xff]
  %v1813 = vld [vmem:[%s1 + $0x40] sm:$0xff]
  %v1814 = vld [vmem:[%s1 + $0x48] sm:$0xff]
  %v1815 = vld [vmem:[%s1 + $0x50] sm:$0xff]
  %v1816 = vld [vmem:[%s1 + $0x58] sm:$0xff]
  %v1817 = vld [vmem:[%s1 + $0x60] sm:$0xff]
  %v1818 = vld [vmem:[%s1 + $0x68] sm:$0xff]
  %v1819 = vld [vmem:[%s1 + $0x70] sm:$0xff]
  %v1820 = vld [vmem:[%s1 + $0x78] sm:$0xff]
  %1821 = vmatprep.subr.mxu0 0.0
  %1822 = vmatpush1.msra.mxu0 %v1820
  %1823 = vmatprep.subr.mxu0 0.0
  %1824 = vmatpush1.msra.mxu0 %v1819
  %1825 = vmatprep.subr.mxu0 0.0
  %1826 = vmatpush1.msra.mxu0 %v1818
  %1827 = vmatprep.subr.mxu0 0.0
  %1828 = vmatpush1.msra.mxu0 %v1817
  %1829 = vmatprep.subr.mxu0 0.0
  %1830 = vmatpush1.msra.mxu0 %v1816
  %1831 = vmatprep.subr.mxu0 0.0
  %1832 = vmatpush1.msra.mxu0 %v1815
  %1833 = vmatprep.subr.mxu0 0.0
  %1834 = vmatpush1.msra.mxu0 %v1814
  %1835 = vmatprep.subr.mxu0 0.0
  %1836 = vmatpush1.msra.mxu0 %v1813
  %1837 = vmatprep.subr.mxu0 0.0
  %1838 = vmatpush1.msra.mxu0 %v1812
  %1839 = vmatprep.subr.mxu0 0.0
  %1840 = vmatpush1.msra.mxu0 %v1811
  %1841 = vmatprep.subr.mxu0 0.0
  %1842 = vmatpush1.msra.mxu0 %v1810
  %1843 = vmatprep.subr.mxu0 0.0
  %1844 = vmatpush1.msra.mxu0 %v1809
  %1845 = vmatprep.subr.mxu0 0.0
  %1846 = vmatpush1.msra.mxu0 %v1808
  %1847 = vmatprep.subr.mxu0 0.0
  %1848 = vmatpush1.msra.mxu0 %v1807
  %1849 = vmatprep.subr.mxu0 0.0
  %1850 = vmatpush1.msra.mxu0 %v1806
  %1851 = vmatprep.subr.mxu0 0.0
  %1852 = vmatpush1.msra.mxu0 %v1805
  %1853 = vmatprep.subr.mxu0 0.0
  %1854 = vmatpush2.msra.mxu0 0.0
  %1855 = vmatprep.subr.mxu0 0.0
  %1856 = vmatpush2.msra.mxu0 0.0
  %1857 = vmatprep.subr.mxu0 0.0
  %1858 = vmatpush2.msra.mxu0 0.0
  %1859 = vmatprep.subr.mxu0 0.0
  %1860 = vmatpush2.msra.mxu0 0.0
  %1861 = vmatprep.subr.mxu0 0.0
  %1862 = vmatpush2.msra.mxu0 0.0
  %1863 = vmatprep.subr.mxu0 0.0
  %1864 = vmatpush2.msra.mxu0 0.0
  %1865 = vmatprep.subr.mxu0 0.0
  %1866 = vmatpush2.msra.mxu0 0.0
  %1867 = vmatprep.subr.mxu0 0.0
  %1868 = vmatpush2.msra.mxu0 0.0
  %1869 = vmatprep.subr.mxu0 0.0
  %1870 = vmatpush2.msra.mxu0 0.0
  %1871 = vmatprep.subr.mxu0 0.0
  %1872 = vmatpush2.msra.mxu0 0.0
  %1873 = vmatprep.subr.mxu0 0.0
  %1874 = vmatpush2.msra.mxu0 0.0
  %1875 = vmatprep.subr.mxu0 0.0
  %1876 = vmatpush2.msra.mxu0 0.0
  %1877 = vmatprep.subr.mxu0 0.0
  %1878 = vmatpush2.msra.mxu0 0.0
  %1879 = vmatprep.subr.mxu0 0.0
  %1880 = vmatpush2.msra.mxu0 0.0
  %1881 = vmatprep.subr.mxu0 0.0
  %1882 = vmatpush2.msra.mxu0 0.0
  %1883 = vmatprep.subr.mxu0 0.0
  %1884 = vmatpush2.msra.mxu0 0.0
  %1885 = vmatprep.mubr.f32.mxu0 0.0
  %1886 = vmatmul.mubr.f32.gmra.mxu0 %v1789
  %v1887 = vpop.f32.mrf.mxu0
  %v1888 = vadd.f32 0.0, %v1887
  %v1889 = vpop.f32.mrf.mxu0
  %1890 = vmatprep.mubr.f32.mxu0 0.0
  %1891 = vmatmul.mubr.f32.gmra.mxu0 %v1790
  %v1892 = vpop.f32.mrf.mxu0
  %v1893 = vadd.f32 0.0, %v1892
  %v1894 = vpop.f32.mrf.mxu0
  %1895 = vmatprep.mubr.f32.mxu0 0.0
  %1896 = vmatmul.mubr.f32.gmra.mxu0 %v1791
  %v1897 = vpop.f32.mrf.mxu0
  %v1898 = vadd.f32 0.0, %v1897
  %v1899 = vpop.f32.mrf.mxu0
  %1900 = vmatprep.mubr.f32.mxu0 0.0
  %1901 = vmatmul.mubr.f32.gmra.mxu0 %v1792
  %v1902 = vpop.f32.mrf.mxu0
  %v1903 = vadd.f32 0.0, %v1902
  %v1904 = vpop.f32.mrf.mxu0
  %1905 = vmatprep.mubr.f32.mxu0 0.0
  %1906 = vmatmul.mubr.f32.gmra.mxu0 %v1793
  %v1907 = vpop.f32.mrf.mxu0
  %v1908 = vadd.f32 0.0, %v1907
  %v1909 = vpop.f32.mrf.mxu0
  %1910 = vmatprep.mubr.f32.mxu0 0.0
  %1911 = vmatmul.mubr.f32.gmra.mxu0 %v1794
  %v1912 = vpop.f32.mrf.mxu0
  %v1913 = vadd.f32 0.0, %v1912
  %v1914 = vpop.f32.mrf.mxu0
  %1915 = vmatprep.mubr.f32.mxu0 0.0
  %1916 = vmatmul.mubr.f32.gmra.mxu0 %v1795
  %v1917 = vpop.f32.mrf.mxu0
  %v1918 = vadd.f32 0.0, %v1917
  %v1919 = vpop.f32.mrf.mxu0
  %1920 = vmatprep.mubr.f32.mxu0 0.0
  %1921 = vmatmul.mubr.f32.gmra.mxu0 %v1796
  %v1922 = vpop.f32.mrf.mxu0
  %v1923 = vadd.f32 0.0, %v1922
  %v1924 = vpop.f32.mrf.mxu0
  %1925 = vmatprep.mubr.f32.mxu0 0.0
  %1926 = vmatmul.mubr.f32.gmra.mxu0 %v1797
  %v1927 = vpop.f32.mrf.mxu0
  %v1928 = vadd.f32 0.0, %v1927
  %v1929 = vpop.f32.mrf.mxu0
  %1930 = vmatprep.mubr.f32.mxu0 0.0
  %1931 = vmatmul.mubr.f32.gmra.mxu0 %v1798
  %v1932 = vpop.f32.mrf.mxu0
  %v1933 = vadd.f32 0.0, %v1932
  %v1934 = vpop.f32.mrf.mxu0
  %1935 = vmatprep.mubr.f32.mxu0 0.0
  %1936 = vmatmul.mubr.f32.gmra.mxu0 %v1799
  %v1937 = vpop.f32.mrf.mxu0
  %v1938 = vadd.f32 0.0, %v1937
  %v1939 = vpop.f32.mrf.mxu0
  %1940 = vmatprep.mubr.f32.mxu0 0.0
  %1941 = vmatmul.mubr.f32.gmra.mxu0 %v1800
  %v1942 = vpop.f32.mrf.mxu0
  %v1943 = vadd.f32 0.0, %v1942
  %v1944 = vpop.f32.mrf.mxu0
  %1945 = vmatprep.mubr.f32.mxu0 0.0
  %1946 = vmatmul.mubr.f32.gmra.mxu0 %v1801
  %v1947 = vpop.f32.mrf.mxu0
  %v1948 = vadd.f32 0.0, %v1947
  %v1949 = vpop.f32.mrf.mxu0
  %1950 = vmatprep.mubr.f32.mxu0 0.0
  %1951 = vmatmul.mubr.f32.gmra.mxu0 %v1802
  %v1952 = vpop.f32.mrf.mxu0
  %v1953 = vadd.f32 0.0, %v1952
  %v1954 = vpop.f32.mrf.mxu0
  %1955 = vmatprep.mubr.f32.mxu0 0.0
  %1956 = vmatmul.mubr.f32.gmra.mxu0 %v1803
  %v1957 = vpop.f32.mrf.mxu0
  %v1958 = vadd.f32 0.0, %v1957
  %v1959 = vpop.f32.mrf.mxu0
  %1960 = vmatprep.mubr.f32.mxu0 0.0
  %1961 = vmatmul.mubr.f32.gmra.mxu0 %v1804
  %v1962 = vpop.f32.mrf.mxu0
  %v1963 = vadd.f32 0.0, %v1962
  %v1964 = vpop.f32.mrf.mxu0
  %1965 = vdwg.mxu0
  %v1966 = vld [vmem:[%s4] sm:$0x1]
  %v1967 = vlaneseq
  %v1968 = vshrl.u32 %v1967, 7
  %v1969 = vsub.s32 0, %v1968
  %v1970 = vrot.slane %v1966, %v1969
  %v1971 = vmul.f32 %v1888, %v1970
  %v1972 = vmul.f32 %v1893, %v1970
  %v1973 = vmul.f32 %v1898, %v1970
  %v1974 = vmul.f32 %v1903, %v1970
  %v1975 = vmul.f32 %v1908, %v1970
  %v1976 = vmul.f32 %v1913, %v1970
  %v1977 = vmul.f32 %v1918, %v1970
  %v1978 = vmul.f32 %v1923, %v1970
  %v1979 = vmul.f32 %v1928, %v1970
  %v1980 = vmul.f32 %v1933, %v1970
  %v1981 = vmul.f32 %v1938, %v1970
  %v1982 = vmul.f32 %v1943, %v1970
  %v1983 = vmul.f32 %v1948, %v1970
  %v1984 = vmul.f32 %v1953, %v1970
  %v1985 = vmul.f32 %v1958, %v1970
  %v1986 = vmul.f32 %v1963, %v1970
  %v1987 = vld [vmem:[%s4 + $0x1] sm:$0x1]
  %v1988 = vlaneseq
  %v1989 = vshrl.u32 %v1988, 7
  %v1990 = vsub.s32 0, %v1989
  %v1991 = vrot.slane %v1987, %v1990
  %v1992 = vadd.f32 %v1971, %v1991
  %v1993 = vadd.f32 %v1972, %v1991
  %v1994 = vadd.f32 %v1973, %v1991
  %v1995 = vadd.f32 %v1974, %v1991
  %v1996 = vadd.f32 %v1975, %v1991
  %v1997 = vadd.f32 %v1976, %v1991
  %v1998 = vadd.f32 %v1977, %v1991
  %v1999 = vadd.f32 %v1978, %v1991
  %v2000 = vadd.f32 %v1979, %v1991
  %v2001 = vadd.f32 %v1980, %v1991
  %v2002 = vadd.f32 %v1981, %v1991
  %v2003 = vadd.f32 %v1982, %v1991
  %v2004 = vadd.f32 %v1983, %v1991
  %v2005 = vadd.f32 %v1984, %v1991
  %v2006 = vadd.f32 %v1985, %v1991
  %v2007 = vadd.f32 %v1986, %v1991
  %v2008 = vmax.f32 %v1992, 0.0
  %v2009 = vmax.f32 %v1993, 0.0
  %v2010 = vmax.f32 %v1994, 0.0
  %v2011 = vmax.f32 %v1995, 0.0
  %v2012 = vmax.f32 %v1996, 0.0
  %v2013 = vmax.f32 %v1997, 0.0
  %v2014 = vmax.f32 %v1998, 0.0
  %v2015 = vmax.f32 %v1999, 0.0
  %v2016 = vmax.f32 %v2000, 0.0
  %v2017 = vmax.f32 %v2001, 0.0
  %v2018 = vmax.f32 %v2002, 0.0
  %v2019 = vmax.f32 %v2003, 0.0
  %v2020 = vmax.f32 %v2004, 0.0
  %v2021 = vmax.f32 %v2005, 0.0
  %v2022 = vmax.f32 %v2006, 0.0
  %v2023 = vmax.f32 %v2007, 0.0
  %s2024 = scalar_lea.vmem [#allocation3], 16
  %2025 = vst.msk [vmem:[%s2024 + $0x1] sm:$0xff] %vm77, %v2008
  %2026 = vst.msk [vmem:[%s2024 + $0x11] sm:$0xff] %vm77, %v2009
  %2027 = vst.msk [vmem:[%s2024 + $0x21] sm:$0xff] %vm77, %v2010
  %2028 = vst.msk [vmem:[%s2024 + $0x31] sm:$0xff] %vm77, %v2011
  %2029 = vst.msk [vmem:[%s2024 + $0x41] sm:$0xff] %vm77, %v2012
  %2030 = vst.msk [vmem:[%s2024 + $0x51] sm:$0xff] %vm77, %v2013
  %2031 = vst.msk [vmem:[%s2024 + $0x61] sm:$0xff] %vm77, %v2014
  %2032 = vst.msk [vmem:[%s2024 + $0x71] sm:$0xff] %vm77, %v2015
  %2033 = vst.msk [vmem:[%s2024 + $0xa1] sm:$0xff] %vm77, %v2016
  %2034 = vst.msk [vmem:[%s2024 + $0xb1] sm:$0xff] %vm77, %v2017
  %2035 = vst.msk [vmem:[%s2024 + $0xc1] sm:$0xff] %vm77, %v2018
  %2036 = vst.msk [vmem:[%s2024 + $0xd1] sm:$0xff] %vm77, %v2019
  %2037 = vst.msk [vmem:[%s2024 + $0xe1] sm:$0xff] %vm77, %v2020
  %2038 = vst.msk [vmem:[%s2024 + $0xf1] sm:$0xff] %vm77, %v2021
  %2039 = vst.msk [vmem:[%s2024 + $0x101] sm:$0xff] %vm77, %v2022
  %2040 = vst.msk [vmem:[%s2024 + $0x111] sm:$0xff] %vm77, %v2023
  %2041 = vst.msk [vmem:[#allocation3 + $0x1] sm:$0xff] %vm77, %v2009
  %2042 = vst.msk [vmem:[#allocation3 + $0xa1] sm:$0xff] %vm77, %v2017
  %s2043 = scalar_lea.vmem [#allocation3], 144
  %2044 = vst.msk [vmem:[%s2043 + $0x1] sm:$0xff] %vm77, %v2014
  %2045 = vst.msk [vmem:[%s2043 + $0xa1] sm:$0xff] %vm77, %v2022
  %vm2046 = vcmask 25601
  %2047 = vst.msk [vmem:[%s2024 - $0x1] sm:$0x2] %vm2046, %v2008
  %2048 = vst.msk [vmem:[%s2024 + $0xf] sm:$0x2] %vm2046, %v2009
  %2049 = vst.msk [vmem:[%s2024 + $0x1f] sm:$0x2] %vm2046, %v2010
  %2050 = vst.msk [vmem:[%s2024 + $0x2f] sm:$0x2] %vm2046, %v2011
  %2051 = vst.msk [vmem:[%s2024 + $0x3f] sm:$0x2] %vm2046, %v2012
  %2052 = vst.msk [vmem:[%s2024 + $0x4f] sm:$0x2] %vm2046, %v2013
  %2053 = vst.msk [vmem:[%s2024 + $0x5f] sm:$0x2] %vm2046, %v2014
  %2054 = vst.msk [vmem:[%s2024 + $0x6f] sm:$0x2] %vm2046, %v2015
  %2055 = vst.msk [vmem:[%s2024 + $0x9f] sm:$0x2] %vm2046, %v2016
  %2056 = vst.msk [vmem:[%s2024 + $0xaf] sm:$0x2] %vm2046, %v2017
  %2057 = vst.msk [vmem:[%s2024 + $0xbf] sm:$0x2] %vm2046, %v2018
  %2058 = vst.msk [vmem:[%s2024 + $0xcf] sm:$0x2] %vm2046, %v2019
  %2059 = vst.msk [vmem:[%s2024 + $0xdf] sm:$0x2] %vm2046, %v2020
  %2060 = vst.msk [vmem:[%s2024 + $0xef] sm:$0x2] %vm2046, %v2021
  %2061 = vst.msk [vmem:[%s2024 + $0xff] sm:$0x2] %vm2046, %v2022
  %2062 = vst.msk [vmem:[%s2024 + $0x10f] sm:$0x2] %vm2046, %v2023
  %vm2063 = vcmask 30726
  %2064 = vst.msk [vmem:[%s2024 + $0x3] sm:$0x40] %vm2063, %v2008
  %2065 = vst.msk [vmem:[%s2024 + $0x13] sm:$0x40] %vm2063, %v2009
  %2066 = vst.msk [vmem:[%s2024 + $0x23] sm:$0x40] %vm2063, %v2010
  %2067 = vst.msk [vmem:[%s2024 + $0x33] sm:$0x40] %vm2063, %v2011
  %2068 = vst.msk [vmem:[%s2024 + $0x43] sm:$0x40] %vm2063, %v2012
  %2069 = vst.msk [vmem:[%s2024 + $0x53] sm:$0x40] %vm2063, %v2013
  %2070 = vst.msk [vmem:[%s2024 + $0x63] sm:$0x40] %vm2063, %v2014
  %2071 = vst.msk [vmem:[%s2024 + $0x73] sm:$0x40] %vm2063, %v2015
  %2072 = vst.msk [vmem:[%s2024 + $0xa3] sm:$0x40] %vm2063, %v2016
  %2073 = vst.msk [vmem:[%s2024 + $0xb3] sm:$0x40] %vm2063, %v2017
  %2074 = vst.msk [vmem:[%s2024 + $0xc3] sm:$0x40] %vm2063, %v2018
  %2075 = vst.msk [vmem:[%s2024 + $0xd3] sm:$0x40] %vm2063, %v2019
  %2076 = vst.msk [vmem:[%s2024 + $0xe3] sm:$0x40] %vm2063, %v2020
  %2077 = vst.msk [vmem:[%s2024 + $0xf3] sm:$0x40] %vm2063, %v2021
  %2078 = vst.msk [vmem:[%s2024 + $0x103] sm:$0x40] %vm2063, %v2022
  %2079 = vst.msk [vmem:[%s2024 + $0x113] sm:$0x40] %vm2063, %v2023
  %2080 = vst.msk [vmem:[#allocation3 - $0x1] sm:$0x2] %vm2046, %v2009
  %2081 = vst.msk [vmem:[#allocation3 + $0x9f] sm:$0x2] %vm2046, %v2017
  %2082 = vst.msk [vmem:[#allocation3 + $0x3] sm:$0x40] %vm2063, %v2009
  %2083 = vst.msk [vmem:[#allocation3 + $0xa3] sm:$0x40] %vm2063, %v2017
  %2084 = vst.msk [vmem:[%s2043 - $0x1] sm:$0x2] %vm2046, %v2014
  %2085 = vst.msk [vmem:[%s2043 + $0x9f] sm:$0x2] %vm2046, %v2022
  %2086 = vst.msk [vmem:[%s2043 + $0x3] sm:$0x40] %vm2063, %v2014
  %2087 = vst.msk [vmem:[%s2043 + $0xa3] sm:$0x40] %vm2063, %v2022
  %v2088 = vld [vmem:[#allocation3] sm:$0xff]
  %v2089 = vld [vmem:[#allocation3 + $0x10] sm:$0xff]
  %v2090 = vld [vmem:[#allocation3 + $0x20] sm:$0xff]
  %v2091 = vld [vmem:[#allocation3 + $0x30] sm:$0xff]
  %v2092 = vld [vmem:[#allocation3 + $0x40] sm:$0xff]
  %v2093 = vld [vmem:[#allocation3 + $0x50] sm:$0xff]
  %v2094 = vld [vmem:[#allocation3 + $0x60] sm:$0xff]
  %v2095 = vld [vmem:[#allocation3 + $0x70] sm:$0xff]
  %v2096 = vld [vmem:[#allocation3 + $0xa0] sm:$0xff]
  %v2097 = vld [vmem:[#allocation3 + $0xb0] sm:$0xff]
  %v2098 = vld [vmem:[#allocation3 + $0xc0] sm:$0xff]
  %v2099 = vld [vmem:[#allocation3 + $0xd0] sm:$0xff]
  %v2100 = vld [vmem:[#allocation3 + $0xe0] sm:$0xff]
  %v2101 = vld [vmem:[#allocation3 + $0xf0] sm:$0xff]
  %v2102 = vld [vmem:[#allocation3 + $0x100] sm:$0xff]
  %v2103 = vld [vmem:[#allocation3 + $0x110] sm:$0xff]
  %2104 = vst.msk [vmem:[#allocation2] sm:$0xff] %vm77, %v2088
  %2105 = vst.msk [vmem:[#allocation2 + $0x8] sm:$0xff] %vm77, %v2089
  %2106 = vst.msk [vmem:[#allocation2 + $0x10] sm:$0xff] %vm77, %v2090
  %2107 = vst.msk [vmem:[#allocation2 + $0x18] sm:$0xff] %vm77, %v2091
  %2108 = vst.msk [vmem:[#allocation2 + $0x20] sm:$0xff] %vm77, %v2092
  %2109 = vst.msk [vmem:[#allocation2 + $0x28] sm:$0xff] %vm77, %v2093
  %2110 = vst.msk [vmem:[#allocation2 + $0x30] sm:$0xff] %vm77, %v2094
  %2111 = vst.msk [vmem:[#allocation2 + $0x38] sm:$0xff] %vm77, %v2095
  %2112 = vst.msk [vmem:[#allocation2 + $0x40] sm:$0xff] %vm77, %v2096
  %2113 = vst.msk [vmem:[#allocation2 + $0x48] sm:$0xff] %vm77, %v2097
  %2114 = vst.msk [vmem:[#allocation2 + $0x50] sm:$0xff] %vm77, %v2098
  %2115 = vst.msk [vmem:[#allocation2 + $0x58] sm:$0xff] %vm77, %v2099
  %2116 = vst.msk [vmem:[#allocation2 + $0x60] sm:$0xff] %vm77, %v2100
  %2117 = vst.msk [vmem:[#allocation2 + $0x68] sm:$0xff] %vm77, %v2101
  %2118 = vst.msk [vmem:[#allocation2 + $0x70] sm:$0xff] %vm77, %v2102
  %2119 = vst.msk [vmem:[#allocation2 + $0x78] sm:$0xff] %vm77, %v2103
  %v2120 = vld [vmem:[#allocation3 + $0x1] sm:$0xff]
  %v2121 = vld [vmem:[#allocation3 + $0x11] sm:$0xff]
  %v2122 = vld [vmem:[#allocation3 + $0x21] sm:$0xff]
  %v2123 = vld [vmem:[#allocation3 + $0x31] sm:$0xff]
  %v2124 = vld [vmem:[#allocation3 + $0x41] sm:$0xff]
  %v2125 = vld [vmem:[#allocation3 + $0x51] sm:$0xff]
  %v2126 = vld [vmem:[#allocation3 + $0x61] sm:$0xff]
  %v2127 = vld [vmem:[#allocation3 + $0x71] sm:$0xff]
  %v2128 = vld [vmem:[#allocation3 + $0xa1] sm:$0xff]
  %v2129 = vld [vmem:[#allocation3 + $0xb1] sm:$0xff]
  %v2130 = vld [vmem:[#allocation3 + $0xc1] sm:$0xff]
  %v2131 = vld [vmem:[#allocation3 + $0xd1] sm:$0xff]
  %v2132 = vld [vmem:[#allocation3 + $0xe1] sm:$0xff]
  %v2133 = vld [vmem:[#allocation3 + $0xf1] sm:$0xff]
  %v2134 = vld [vmem:[#allocation3 + $0x101] sm:$0xff]
  %v2135 = vld [vmem:[#allocation3 + $0x111] sm:$0xff]
  %2152 = vrot.lane.b32.xlu0 %v2120, 4
  %v2153 = vpop.permute.xlu0 %2152
  %2154 = vrot.lane.b32.xlu0 %v2121, 4
  %v2155 = vpop.permute.xlu0 %2154
  %2156 = vrot.lane.b32.xlu0 %v2122, 4
  %v2157 = vpop.permute.xlu0 %2156
  %2158 = vrot.lane.b32.xlu0 %v2123, 4
  %v2159 = vpop.permute.xlu0 %2158
  %2160 = vrot.lane.b32.xlu0 %v2124, 4
  %v2161 = vpop.permute.xlu0 %2160
  %2162 = vrot.lane.b32.xlu0 %v2125, 4
  %v2163 = vpop.permute.xlu0 %2162
  %2164 = vrot.lane.b32.xlu0 %v2126, 4
  %v2165 = vpop.permute.xlu0 %2164
  %2166 = vrot.lane.b32.xlu0 %v2127, 4
  %v2167 = vpop.permute.xlu0 %2166
  %2168 = vrot.lane.b32.xlu0 %v2128, 4
  %v2169 = vpop.permute.xlu0 %2168
  %2170 = vrot.lane.b32.xlu0 %v2129, 4
  %v2171 = vpop.permute.xlu0 %2170
  %2172 = vrot.lane.b32.xlu0 %v2130, 4
  %v2173 = vpop.permute.xlu0 %2172
  %2174 = vrot.lane.b32.xlu0 %v2131, 4
  %v2175 = vpop.permute.xlu0 %2174
  %2176 = vrot.lane.b32.xlu0 %v2132, 4
  %v2177 = vpop.permute.xlu0 %2176
  %2178 = vrot.lane.b32.xlu0 %v2133, 4
  %v2179 = vpop.permute.xlu0 %2178
  %2180 = vrot.lane.b32.xlu0 %v2134, 4
  %v2181 = vpop.permute.xlu0 %2180
  %2182 = vrot.lane.b32.xlu0 %v2135, 4
  %v2183 = vpop.permute.xlu0 %2182
  %2200 = vst.msk [vmem:[#allocation2] sm:$0xff] %vm190, %v2153
  %2201 = vst.msk [vmem:[#allocation2 + $0x8] sm:$0xff] %vm190, %v2155
  %2202 = vst.msk [vmem:[#allocation2 + $0x10] sm:$0xff] %vm190, %v2157
  %2203 = vst.msk [vmem:[#allocation2 + $0x18] sm:$0xff] %vm190, %v2159
  %2204 = vst.msk [vmem:[#allocation2 + $0x20] sm:$0xff] %vm190, %v2161
  %2205 = vst.msk [vmem:[#allocation2 + $0x28] sm:$0xff] %vm190, %v2163
  %2206 = vst.msk [vmem:[#allocation2 + $0x30] sm:$0xff] %vm190, %v2165
  %2207 = vst.msk [vmem:[#allocation2 + $0x38] sm:$0xff] %vm190, %v2167
  %2208 = vst.msk [vmem:[#allocation2 + $0x40] sm:$0xff] %vm190, %v2169
  %2209 = vst.msk [vmem:[#allocation2 + $0x48] sm:$0xff] %vm190, %v2171
  %2210 = vst.msk [vmem:[#allocation2 + $0x50] sm:$0xff] %vm190, %v2173
  %2211 = vst.msk [vmem:[#allocation2 + $0x58] sm:$0xff] %vm190, %v2175
  %2212 = vst.msk [vmem:[#allocation2 + $0x60] sm:$0xff] %vm190, %v2177
  %2213 = vst.msk [vmem:[#allocation2 + $0x68] sm:$0xff] %vm190, %v2179
  %2214 = vst.msk [vmem:[#allocation2 + $0x70] sm:$0xff] %vm190, %v2181
  %2215 = vst.msk [vmem:[#allocation2 + $0x78] sm:$0xff] %vm190, %v2183
  %v2216 = vld [vmem:[#allocation3 + $0x2] sm:$0xff]
  %v2217 = vld [vmem:[#allocation3 + $0x12] sm:$0xff]
  %v2218 = vld [vmem:[#allocation3 + $0x22] sm:$0xff]
  %v2219 = vld [vmem:[#allocation3 + $0x32] sm:$0xff]
  %v2220 = vld [vmem:[#allocation3 + $0x42] sm:$0xff]
  %v2221 = vld [vmem:[#allocation3 + $0x52] sm:$0xff]
  %v2222 = vld [vmem:[#allocation3 + $0x62] sm:$0xff]
  %v2223 = vld [vmem:[#allocation3 + $0x72] sm:$0xff]
  %v2224 = vld [vmem:[#allocation3 + $0xa2] sm:$0xff]
  %v2225 = vld [vmem:[#allocation3 + $0xb2] sm:$0xff]
  %v2226 = vld [vmem:[#allocation3 + $0xc2] sm:$0xff]
  %v2227 = vld [vmem:[#allocation3 + $0xd2] sm:$0xff]
  %v2228 = vld [vmem:[#allocation3 + $0xe2] sm:$0xff]
  %v2229 = vld [vmem:[#allocation3 + $0xf2] sm:$0xff]
  %v2230 = vld [vmem:[#allocation3 + $0x102] sm:$0xff]
  %v2231 = vld [vmem:[#allocation3 + $0x112] sm:$0xff]
  %2248 = vrot.lane.b32.xlu0 %v2216, 8
  %v2249 = vpop.permute.xlu0 %2248
  %2250 = vrot.lane.b32.xlu0 %v2217, 8
  %v2251 = vpop.permute.xlu0 %2250
  %2252 = vrot.lane.b32.xlu0 %v2218, 8
  %v2253 = vpop.permute.xlu0 %2252
  %2254 = vrot.lane.b32.xlu0 %v2219, 8
  %v2255 = vpop.permute.xlu0 %2254
  %2256 = vrot.lane.b32.xlu0 %v2220, 8
  %v2257 = vpop.permute.xlu0 %2256
  %2258 = vrot.lane.b32.xlu0 %v2221, 8
  %v2259 = vpop.permute.xlu0 %2258
  %2260 = vrot.lane.b32.xlu0 %v2222, 8
  %v2261 = vpop.permute.xlu0 %2260
  %2262 = vrot.lane.b32.xlu0 %v2223, 8
  %v2263 = vpop.permute.xlu0 %2262
  %2264 = vrot.lane.b32.xlu0 %v2224, 8
  %v2265 = vpop.permute.xlu0 %2264
  %2266 = vrot.lane.b32.xlu0 %v2225, 8
  %v2267 = vpop.permute.xlu0 %2266
  %2268 = vrot.lane.b32.xlu0 %v2226, 8
  %v2269 = vpop.permute.xlu0 %2268
  %2270 = vrot.lane.b32.xlu0 %v2227, 8
  %v2271 = vpop.permute.xlu0 %2270
  %2272 = vrot.lane.b32.xlu0 %v2228, 8
  %v2273 = vpop.permute.xlu0 %2272
  %2274 = vrot.lane.b32.xlu0 %v2229, 8
  %v2275 = vpop.permute.xlu0 %2274
  %2276 = vrot.lane.b32.xlu0 %v2230, 8
  %v2277 = vpop.permute.xlu0 %2276
  %2278 = vrot.lane.b32.xlu0 %v2231, 8
  %v2279 = vpop.permute.xlu0 %2278
  %2296 = vst.msk [vmem:[#allocation2] sm:$0xff] %vm303, %v2249
  %2297 = vst.msk [vmem:[#allocation2 + $0x8] sm:$0xff] %vm303, %v2251
  %2298 = vst.msk [vmem:[#allocation2 + $0x10] sm:$0xff] %vm303, %v2253
  %2299 = vst.msk [vmem:[#allocation2 + $0x18] sm:$0xff] %vm303, %v2255
  %2300 = vst.msk [vmem:[#allocation2 + $0x20] sm:$0xff] %vm303, %v2257
  %2301 = vst.msk [vmem:[#allocation2 + $0x28] sm:$0xff] %vm303, %v2259
  %2302 = vst.msk [vmem:[#allocation2 + $0x30] sm:$0xff] %vm303, %v2261
  %2303 = vst.msk [vmem:[#allocation2 + $0x38] sm:$0xff] %vm303, %v2263
  %2304 = vst.msk [vmem:[#allocation2 + $0x40] sm:$0xff] %vm303, %v2265
  %2305 = vst.msk [vmem:[#allocation2 + $0x48] sm:$0xff] %vm303, %v2267
  %2306 = vst.msk [vmem:[#allocation2 + $0x50] sm:$0xff] %vm303, %v2269
  %2307 = vst.msk [vmem:[#allocation2 + $0x58] sm:$0xff] %vm303, %v2271
  %2308 = vst.msk [vmem:[#allocation2 + $0x60] sm:$0xff] %vm303, %v2273
  %2309 = vst.msk [vmem:[#allocation2 + $0x68] sm:$0xff] %vm303, %v2275
  %2310 = vst.msk [vmem:[#allocation2 + $0x70] sm:$0xff] %vm303, %v2277
  %2311 = vst.msk [vmem:[#allocation2 + $0x78] sm:$0xff] %vm303, %v2279
  %v2312 = vld [vmem:[%s2024] sm:$0xff]
  %v2313 = vld [vmem:[%s2024 + $0x10] sm:$0xff]
  %v2314 = vld [vmem:[%s2024 + $0x20] sm:$0xff]
  %v2315 = vld [vmem:[%s2024 + $0x30] sm:$0xff]
  %v2316 = vld [vmem:[%s2024 + $0x40] sm:$0xff]
  %v2317 = vld [vmem:[%s2024 + $0x50] sm:$0xff]
  %v2318 = vld [vmem:[%s2024 + $0x60] sm:$0xff]
  %v2319 = vld [vmem:[%s2024 + $0x70] sm:$0xff]
  %v2320 = vld [vmem:[%s2024 + $0xa0] sm:$0xff]
  %v2321 = vld [vmem:[%s2024 + $0xb0] sm:$0xff]
  %v2322 = vld [vmem:[%s2024 + $0xc0] sm:$0xff]
  %v2323 = vld [vmem:[%s2024 + $0xd0] sm:$0xff]
  %v2324 = vld [vmem:[%s2024 + $0xe0] sm:$0xff]
  %v2325 = vld [vmem:[%s2024 + $0xf0] sm:$0xff]
  %v2326 = vld [vmem:[%s2024 + $0x100] sm:$0xff]
  %v2327 = vld [vmem:[%s2024 + $0x110] sm:$0xff]
  %2344 = vrot.lane.b32.xlu0 %v2312, 12
  %v2345 = vpop.permute.xlu0 %2344
  %2346 = vrot.lane.b32.xlu0 %v2313, 12
  %v2347 = vpop.permute.xlu0 %2346
  %2348 = vrot.lane.b32.xlu0 %v2314, 12
  %v2349 = vpop.permute.xlu0 %2348
  %2350 = vrot.lane.b32.xlu0 %v2315, 12
  %v2351 = vpop.permute.xlu0 %2350
  %2352 = vrot.lane.b32.xlu0 %v2316, 12
  %v2353 = vpop.permute.xlu0 %2352
  %2354 = vrot.lane.b32.xlu0 %v2317, 12
  %v2355 = vpop.permute.xlu0 %2354
  %2356 = vrot.lane.b32.xlu0 %v2318, 12
  %v2357 = vpop.permute.xlu0 %2356
  %2358 = vrot.lane.b32.xlu0 %v2319, 12
  %v2359 = vpop.permute.xlu0 %2358
  %2360 = vrot.lane.b32.xlu0 %v2320, 12
  %v2361 = vpop.permute.xlu0 %2360
  %2362 = vrot.lane.b32.xlu0 %v2321, 12
  %v2363 = vpop.permute.xlu0 %2362
  %2364 = vrot.lane.b32.xlu0 %v2322, 12
  %v2365 = vpop.permute.xlu0 %2364
  %2366 = vrot.lane.b32.xlu0 %v2323, 12
  %v2367 = vpop.permute.xlu0 %2366
  %2368 = vrot.lane.b32.xlu0 %v2324, 12
  %v2369 = vpop.permute.xlu0 %2368
  %2370 = vrot.lane.b32.xlu0 %v2325, 12
  %v2371 = vpop.permute.xlu0 %2370
  %2372 = vrot.lane.b32.xlu0 %v2326, 12
  %v2373 = vpop.permute.xlu0 %2372
  %2374 = vrot.lane.b32.xlu0 %v2327, 12
  %v2375 = vpop.permute.xlu0 %2374
  %2392 = vst.msk [vmem:[#allocation2] sm:$0xff] %vm416, %v2345
  %2393 = vst.msk [vmem:[#allocation2 + $0x8] sm:$0xff] %vm416, %v2347
  %2394 = vst.msk [vmem:[#allocation2 + $0x10] sm:$0xff] %vm416, %v2349
  %2395 = vst.msk [vmem:[#allocation2 + $0x18] sm:$0xff] %vm416, %v2351
  %2396 = vst.msk [vmem:[#allocation2 + $0x20] sm:$0xff] %vm416, %v2353
  %2397 = vst.msk [vmem:[#allocation2 + $0x28] sm:$0xff] %vm416, %v2355
  %2398 = vst.msk [vmem:[#allocation2 + $0x30] sm:$0xff] %vm416, %v2357
  %2399 = vst.msk [vmem:[#allocation2 + $0x38] sm:$0xff] %vm416, %v2359
  %2400 = vst.msk [vmem:[#allocation2 + $0x40] sm:$0xff] %vm416, %v2361
  %2401 = vst.msk [vmem:[#allocation2 + $0x48] sm:$0xff] %vm416, %v2363
  %2402 = vst.msk [vmem:[#allocation2 + $0x50] sm:$0xff] %vm416, %v2365
  %2403 = vst.msk [vmem:[#allocation2 + $0x58] sm:$0xff] %vm416, %v2367
  %2404 = vst.msk [vmem:[#allocation2 + $0x60] sm:$0xff] %vm416, %v2369
  %2405 = vst.msk [vmem:[#allocation2 + $0x68] sm:$0xff] %vm416, %v2371
  %2406 = vst.msk [vmem:[#allocation2 + $0x70] sm:$0xff] %vm416, %v2373
  %2407 = vst.msk [vmem:[#allocation2 + $0x78] sm:$0xff] %vm416, %v2375
  %v2408 = vld [vmem:[%s2024 + $0x1] sm:$0xff]
  %v2409 = vld [vmem:[%s2024 + $0x11] sm:$0xff]
  %v2410 = vld [vmem:[%s2024 + $0x21] sm:$0xff]
  %v2411 = vld [vmem:[%s2024 + $0x31] sm:$0xff]
  %v2412 = vld [vmem:[%s2024 + $0x41] sm:$0xff]
  %v2413 = vld [vmem:[%s2024 + $0x51] sm:$0xff]
  %v2414 = vld [vmem:[%s2024 + $0x61] sm:$0xff]
  %v2415 = vld [vmem:[%s2024 + $0x71] sm:$0xff]
  %v2416 = vld [vmem:[%s2024 + $0xa1] sm:$0xff]
  %v2417 = vld [vmem:[%s2024 + $0xb1] sm:$0xff]
  %v2418 = vld [vmem:[%s2024 + $0xc1] sm:$0xff]
  %v2419 = vld [vmem:[%s2024 + $0xd1] sm:$0xff]
  %v2420 = vld [vmem:[%s2024 + $0xe1] sm:$0xff]
  %v2421 = vld [vmem:[%s2024 + $0xf1] sm:$0xff]
  %v2422 = vld [vmem:[%s2024 + $0x101] sm:$0xff]
  %v2423 = vld [vmem:[%s2024 + $0x111] sm:$0xff]
  %2440 = vrot.lane.b32.xlu0 %v2408, 16
  %v2441 = vpop.permute.xlu0 %2440
  %2442 = vrot.lane.b32.xlu0 %v2409, 16
  %v2443 = vpop.permute.xlu0 %2442
  %2444 = vrot.lane.b32.xlu0 %v2410, 16
  %v2445 = vpop.permute.xlu0 %2444
  %2446 = vrot.lane.b32.xlu0 %v2411, 16
  %v2447 = vpop.permute.xlu0 %2446
  %2448 = vrot.lane.b32.xlu0 %v2412, 16
  %v2449 = vpop.permute.xlu0 %2448
  %2450 = vrot.lane.b32.xlu0 %v2413, 16
  %v2451 = vpop.permute.xlu0 %2450
  %2452 = vrot.lane.b32.xlu0 %v2414, 16
  %v2453 = vpop.permute.xlu0 %2452
  %2454 = vrot.lane.b32.xlu0 %v2415, 16
  %v2455 = vpop.permute.xlu0 %2454
  %2456 = vrot.lane.b32.xlu0 %v2416, 16
  %v2457 = vpop.permute.xlu0 %2456
  %2458 = vrot.lane.b32.xlu0 %v2417, 16
  %v2459 = vpop.permute.xlu0 %2458
  %2460 = vrot.lane.b32.xlu0 %v2418, 16
  %v2461 = vpop.permute.xlu0 %2460
  %2462 = vrot.lane.b32.xlu0 %v2419, 16
  %v2463 = vpop.permute.xlu0 %2462
  %2464 = vrot.lane.b32.xlu0 %v2420, 16
  %v2465 = vpop.permute.xlu0 %2464
  %2466 = vrot.lane.b32.xlu0 %v2421, 16
  %v2467 = vpop.permute.xlu0 %2466
  %2468 = vrot.lane.b32.xlu0 %v2422, 16
  %v2469 = vpop.permute.xlu0 %2468
  %2470 = vrot.lane.b32.xlu0 %v2423, 16
  %v2471 = vpop.permute.xlu0 %2470
  %2488 = vst.msk [vmem:[#allocation2] sm:$0xff] %vm529, %v2441
  %2489 = vst.msk [vmem:[#allocation2 + $0x8] sm:$0xff] %vm529, %v2443
  %2490 = vst.msk [vmem:[#allocation2 + $0x10] sm:$0xff] %vm529, %v2445
  %2491 = vst.msk [vmem:[#allocation2 + $0x18] sm:$0xff] %vm529, %v2447
  %2492 = vst.msk [vmem:[#allocation2 + $0x20] sm:$0xff] %vm529, %v2449
  %2493 = vst.msk [vmem:[#allocation2 + $0x28] sm:$0xff] %vm529, %v2451
  %2494 = vst.msk [vmem:[#allocation2 + $0x30] sm:$0xff] %vm529, %v2453
  %2495 = vst.msk [vmem:[#allocation2 + $0x38] sm:$0xff] %vm529, %v2455
  %2496 = vst.msk [vmem:[#allocation2 + $0x40] sm:$0xff] %vm529, %v2457
  %2497 = vst.msk [vmem:[#allocation2 + $0x48] sm:$0xff] %vm529, %v2459
  %2498 = vst.msk [vmem:[#allocation2 + $0x50] sm:$0xff] %vm529, %v2461
  %2499 = vst.msk [vmem:[#allocation2 + $0x58] sm:$0xff] %vm529, %v2463
  %2500 = vst.msk [vmem:[#allocation2 + $0x60] sm:$0xff] %vm529, %v2465
  %2501 = vst.msk [vmem:[#allocation2 + $0x68] sm:$0xff] %vm529, %v2467
  %2502 = vst.msk [vmem:[#allocation2 + $0x70] sm:$0xff] %vm529, %v2469
  %2503 = vst.msk [vmem:[#allocation2 + $0x78] sm:$0xff] %vm529, %v2471
  %v2504 = vld [vmem:[%s2024 + $0x2] sm:$0xff]
  %v2505 = vld [vmem:[%s2024 + $0x12] sm:$0xff]
  %v2506 = vld [vmem:[%s2024 + $0x22] sm:$0xff]
  %v2507 = vld [vmem:[%s2024 + $0x32] sm:$0xff]
  %v2508 = vld [vmem:[%s2024 + $0x42] sm:$0xff]
  %v2509 = vld [vmem:[%s2024 + $0x52] sm:$0xff]
  %v2510 = vld [vmem:[%s2024 + $0x62] sm:$0xff]
  %v2511 = vld [vmem:[%s2024 + $0x72] sm:$0xff]
  %v2512 = vld [vmem:[%s2024 + $0xa2] sm:$0xff]
  %v2513 = vld [vmem:[%s2024 + $0xb2] sm:$0xff]
  %v2514 = vld [vmem:[%s2024 + $0xc2] sm:$0xff]
  %v2515 = vld [vmem:[%s2024 + $0xd2] sm:$0xff]
  %v2516 = vld [vmem:[%s2024 + $0xe2] sm:$0xff]
  %v2517 = vld [vmem:[%s2024 + $0xf2] sm:$0xff]
  %v2518 = vld [vmem:[%s2024 + $0x102] sm:$0xff]
  %v2519 = vld [vmem:[%s2024 + $0x112] sm:$0xff]
  %2536 = vrot.lane.b32.xlu0 %v2504, 20
  %v2537 = vpop.permute.xlu0 %2536
  %2538 = vrot.lane.b32.xlu0 %v2505, 20
  %v2539 = vpop.permute.xlu0 %2538
  %2540 = vrot.lane.b32.xlu0 %v2506, 20
  %v2541 = vpop.permute.xlu0 %2540
  %2542 = vrot.lane.b32.xlu0 %v2507, 20
  %v2543 = vpop.permute.xlu0 %2542
  %2544 = vrot.lane.b32.xlu0 %v2508, 20
  %v2545 = vpop.permute.xlu0 %2544
  %2546 = vrot.lane.b32.xlu0 %v2509, 20
  %v2547 = vpop.permute.xlu0 %2546
  %2548 = vrot.lane.b32.xlu0 %v2510, 20
  %v2549 = vpop.permute.xlu0 %2548
  %2550 = vrot.lane.b32.xlu0 %v2511, 20
  %v2551 = vpop.permute.xlu0 %2550
  %2552 = vrot.lane.b32.xlu0 %v2512, 20
  %v2553 = vpop.permute.xlu0 %2552
  %2554 = vrot.lane.b32.xlu0 %v2513, 20
  %v2555 = vpop.permute.xlu0 %2554
  %2556 = vrot.lane.b32.xlu0 %v2514, 20
  %v2557 = vpop.permute.xlu0 %2556
  %2558 = vrot.lane.b32.xlu0 %v2515, 20
  %v2559 = vpop.permute.xlu0 %2558
  %2560 = vrot.lane.b32.xlu0 %v2516, 20
  %v2561 = vpop.permute.xlu0 %2560
  %2562 = vrot.lane.b32.xlu0 %v2517, 20
  %v2563 = vpop.permute.xlu0 %2562
  %2564 = vrot.lane.b32.xlu0 %v2518, 20
  %v2565 = vpop.permute.xlu0 %2564
  %2566 = vrot.lane.b32.xlu0 %v2519, 20
  %v2567 = vpop.permute.xlu0 %2566
  %2584 = vst.msk [vmem:[#allocation2] sm:$0xff] %vm642, %v2537
  %2585 = vst.msk [vmem:[#allocation2 + $0x8] sm:$0xff] %vm642, %v2539
  %2586 = vst.msk [vmem:[#allocation2 + $0x10] sm:$0xff] %vm642, %v2541
  %2587 = vst.msk [vmem:[#allocation2 + $0x18] sm:$0xff] %vm642, %v2543
  %2588 = vst.msk [vmem:[#allocation2 + $0x20] sm:$0xff] %vm642, %v2545
  %2589 = vst.msk [vmem:[#allocation2 + $0x28] sm:$0xff] %vm642, %v2547
  %2590 = vst.msk [vmem:[#allocation2 + $0x30] sm:$0xff] %vm642, %v2549
  %2591 = vst.msk [vmem:[#allocation2 + $0x38] sm:$0xff] %vm642, %v2551
  %2592 = vst.msk [vmem:[#allocation2 + $0x40] sm:$0xff] %vm642, %v2553
  %2593 = vst.msk [vmem:[#allocation2 + $0x48] sm:$0xff] %vm642, %v2555
  %2594 = vst.msk [vmem:[#allocation2 + $0x50] sm:$0xff] %vm642, %v2557
  %2595 = vst.msk [vmem:[#allocation2 + $0x58] sm:$0xff] %vm642, %v2559
  %2596 = vst.msk [vmem:[#allocation2 + $0x60] sm:$0xff] %vm642, %v2561
  %2597 = vst.msk [vmem:[#allocation2 + $0x68] sm:$0xff] %vm642, %v2563
  %2598 = vst.msk [vmem:[#allocation2 + $0x70] sm:$0xff] %vm642, %v2565
  %2599 = vst.msk [vmem:[#allocation2 + $0x78] sm:$0xff] %vm642, %v2567
  %s2600 = scalar_lea.vmem [#allocation3], 32
  %v2601 = vld [vmem:[%s2600] sm:$0xff]
  %v2602 = vld [vmem:[%s2600 + $0x10] sm:$0xff]
  %v2603 = vld [vmem:[%s2600 + $0x20] sm:$0xff]
  %v2604 = vld [vmem:[%s2600 + $0x30] sm:$0xff]
  %v2605 = vld [vmem:[%s2600 + $0x40] sm:$0xff]
  %v2606 = vld [vmem:[%s2600 + $0x50] sm:$0xff]
  %v2607 = vld [vmem:[%s2600 + $0x60] sm:$0xff]
  %v2608 = vld [vmem:[%s2600 + $0x70] sm:$0xff]
  %v2609 = vld [vmem:[%s2600 + $0xa0] sm:$0xff]
  %v2610 = vld [vmem:[%s2600 + $0xb0] sm:$0xff]
  %v2611 = vld [vmem:[%s2600 + $0xc0] sm:$0xff]
  %v2612 = vld [vmem:[%s2600 + $0xd0] sm:$0xff]
  %v2613 = vld [vmem:[%s2600 + $0xe0] sm:$0xff]
  %v2614 = vld [vmem:[%s2600 + $0xf0] sm:$0xff]
  %v2615 = vld [vmem:[%s2600 + $0x100] sm:$0xff]
  %v2616 = vld [vmem:[%s2600 + $0x110] sm:$0xff]
  %2633 = vrot.lane.b32.xlu0 %v2601, 24
  %v2634 = vpop.permute.xlu0 %2633
  %2635 = vrot.lane.b32.xlu0 %v2602, 24
  %v2636 = vpop.permute.xlu0 %2635
  %2637 = vrot.lane.b32.xlu0 %v2603, 24
  %v2638 = vpop.permute.xlu0 %2637
  %2639 = vrot.lane.b32.xlu0 %v2604, 24
  %v2640 = vpop.permute.xlu0 %2639
  %2641 = vrot.lane.b32.xlu0 %v2605, 24
  %v2642 = vpop.permute.xlu0 %2641
  %2643 = vrot.lane.b32.xlu0 %v2606, 24
  %v2644 = vpop.permute.xlu0 %2643
  %2645 = vrot.lane.b32.xlu0 %v2607, 24
  %v2646 = vpop.permute.xlu0 %2645
  %2647 = vrot.lane.b32.xlu0 %v2608, 24
  %v2648 = vpop.permute.xlu0 %2647
  %2649 = vrot.lane.b32.xlu0 %v2609, 24
  %v2650 = vpop.permute.xlu0 %2649
  %2651 = vrot.lane.b32.xlu0 %v2610, 24
  %v2652 = vpop.permute.xlu0 %2651
  %2653 = vrot.lane.b32.xlu0 %v2611, 24
  %v2654 = vpop.permute.xlu0 %2653
  %2655 = vrot.lane.b32.xlu0 %v2612, 24
  %v2656 = vpop.permute.xlu0 %2655
  %2657 = vrot.lane.b32.xlu0 %v2613, 24
  %v2658 = vpop.permute.xlu0 %2657
  %2659 = vrot.lane.b32.xlu0 %v2614, 24
  %v2660 = vpop.permute.xlu0 %2659
  %2661 = vrot.lane.b32.xlu0 %v2615, 24
  %v2662 = vpop.permute.xlu0 %2661
  %2663 = vrot.lane.b32.xlu0 %v2616, 24
  %v2664 = vpop.permute.xlu0 %2663
  %2681 = vst.msk [vmem:[#allocation2] sm:$0xff] %vm755, %v2634
  %2682 = vst.msk [vmem:[#allocation2 + $0x8] sm:$0xff] %vm755, %v2636
  %2683 = vst.msk [vmem:[#allocation2 + $0x10] sm:$0xff] %vm755, %v2638
  %2684 = vst.msk [vmem:[#allocation2 + $0x18] sm:$0xff] %vm755, %v2640
  %2685 = vst.msk [vmem:[#allocation2 + $0x20] sm:$0xff] %vm755, %v2642
  %2686 = vst.msk [vmem:[#allocation2 + $0x28] sm:$0xff] %vm755, %v2644
  %2687 = vst.msk [vmem:[#allocation2 + $0x30] sm:$0xff] %vm755, %v2646
  %2688 = vst.msk [vmem:[#allocation2 + $0x38] sm:$0xff] %vm755, %v2648
  %2689 = vst.msk [vmem:[#allocation2 + $0x40] sm:$0xff] %vm755, %v2650
  %2690 = vst.msk [vmem:[#allocation2 + $0x48] sm:$0xff] %vm755, %v2652
  %2691 = vst.msk [vmem:[#allocation2 + $0x50] sm:$0xff] %vm755, %v2654
  %2692 = vst.msk [vmem:[#allocation2 + $0x58] sm:$0xff] %vm755, %v2656
  %2693 = vst.msk [vmem:[#allocation2 + $0x60] sm:$0xff] %vm755, %v2658
  %2694 = vst.msk [vmem:[#allocation2 + $0x68] sm:$0xff] %vm755, %v2660
  %2695 = vst.msk [vmem:[#allocation2 + $0x70] sm:$0xff] %vm755, %v2662
  %2696 = vst.msk [vmem:[#allocation2 + $0x78] sm:$0xff] %vm755, %v2664
  %v2697 = vld [vmem:[%s2600 + $0x1] sm:$0xff]
  %v2698 = vld [vmem:[%s2600 + $0x11] sm:$0xff]
  %v2699 = vld [vmem:[%s2600 + $0x21] sm:$0xff]
  %v2700 = vld [vmem:[%s2600 + $0x31] sm:$0xff]
  %v2701 = vld [vmem:[%s2600 + $0x41] sm:$0xff]
  %v2702 = vld [vmem:[%s2600 + $0x51] sm:$0xff]
  %v2703 = vld [vmem:[%s2600 + $0x61] sm:$0xff]
  %v2704 = vld [vmem:[%s2600 + $0x71] sm:$0xff]
  %v2705 = vld [vmem:[%s2600 + $0xa1] sm:$0xff]
  %v2706 = vld [vmem:[%s2600 + $0xb1] sm:$0xff]
  %v2707 = vld [vmem:[%s2600 + $0xc1] sm:$0xff]
  %v2708 = vld [vmem:[%s2600 + $0xd1] sm:$0xff]
  %v2709 = vld [vmem:[%s2600 + $0xe1] sm:$0xff]
  %v2710 = vld [vmem:[%s2600 + $0xf1] sm:$0xff]
  %v2711 = vld [vmem:[%s2600 + $0x101] sm:$0xff]
  %v2712 = vld [vmem:[%s2600 + $0x111] sm:$0xff]
  %2729 = vrot.lane.b32.xlu0 %v2697, 28
  %v2730 = vpop.permute.xlu0 %2729
  %2731 = vrot.lane.b32.xlu0 %v2698, 28
  %v2732 = vpop.permute.xlu0 %2731
  %2733 = vrot.lane.b32.xlu0 %v2699, 28
  %v2734 = vpop.permute.xlu0 %2733
  %2735 = vrot.lane.b32.xlu0 %v2700, 28
  %v2736 = vpop.permute.xlu0 %2735
  %2737 = vrot.lane.b32.xlu0 %v2701, 28
  %v2738 = vpop.permute.xlu0 %2737
  %2739 = vrot.lane.b32.xlu0 %v2702, 28
  %v2740 = vpop.permute.xlu0 %2739
  %2741 = vrot.lane.b32.xlu0 %v2703, 28
  %v2742 = vpop.permute.xlu0 %2741
  %2743 = vrot.lane.b32.xlu0 %v2704, 28
  %v2744 = vpop.permute.xlu0 %2743
  %2745 = vrot.lane.b32.xlu0 %v2705, 28
  %v2746 = vpop.permute.xlu0 %2745
  %2747 = vrot.lane.b32.xlu0 %v2706, 28
  %v2748 = vpop.permute.xlu0 %2747
  %2749 = vrot.lane.b32.xlu0 %v2707, 28
  %v2750 = vpop.permute.xlu0 %2749
  %2751 = vrot.lane.b32.xlu0 %v2708, 28
  %v2752 = vpop.permute.xlu0 %2751
  %2753 = vrot.lane.b32.xlu0 %v2709, 28
  %v2754 = vpop.permute.xlu0 %2753
  %2755 = vrot.lane.b32.xlu0 %v2710, 28
  %v2756 = vpop.permute.xlu0 %2755
  %2757 = vrot.lane.b32.xlu0 %v2711, 28
  %v2758 = vpop.permute.xlu0 %2757
  %2759 = vrot.lane.b32.xlu0 %v2712, 28
  %v2760 = vpop.permute.xlu0 %2759
  %2777 = vst.msk [vmem:[#allocation2] sm:$0xff] %vm868, %v2730
  %2778 = vst.msk [vmem:[#allocation2 + $0x8] sm:$0xff] %vm868, %v2732
  %2779 = vst.msk [vmem:[#allocation2 + $0x10] sm:$0xff] %vm868, %v2734
  %2780 = vst.msk [vmem:[#allocation2 + $0x18] sm:$0xff] %vm868, %v2736
  %2781 = vst.msk [vmem:[#allocation2 + $0x20] sm:$0xff] %vm868, %v2738
  %2782 = vst.msk [vmem:[#allocation2 + $0x28] sm:$0xff] %vm868, %v2740
  %2783 = vst.msk [vmem:[#allocation2 + $0x30] sm:$0xff] %vm868, %v2742
  %2784 = vst.msk [vmem:[#allocation2 + $0x38] sm:$0xff] %vm868, %v2744
  %2785 = vst.msk [vmem:[#allocation2 + $0x40] sm:$0xff] %vm868, %v2746
  %2786 = vst.msk [vmem:[#allocation2 + $0x48] sm:$0xff] %vm868, %v2748
  %2787 = vst.msk [vmem:[#allocation2 + $0x50] sm:$0xff] %vm868, %v2750
  %2788 = vst.msk [vmem:[#allocation2 + $0x58] sm:$0xff] %vm868, %v2752
  %2789 = vst.msk [vmem:[#allocation2 + $0x60] sm:$0xff] %vm868, %v2754
  %2790 = vst.msk [vmem:[#allocation2 + $0x68] sm:$0xff] %vm868, %v2756
  %2791 = vst.msk [vmem:[#allocation2 + $0x70] sm:$0xff] %vm868, %v2758
  %2792 = vst.msk [vmem:[#allocation2 + $0x78] sm:$0xff] %vm868, %v2760
  %v2793 = vld [vmem:[%s2600 + $0x2] sm:$0xff]
  %v2794 = vld [vmem:[%s2600 + $0x12] sm:$0xff]
  %v2795 = vld [vmem:[%s2600 + $0x22] sm:$0xff]
  %v2796 = vld [vmem:[%s2600 + $0x32] sm:$0xff]
  %v2797 = vld [vmem:[%s2600 + $0x42] sm:$0xff]
  %v2798 = vld [vmem:[%s2600 + $0x52] sm:$0xff]
  %v2799 = vld [vmem:[%s2600 + $0x62] sm:$0xff]
  %v2800 = vld [vmem:[%s2600 + $0x72] sm:$0xff]
  %v2801 = vld [vmem:[%s2600 + $0xa2] sm:$0xff]
  %v2802 = vld [vmem:[%s2600 + $0xb2] sm:$0xff]
  %v2803 = vld [vmem:[%s2600 + $0xc2] sm:$0xff]
  %v2804 = vld [vmem:[%s2600 + $0xd2] sm:$0xff]
  %v2805 = vld [vmem:[%s2600 + $0xe2] sm:$0xff]
  %v2806 = vld [vmem:[%s2600 + $0xf2] sm:$0xff]
  %v2807 = vld [vmem:[%s2600 + $0x102] sm:$0xff]
  %v2808 = vld [vmem:[%s2600 + $0x112] sm:$0xff]
  %2825 = vrot.lane.b32.xlu0 %v2793, 32
  %v2826 = vpop.permute.xlu0 %2825
  %2827 = vrot.lane.b32.xlu0 %v2794, 32
  %v2828 = vpop.permute.xlu0 %2827
  %2829 = vrot.lane.b32.xlu0 %v2795, 32
  %v2830 = vpop.permute.xlu0 %2829
  %2831 = vrot.lane.b32.xlu0 %v2796, 32
  %v2832 = vpop.permute.xlu0 %2831
  %2833 = vrot.lane.b32.xlu0 %v2797, 32
  %v2834 = vpop.permute.xlu0 %2833
  %2835 = vrot.lane.b32.xlu0 %v2798, 32
  %v2836 = vpop.permute.xlu0 %2835
  %2837 = vrot.lane.b32.xlu0 %v2799, 32
  %v2838 = vpop.permute.xlu0 %2837
  %2839 = vrot.lane.b32.xlu0 %v2800, 32
  %v2840 = vpop.permute.xlu0 %2839
  %2841 = vrot.lane.b32.xlu0 %v2801, 32
  %v2842 = vpop.permute.xlu0 %2841
  %2843 = vrot.lane.b32.xlu0 %v2802, 32
  %v2844 = vpop.permute.xlu0 %2843
  %2845 = vrot.lane.b32.xlu0 %v2803, 32
  %v2846 = vpop.permute.xlu0 %2845
  %2847 = vrot.lane.b32.xlu0 %v2804, 32
  %v2848 = vpop.permute.xlu0 %2847
  %2849 = vrot.lane.b32.xlu0 %v2805, 32
  %v2850 = vpop.permute.xlu0 %2849
  %2851 = vrot.lane.b32.xlu0 %v2806, 32
  %v2852 = vpop.permute.xlu0 %2851
  %2853 = vrot.lane.b32.xlu0 %v2807, 32
  %v2854 = vpop.permute.xlu0 %2853
  %2855 = vrot.lane.b32.xlu0 %v2808, 32
  %v2856 = vpop.permute.xlu0 %2855
  %2873 = vst.msk [vmem:[#allocation2] sm:$0xff] %vm981, %v2826
  %2874 = vst.msk [vmem:[#allocation2 + $0x8] sm:$0xff] %vm981, %v2828
  %2875 = vst.msk [vmem:[#allocation2 + $0x10] sm:$0xff] %vm981, %v2830
  %2876 = vst.msk [vmem:[#allocation2 + $0x18] sm:$0xff] %vm981, %v2832
  %2877 = vst.msk [vmem:[#allocation2 + $0x20] sm:$0xff] %vm981, %v2834
  %2878 = vst.msk [vmem:[#allocation2 + $0x28] sm:$0xff] %vm981, %v2836
  %2879 = vst.msk [vmem:[#allocation2 + $0x30] sm:$0xff] %vm981, %v2838
  %2880 = vst.msk [vmem:[#allocation2 + $0x38] sm:$0xff] %vm981, %v2840
  %2881 = vst.msk [vmem:[#allocation2 + $0x40] sm:$0xff] %vm981, %v2842
  %2882 = vst.msk [vmem:[#allocation2 + $0x48] sm:$0xff] %vm981, %v2844
  %2883 = vst.msk [vmem:[#allocation2 + $0x50] sm:$0xff] %vm981, %v2846
  %2884 = vst.msk [vmem:[#allocation2 + $0x58] sm:$0xff] %vm981, %v2848
  %2885 = vst.msk [vmem:[#allocation2 + $0x60] sm:$0xff] %vm981, %v2850
  %2886 = vst.msk [vmem:[#allocation2 + $0x68] sm:$0xff] %vm981, %v2852
  %2887 = vst.msk [vmem:[#allocation2 + $0x70] sm:$0xff] %vm981, %v2854
  %2888 = vst.msk [vmem:[#allocation2 + $0x78] sm:$0xff] %vm981, %v2856
  %v2889 = vld [vmem:[#allocation2] sm:$0xff]
  %v2890 = vld [vmem:[#allocation2 + $0x8] sm:$0xff]
  %v2891 = vld [vmem:[#allocation2 + $0x10] sm:$0xff]
  %v2892 = vld [vmem:[#allocation2 + $0x18] sm:$0xff]
  %v2893 = vld [vmem:[#allocation2 + $0x20] sm:$0xff]
  %v2894 = vld [vmem:[#allocation2 + $0x28] sm:$0xff]
  %v2895 = vld [vmem:[#allocation2 + $0x30] sm:$0xff]
  %v2896 = vld [vmem:[#allocation2 + $0x38] sm:$0xff]
  %v2897 = vld [vmem:[#allocation2 + $0x40] sm:$0xff]
  %v2898 = vld [vmem:[#allocation2 + $0x48] sm:$0xff]
  %v2899 = vld [vmem:[#allocation2 + $0x50] sm:$0xff]
  %v2900 = vld [vmem:[#allocation2 + $0x58] sm:$0xff]
  %v2901 = vld [vmem:[#allocation2 + $0x60] sm:$0xff]
  %v2902 = vld [vmem:[#allocation2 + $0x68] sm:$0xff]
  %v2903 = vld [vmem:[#allocation2 + $0x70] sm:$0xff]
  %v2904 = vld [vmem:[#allocation2 + $0x78] sm:$0xff]
  %v2905 = vld [vmem:[%s2] sm:$0xff]
  %v2906 = vld [vmem:[%s2 + $0x8] sm:$0xff]
  %v2907 = vld [vmem:[%s2 + $0x10] sm:$0xff]
  %v2908 = vld [vmem:[%s2 + $0x18] sm:$0xff]
  %v2909 = vld [vmem:[%s2 + $0x20] sm:$0xff]
  %v2910 = vld [vmem:[%s2 + $0x28] sm:$0xff]
  %v2911 = vld [vmem:[%s2 + $0x30] sm:$0xff]
  %v2912 = vld [vmem:[%s2 + $0x38] sm:$0xff]
  %v2913 = vld [vmem:[%s2 + $0x40] sm:$0xff]
  %v2914 = vld [vmem:[%s2 + $0x48] sm:$0xff]
  %v2915 = vld [vmem:[%s2 + $0x50] sm:$0xff]
  %v2916 = vld [vmem:[%s2 + $0x58] sm:$0xff]
  %v2917 = vld [vmem:[%s2 + $0x60] sm:$0xff]
  %v2918 = vld [vmem:[%s2 + $0x68] sm:$0xff]
  %v2919 = vld [vmem:[%s2 + $0x70] sm:$0xff]
  %v2920 = vld [vmem:[%s2 + $0x78] sm:$0xff]
  %2921 = vmatprep.subr.mxu0 0.0
  %2922 = vmatpush1.msra.mxu0 %v2920
  %2923 = vmatprep.subr.mxu0 0.0
  %2924 = vmatpush1.msra.mxu0 %v2919
  %2925 = vmatprep.subr.mxu0 0.0
  %2926 = vmatpush1.msra.mxu0 %v2918
  %2927 = vmatprep.subr.mxu0 0.0
  %2928 = vmatpush1.msra.mxu0 %v2917
  %2929 = vmatprep.subr.mxu0 0.0
  %2930 = vmatpush1.msra.mxu0 %v2916
  %2931 = vmatprep.subr.mxu0 0.0
  %2932 = vmatpush1.msra.mxu0 %v2915
  %2933 = vmatprep.subr.mxu0 0.0
  %2934 = vmatpush1.msra.mxu0 %v2914
  %2935 = vmatprep.subr.mxu0 0.0
  %2936 = vmatpush1.msra.mxu0 %v2913
  %2937 = vmatprep.subr.mxu0 0.0
  %2938 = vmatpush1.msra.mxu0 %v2912
  %2939 = vmatprep.subr.mxu0 0.0
  %2940 = vmatpush1.msra.mxu0 %v2911
  %2941 = vmatprep.subr.mxu0 0.0
  %2942 = vmatpush1.msra.mxu0 %v2910
  %2943 = vmatprep.subr.mxu0 0.0
  %2944 = vmatpush1.msra.mxu0 %v2909
  %2945 = vmatprep.subr.mxu0 0.0
  %2946 = vmatpush1.msra.mxu0 %v2908
  %2947 = vmatprep.subr.mxu0 0.0
  %2948 = vmatpush1.msra.mxu0 %v2907
  %2949 = vmatprep.subr.mxu0 0.0
  %2950 = vmatpush1.msra.mxu0 %v2906
  %2951 = vmatprep.subr.mxu0 0.0
  %2952 = vmatpush1.msra.mxu0 %v2905
  %2953 = vmatprep.subr.mxu0 0.0
  %2954 = vmatpush2.msra.mxu0 0.0
  %2955 = vmatprep.subr.mxu0 0.0
  %2956 = vmatpush2.msra.mxu0 0.0
  %2957 = vmatprep.subr.mxu0 0.0
  %2958 = vmatpush2.msra.mxu0 0.0
  %2959 = vmatprep.subr.mxu0 0.0
  %2960 = vmatpush2.msra.mxu0 0.0
  %2961 = vmatprep.subr.mxu0 0.0
  %2962 = vmatpush2.msra.mxu0 0.0
  %2963 = vmatprep.subr.mxu0 0.0
  %2964 = vmatpush2.msra.mxu0 0.0
  %2965 = vmatprep.subr.mxu0 0.0
  %2966 = vmatpush2.msra.mxu0 0.0
  %2967 = vmatprep.subr.mxu0 0.0
  %2968 = vmatpush2.msra.mxu0 0.0
  %2969 = vmatprep.subr.mxu0 0.0
  %2970 = vmatpush2.msra.mxu0 0.0
  %2971 = vmatprep.subr.mxu0 0.0
  %2972 = vmatpush2.msra.mxu0 0.0
  %2973 = vmatprep.subr.mxu0 0.0
  %2974 = vmatpush2.msra.mxu0 0.0
  %2975 = vmatprep.subr.mxu0 0.0
  %2976 = vmatpush2.msra.mxu0 0.0
  %2977 = vmatprep.subr.mxu0 0.0
  %2978 = vmatpush2.msra.mxu0 0.0
  %2979 = vmatprep.subr.mxu0 0.0
  %2980 = vmatpush2.msra.mxu0 0.0
  %2981 = vmatprep.subr.mxu0 0.0
  %2982 = vmatpush2.msra.mxu0 0.0
  %2983 = vmatprep.subr.mxu0 0.0
  %2984 = vmatpush2.msra.mxu0 0.0
  %2985 = vmatprep.mubr.f32.mxu0 0.0
  %2986 = vmatmul.mubr.f32.gmra.mxu0 %v2889
  %v2987 = vpop.f32.mrf.mxu0
  %v2988 = vadd.f32 0.0, %v2987
  %v2989 = vpop.f32.mrf.mxu0
  %2990 = vmatprep.mubr.f32.mxu0 0.0
  %2991 = vmatmul.mubr.f32.gmra.mxu0 %v2890
  %v2992 = vpop.f32.mrf.mxu0
  %v2993 = vadd.f32 0.0, %v2992
  %v2994 = vpop.f32.mrf.mxu0
  %2995 = vmatprep.mubr.f32.mxu0 0.0
  %2996 = vmatmul.mubr.f32.gmra.mxu0 %v2891
  %v2997 = vpop.f32.mrf.mxu0
  %v2998 = vadd.f32 0.0, %v2997
  %v2999 = vpop.f32.mrf.mxu0
  %3000 = vmatprep.mubr.f32.mxu0 0.0
  %3001 = vmatmul.mubr.f32.gmra.mxu0 %v2892
  %v3002 = vpop.f32.mrf.mxu0
  %v3003 = vadd.f32 0.0, %v3002
  %v3004 = vpop.f32.mrf.mxu0
  %3005 = vmatprep.mubr.f32.mxu0 0.0
  %3006 = vmatmul.mubr.f32.gmra.mxu0 %v2893
  %v3007 = vpop.f32.mrf.mxu0
  %v3008 = vadd.f32 0.0, %v3007
  %v3009 = vpop.f32.mrf.mxu0
  %3010 = vmatprep.mubr.f32.mxu0 0.0
  %3011 = vmatmul.mubr.f32.gmra.mxu0 %v2894
  %v3012 = vpop.f32.mrf.mxu0
  %v3013 = vadd.f32 0.0, %v3012
  %v3014 = vpop.f32.mrf.mxu0
  %3015 = vmatprep.mubr.f32.mxu0 0.0
  %3016 = vmatmul.mubr.f32.gmra.mxu0 %v2895
  %v3017 = vpop.f32.mrf.mxu0
  %v3018 = vadd.f32 0.0, %v3017
  %v3019 = vpop.f32.mrf.mxu0
  %3020 = vmatprep.mubr.f32.mxu0 0.0
  %3021 = vmatmul.mubr.f32.gmra.mxu0 %v2896
  %v3022 = vpop.f32.mrf.mxu0
  %v3023 = vadd.f32 0.0, %v3022
  %v3024 = vpop.f32.mrf.mxu0
  %3025 = vmatprep.mubr.f32.mxu0 0.0
  %3026 = vmatmul.mubr.f32.gmra.mxu0 %v2897
  %v3027 = vpop.f32.mrf.mxu0
  %v3028 = vadd.f32 0.0, %v3027
  %v3029 = vpop.f32.mrf.mxu0
  %3030 = vmatprep.mubr.f32.mxu0 0.0
  %3031 = vmatmul.mubr.f32.gmra.mxu0 %v2898
  %v3032 = vpop.f32.mrf.mxu0
  %v3033 = vadd.f32 0.0, %v3032
  %v3034 = vpop.f32.mrf.mxu0
  %3035 = vmatprep.mubr.f32.mxu0 0.0
  %3036 = vmatmul.mubr.f32.gmra.mxu0 %v2899
  %v3037 = vpop.f32.mrf.mxu0
  %v3038 = vadd.f32 0.0, %v3037
  %v3039 = vpop.f32.mrf.mxu0
  %3040 = vmatprep.mubr.f32.mxu0 0.0
  %3041 = vmatmul.mubr.f32.gmra.mxu0 %v2900
  %v3042 = vpop.f32.mrf.mxu0
  %v3043 = vadd.f32 0.0, %v3042
  %v3044 = vpop.f32.mrf.mxu0
  %3045 = vmatprep.mubr.f32.mxu0 0.0
  %3046 = vmatmul.mubr.f32.gmra.mxu0 %v2901
  %v3047 = vpop.f32.mrf.mxu0
  %v3048 = vadd.f32 0.0, %v3047
  %v3049 = vpop.f32.mrf.mxu0
  %3050 = vmatprep.mubr.f32.mxu0 0.0
  %3051 = vmatmul.mubr.f32.gmra.mxu0 %v2902
  %v3052 = vpop.f32.mrf.mxu0
  %v3053 = vadd.f32 0.0, %v3052
  %v3054 = vpop.f32.mrf.mxu0
  %3055 = vmatprep.mubr.f32.mxu0 0.0
  %3056 = vmatmul.mubr.f32.gmra.mxu0 %v2903
  %v3057 = vpop.f32.mrf.mxu0
  %v3058 = vadd.f32 0.0, %v3057
  %v3059 = vpop.f32.mrf.mxu0
  %3060 = vmatprep.mubr.f32.mxu0 0.0
  %3061 = vmatmul.mubr.f32.gmra.mxu0 %v2904
  %v3062 = vpop.f32.mrf.mxu0
  %v3063 = vadd.f32 0.0, %v3062
  %v3064 = vpop.f32.mrf.mxu0
  %3065 = vdwg.mxu0
  %v3066 = vld [vmem:[%s5] sm:$0x1]
  %v3067 = vlaneseq
  %v3068 = vshrl.u32 %v3067, 7
  %v3069 = vsub.s32 0, %v3068
  %v3070 = vrot.slane %v3066, %v3069
  %v3071 = vmul.f32 %v2988, %v3070
  %v3072 = vmul.f32 %v2993, %v3070
  %v3073 = vmul.f32 %v2998, %v3070
  %v3074 = vmul.f32 %v3003, %v3070
  %v3075 = vmul.f32 %v3008, %v3070
  %v3076 = vmul.f32 %v3013, %v3070
  %v3077 = vmul.f32 %v3018, %v3070
  %v3078 = vmul.f32 %v3023, %v3070
  %v3079 = vmul.f32 %v3028, %v3070
  %v3080 = vmul.f32 %v3033, %v3070
  %v3081 = vmul.f32 %v3038, %v3070
  %v3082 = vmul.f32 %v3043, %v3070
  %v3083 = vmul.f32 %v3048, %v3070
  %v3084 = vmul.f32 %v3053, %v3070
  %v3085 = vmul.f32 %v3058, %v3070
  %v3086 = vmul.f32 %v3063, %v3070
  %v3087 = vld [vmem:[%s5 + $0x1] sm:$0x1]
  %v3088 = vlaneseq
  %v3089 = vshrl.u32 %v3088, 7
  %v3090 = vsub.s32 0, %v3089
  %v3091 = vrot.slane %v3087, %v3090
  %v3092 = vadd.f32 %v3071, %v3091
  %v3093 = vadd.f32 %v3072, %v3091
  %v3094 = vadd.f32 %v3073, %v3091
  %v3095 = vadd.f32 %v3074, %v3091
  %v3096 = vadd.f32 %v3075, %v3091
  %v3097 = vadd.f32 %v3076, %v3091
  %v3098 = vadd.f32 %v3077, %v3091
  %v3099 = vadd.f32 %v3078, %v3091
  %v3100 = vadd.f32 %v3079, %v3091
  %v3101 = vadd.f32 %v3080, %v3091
  %v3102 = vadd.f32 %v3081, %v3091
  %v3103 = vadd.f32 %v3082, %v3091
  %v3104 = vadd.f32 %v3083, %v3091
  %v3105 = vadd.f32 %v3084, %v3091
  %v3106 = vadd.f32 %v3085, %v3091
  %v3107 = vadd.f32 %v3086, %v3091
  %v3108 = vmax.f32 %v3092, 0.0
  %v3109 = vmax.f32 %v3093, 0.0
  %v3110 = vmax.f32 %v3094, 0.0
  %v3111 = vmax.f32 %v3095, 0.0
  %v3112 = vmax.f32 %v3096, 0.0
  %v3113 = vmax.f32 %v3097, 0.0
  %v3114 = vmax.f32 %v3098, 0.0
  %v3115 = vmax.f32 %v3099, 0.0
  %v3116 = vmax.f32 %v3100, 0.0
  %v3117 = vmax.f32 %v3101, 0.0
  %v3118 = vmax.f32 %v3102, 0.0
  %v3119 = vmax.f32 %v3103, 0.0
  %v3120 = vmax.f32 %v3104, 0.0
  %v3121 = vmax.f32 %v3105, 0.0
  %v3122 = vmax.f32 %v3106, 0.0
  %v3123 = vmax.f32 %v3107, 0.0
  %s3124 = scalar_lea.vmem [#allocation4], 16
  %vm3125 = vcmask 64512
  %3126 = vst.msk [vmem:[%s3124 + $0x1] sm:$0xff] %vm3125, %v3108
  %3127 = vst.msk [vmem:[%s3124 + $0x11] sm:$0xff] %vm3125, %v3109
  %3128 = vst.msk [vmem:[%s3124 + $0x21] sm:$0xff] %vm3125, %v3110
  %3129 = vst.msk [vmem:[%s3124 + $0x31] sm:$0xff] %vm3125, %v3111
  %3130 = vst.msk [vmem:[%s3124 + $0x41] sm:$0xff] %vm3125, %v3112
  %3131 = vst.msk [vmem:[%s3124 + $0x51] sm:$0xff] %vm3125, %v3113
  %3132 = vst.msk [vmem:[%s3124 + $0x61] sm:$0xff] %vm3125, %v3114
  %3133 = vst.msk [vmem:[%s3124 + $0x71] sm:$0xff] %vm3125, %v3115
  %3134 = vst.msk [vmem:[%s3124 + $0xa1] sm:$0xff] %vm3125, %v3116
  %3135 = vst.msk [vmem:[%s3124 + $0xb1] sm:$0xff] %vm3125, %v3117
  %3136 = vst.msk [vmem:[%s3124 + $0xc1] sm:$0xff] %vm3125, %v3118
  %3137 = vst.msk [vmem:[%s3124 + $0xd1] sm:$0xff] %vm3125, %v3119
  %3138 = vst.msk [vmem:[%s3124 + $0xe1] sm:$0xff] %vm3125, %v3120
  %3139 = vst.msk [vmem:[%s3124 + $0xf1] sm:$0xff] %vm3125, %v3121
  %3140 = vst.msk [vmem:[%s3124 + $0x101] sm:$0xff] %vm3125, %v3122
  %3141 = vst.msk [vmem:[%s3124 + $0x111] sm:$0xff] %vm3125, %v3123
  %3142 = vst.msk [vmem:[#allocation4 + $0x1] sm:$0xff] %vm3125, %v3109
  %3143 = vst.msk [vmem:[#allocation4 + $0xa1] sm:$0xff] %vm3125, %v3117
  %s3144 = scalar_lea.vmem [#allocation4], 144
  %3145 = vst.msk [vmem:[%s3144 + $0x1] sm:$0xff] %vm3125, %v3114
  %3146 = vst.msk [vmem:[%s3144 + $0xa1] sm:$0xff] %vm3125, %v3122
  %vm3147 = vcmask 58369
  %3148 = vst.msk [vmem:[%s3124 - $0x1] sm:$0x2] %vm3147, %v3108
  %3149 = vst.msk [vmem:[%s3124 + $0xf] sm:$0x2] %vm3147, %v3109
  %3150 = vst.msk [vmem:[%s3124 + $0x1f] sm:$0x2] %vm3147, %v3110
  %3151 = vst.msk [vmem:[%s3124 + $0x2f] sm:$0x2] %vm3147, %v3111
  %3152 = vst.msk [vmem:[%s3124 + $0x3f] sm:$0x2] %vm3147, %v3112
  %3153 = vst.msk [vmem:[%s3124 + $0x4f] sm:$0x2] %vm3147, %v3113
  %3154 = vst.msk [vmem:[%s3124 + $0x5f] sm:$0x2] %vm3147, %v3114
  %3155 = vst.msk [vmem:[%s3124 + $0x6f] sm:$0x2] %vm3147, %v3115
  %3156 = vst.msk [vmem:[%s3124 + $0x9f] sm:$0x2] %vm3147, %v3116
  %3157 = vst.msk [vmem:[%s3124 + $0xaf] sm:$0x2] %vm3147, %v3117
  %3158 = vst.msk [vmem:[%s3124 + $0xbf] sm:$0x2] %vm3147, %v3118
  %3159 = vst.msk [vmem:[%s3124 + $0xcf] sm:$0x2] %vm3147, %v3119
  %3160 = vst.msk [vmem:[%s3124 + $0xdf] sm:$0x2] %vm3147, %v3120
  %3161 = vst.msk [vmem:[%s3124 + $0xef] sm:$0x2] %vm3147, %v3121
  %3162 = vst.msk [vmem:[%s3124 + $0xff] sm:$0x2] %vm3147, %v3122
  %3163 = vst.msk [vmem:[%s3124 + $0x10f] sm:$0x2] %vm3147, %v3123
  %vm3164 = vcmask 63494
  %3165 = vst.msk [vmem:[%s3124 + $0x3] sm:$0x40] %vm3164, %v3108
  %3166 = vst.msk [vmem:[%s3124 + $0x13] sm:$0x40] %vm3164, %v3109
  %3167 = vst.msk [vmem:[%s3124 + $0x23] sm:$0x40] %vm3164, %v3110
  %3168 = vst.msk [vmem:[%s3124 + $0x33] sm:$0x40] %vm3164, %v3111
  %3169 = vst.msk [vmem:[%s3124 + $0x43] sm:$0x40] %vm3164, %v3112
  %3170 = vst.msk [vmem:[%s3124 + $0x53] sm:$0x40] %vm3164, %v3113
  %3171 = vst.msk [vmem:[%s3124 + $0x63] sm:$0x40] %vm3164, %v3114
  %3172 = vst.msk [vmem:[%s3124 + $0x73] sm:$0x40] %vm3164, %v3115
  %3173 = vst.msk [vmem:[%s3124 + $0xa3] sm:$0x40] %vm3164, %v3116
  %3174 = vst.msk [vmem:[%s3124 + $0xb3] sm:$0x40] %vm3164, %v3117
  %3175 = vst.msk [vmem:[%s3124 + $0xc3] sm:$0x40] %vm3164, %v3118
  %3176 = vst.msk [vmem:[%s3124 + $0xd3] sm:$0x40] %vm3164, %v3119
  %3177 = vst.msk [vmem:[%s3124 + $0xe3] sm:$0x40] %vm3164, %v3120
  %3178 = vst.msk [vmem:[%s3124 + $0xf3] sm:$0x40] %vm3164, %v3121
  %3179 = vst.msk [vmem:[%s3124 + $0x103] sm:$0x40] %vm3164, %v3122
  %3180 = vst.msk [vmem:[%s3124 + $0x113] sm:$0x40] %vm3164, %v3123
  %3181 = vst.msk [vmem:[#allocation4 - $0x1] sm:$0x2] %vm3147, %v3109
  %3182 = vst.msk [vmem:[#allocation4 + $0x9f] sm:$0x2] %vm3147, %v3117
  %3183 = vst.msk [vmem:[#allocation4 + $0x3] sm:$0x40] %vm3164, %v3109
  %3184 = vst.msk [vmem:[#allocation4 + $0xa3] sm:$0x40] %vm3164, %v3117
  %3185 = vst.msk [vmem:[%s3144 - $0x1] sm:$0x2] %vm3147, %v3114
  %3186 = vst.msk [vmem:[%s3144 + $0x9f] sm:$0x2] %vm3147, %v3122
  %3187 = vst.msk [vmem:[%s3144 + $0x3] sm:$0x40] %vm3164, %v3114
  %3188 = vst.msk [vmem:[%s3144 + $0xa3] sm:$0x40] %vm3164, %v3122
  %v3189 = vld [vmem:[#allocation4] sm:$0xff]
  %v3190 = vld [vmem:[#allocation4 + $0x10] sm:$0xff]
  %v3191 = vld [vmem:[#allocation4 + $0x20] sm:$0xff]
  %v3192 = vld [vmem:[#allocation4 + $0x30] sm:$0xff]
  %v3193 = vld [vmem:[#allocation4 + $0x40] sm:$0xff]
  %v3194 = vld [vmem:[#allocation4 + $0x50] sm:$0xff]
  %v3195 = vld [vmem:[#allocation4 + $0x60] sm:$0xff]
  %v3196 = vld [vmem:[#allocation4 + $0x70] sm:$0xff]
  %v3197 = vld [vmem:[#allocation4 + $0xa0] sm:$0xff]
  %v3198 = vld [vmem:[#allocation4 + $0xb0] sm:$0xff]
  %v3199 = vld [vmem:[#allocation4 + $0xc0] sm:$0xff]
  %v3200 = vld [vmem:[#allocation4 + $0xd0] sm:$0xff]
  %v3201 = vld [vmem:[#allocation4 + $0xe0] sm:$0xff]
  %v3202 = vld [vmem:[#allocation4 + $0xf0] sm:$0xff]
  %v3203 = vld [vmem:[#allocation4 + $0x100] sm:$0xff]
  %v3204 = vld [vmem:[#allocation4 + $0x110] sm:$0xff]
  %3205 = vst.msk [vmem:[#allocation2] sm:$0xff] %vm3125, %v3189
  %3206 = vst.msk [vmem:[#allocation2 + $0x8] sm:$0xff] %vm3125, %v3190
  %3207 = vst.msk [vmem:[#allocation2 + $0x10] sm:$0xff] %vm3125, %v3191
  %3208 = vst.msk [vmem:[#allocation2 + $0x18] sm:$0xff] %vm3125, %v3192
  %3209 = vst.msk [vmem:[#allocation2 + $0x20] sm:$0xff] %vm3125, %v3193
  %3210 = vst.msk [vmem:[#allocation2 + $0x28] sm:$0xff] %vm3125, %v3194
  %3211 = vst.msk [vmem:[#allocation2 + $0x30] sm:$0xff] %vm3125, %v3195
  %3212 = vst.msk [vmem:[#allocation2 + $0x38] sm:$0xff] %vm3125, %v3196
  %3213 = vst.msk [vmem:[#allocation2 + $0x40] sm:$0xff] %vm3125, %v3197
  %3214 = vst.msk [vmem:[#allocation2 + $0x48] sm:$0xff] %vm3125, %v3198
  %3215 = vst.msk [vmem:[#allocation2 + $0x50] sm:$0xff] %vm3125, %v3199
  %3216 = vst.msk [vmem:[#allocation2 + $0x58] sm:$0xff] %vm3125, %v3200
  %3217 = vst.msk [vmem:[#allocation2 + $0x60] sm:$0xff] %vm3125, %v3201
  %3218 = vst.msk [vmem:[#allocation2 + $0x68] sm:$0xff] %vm3125, %v3202
  %3219 = vst.msk [vmem:[#allocation2 + $0x70] sm:$0xff] %vm3125, %v3203
  %3220 = vst.msk [vmem:[#allocation2 + $0x78] sm:$0xff] %vm3125, %v3204
  %v3221 = vld [vmem:[#allocation4 + $0x1] sm:$0xff]
  %v3222 = vld [vmem:[#allocation4 + $0x11] sm:$0xff]
  %v3223 = vld [vmem:[#allocation4 + $0x21] sm:$0xff]
  %v3224 = vld [vmem:[#allocation4 + $0x31] sm:$0xff]
  %v3225 = vld [vmem:[#allocation4 + $0x41] sm:$0xff]
  %v3226 = vld [vmem:[#allocation4 + $0x51] sm:$0xff]
  %v3227 = vld [vmem:[#allocation4 + $0x61] sm:$0xff]
  %v3228 = vld [vmem:[#allocation4 + $0x71] sm:$0xff]
  %v3229 = vld [vmem:[#allocation4 + $0xa1] sm:$0xff]
  %v3230 = vld [vmem:[#allocation4 + $0xb1] sm:$0xff]
  %v3231 = vld [vmem:[#allocation4 + $0xc1] sm:$0xff]
  %v3232 = vld [vmem:[#allocation4 + $0xd1] sm:$0xff]
  %v3233 = vld [vmem:[#allocation4 + $0xe1] sm:$0xff]
  %v3234 = vld [vmem:[#allocation4 + $0xf1] sm:$0xff]
  %v3235 = vld [vmem:[#allocation4 + $0x101] sm:$0xff]
  %v3236 = vld [vmem:[#allocation4 + $0x111] sm:$0xff]
  %3253 = vrot.lane.b32.xlu0 %v3221, 8
  %v3254 = vpop.permute.xlu0 %3253
  %3255 = vrot.lane.b32.xlu0 %v3222, 8
  %v3256 = vpop.permute.xlu0 %3255
  %3257 = vrot.lane.b32.xlu0 %v3223, 8
  %v3258 = vpop.permute.xlu0 %3257
  %3259 = vrot.lane.b32.xlu0 %v3224, 8
  %v3260 = vpop.permute.xlu0 %3259
  %3261 = vrot.lane.b32.xlu0 %v3225, 8
  %v3262 = vpop.permute.xlu0 %3261
  %3263 = vrot.lane.b32.xlu0 %v3226, 8
  %v3264 = vpop.permute.xlu0 %3263
  %3265 = vrot.lane.b32.xlu0 %v3227, 8
  %v3266 = vpop.permute.xlu0 %3265
  %3267 = vrot.lane.b32.xlu0 %v3228, 8
  %v3268 = vpop.permute.xlu0 %3267
  %3269 = vrot.lane.b32.xlu0 %v3229, 8
  %v3270 = vpop.permute.xlu0 %3269
  %3271 = vrot.lane.b32.xlu0 %v3230, 8
  %v3272 = vpop.permute.xlu0 %3271
  %3273 = vrot.lane.b32.xlu0 %v3231, 8
  %v3274 = vpop.permute.xlu0 %3273
  %3275 = vrot.lane.b32.xlu0 %v3232, 8
  %v3276 = vpop.permute.xlu0 %3275
  %3277 = vrot.lane.b32.xlu0 %v3233, 8
  %v3278 = vpop.permute.xlu0 %3277
  %3279 = vrot.lane.b32.xlu0 %v3234, 8
  %v3280 = vpop.permute.xlu0 %3279
  %3281 = vrot.lane.b32.xlu0 %v3235, 8
  %v3282 = vpop.permute.xlu0 %3281
  %3283 = vrot.lane.b32.xlu0 %v3236, 8
  %v3284 = vpop.permute.xlu0 %3283
  %vm3301 = vcmask 130112
  %3302 = vst.msk [vmem:[#allocation2] sm:$0xff] %vm3301, %v3254
  %3303 = vst.msk [vmem:[#allocation2 + $0x8] sm:$0xff] %vm3301, %v3256
  %3304 = vst.msk [vmem:[#allocation2 + $0x10] sm:$0xff] %vm3301, %v3258
  %3305 = vst.msk [vmem:[#allocation2 + $0x18] sm:$0xff] %vm3301, %v3260
  %3306 = vst.msk [vmem:[#allocation2 + $0x20] sm:$0xff] %vm3301, %v3262
  %3307 = vst.msk [vmem:[#allocation2 + $0x28] sm:$0xff] %vm3301, %v3264
  %3308 = vst.msk [vmem:[#allocation2 + $0x30] sm:$0xff] %vm3301, %v3266
  %3309 = vst.msk [vmem:[#allocation2 + $0x38] sm:$0xff] %vm3301, %v3268
  %3310 = vst.msk [vmem:[#allocation2 + $0x40] sm:$0xff] %vm3301, %v3270
  %3311 = vst.msk [vmem:[#allocation2 + $0x48] sm:$0xff] %vm3301, %v3272
  %3312 = vst.msk [vmem:[#allocation2 + $0x50] sm:$0xff] %vm3301, %v3274
  %3313 = vst.msk [vmem:[#allocation2 + $0x58] sm:$0xff] %vm3301, %v3276
  %3314 = vst.msk [vmem:[#allocation2 + $0x60] sm:$0xff] %vm3301, %v3278
  %3315 = vst.msk [vmem:[#allocation2 + $0x68] sm:$0xff] %vm3301, %v3280
  %3316 = vst.msk [vmem:[#allocation2 + $0x70] sm:$0xff] %vm3301, %v3282
  %3317 = vst.msk [vmem:[#allocation2 + $0x78] sm:$0xff] %vm3301, %v3284
  %v3318 = vld [vmem:[#allocation4 + $0x2] sm:$0xff]
  %v3319 = vld [vmem:[#allocation4 + $0x12] sm:$0xff]
  %v3320 = vld [vmem:[#allocation4 + $0x22] sm:$0xff]
  %v3321 = vld [vmem:[#allocation4 + $0x32] sm:$0xff]
  %v3322 = vld [vmem:[#allocation4 + $0x42] sm:$0xff]
  %v3323 = vld [vmem:[#allocation4 + $0x52] sm:$0xff]
  %v3324 = vld [vmem:[#allocation4 + $0x62] sm:$0xff]
  %v3325 = vld [vmem:[#allocation4 + $0x72] sm:$0xff]
  %v3326 = vld [vmem:[#allocation4 + $0xa2] sm:$0xff]
  %v3327 = vld [vmem:[#allocation4 + $0xb2] sm:$0xff]
  %v3328 = vld [vmem:[#allocation4 + $0xc2] sm:$0xff]
  %v3329 = vld [vmem:[#allocation4 + $0xd2] sm:$0xff]
  %v3330 = vld [vmem:[#allocation4 + $0xe2] sm:$0xff]
  %v3331 = vld [vmem:[#allocation4 + $0xf2] sm:$0xff]
  %v3332 = vld [vmem:[#allocation4 + $0x102] sm:$0xff]
  %v3333 = vld [vmem:[#allocation4 + $0x112] sm:$0xff]
  %3350 = vrot.lane.b32.xlu0 %v3318, 16
  %v3351 = vpop.permute.xlu0 %3350
  %3352 = vrot.lane.b32.xlu0 %v3319, 16
  %v3353 = vpop.permute.xlu0 %3352
  %3354 = vrot.lane.b32.xlu0 %v3320, 16
  %v3355 = vpop.permute.xlu0 %3354
  %3356 = vrot.lane.b32.xlu0 %v3321, 16
  %v3357 = vpop.permute.xlu0 %3356
  %3358 = vrot.lane.b32.xlu0 %v3322, 16
  %v3359 = vpop.permute.xlu0 %3358
  %3360 = vrot.lane.b32.xlu0 %v3323, 16
  %v3361 = vpop.permute.xlu0 %3360
  %3362 = vrot.lane.b32.xlu0 %v3324, 16
  %v3363 = vpop.permute.xlu0 %3362
  %3364 = vrot.lane.b32.xlu0 %v3325, 16
  %v3365 = vpop.permute.xlu0 %3364
  %3366 = vrot.lane.b32.xlu0 %v3326, 16
  %v3367 = vpop.permute.xlu0 %3366
  %3368 = vrot.lane.b32.xlu0 %v3327, 16
  %v3369 = vpop.permute.xlu0 %3368
  %3370 = vrot.lane.b32.xlu0 %v3328, 16
  %v3371 = vpop.permute.xlu0 %3370
  %3372 = vrot.lane.b32.xlu0 %v3329, 16
  %v3373 = vpop.permute.xlu0 %3372
  %3374 = vrot.lane.b32.xlu0 %v3330, 16
  %v3375 = vpop.permute.xlu0 %3374
  %3376 = vrot.lane.b32.xlu0 %v3331, 16
  %v3377 = vpop.permute.xlu0 %3376
  %3378 = vrot.lane.b32.xlu0 %v3332, 16
  %v3379 = vpop.permute.xlu0 %3378
  %3380 = vrot.lane.b32.xlu0 %v3333, 16
  %v3381 = vpop.permute.xlu0 %3380
  %vm3398 = vcmask 195712
  %3399 = vst.msk [vmem:[#allocation2] sm:$0xff] %vm3398, %v3351
  %3400 = vst.msk [vmem:[#allocation2 + $0x8] sm:$0xff] %vm3398, %v3353
  %3401 = vst.msk [vmem:[#allocation2 + $0x10] sm:$0xff] %vm3398, %v3355
  %3402 = vst.msk [vmem:[#allocation2 + $0x18] sm:$0xff] %vm3398, %v3357
  %3403 = vst.msk [vmem:[#allocation2 + $0x20] sm:$0xff] %vm3398, %v3359
  %3404 = vst.msk [vmem:[#allocation2 + $0x28] sm:$0xff] %vm3398, %v3361
  %3405 = vst.msk [vmem:[#allocation2 + $0x30] sm:$0xff] %vm3398, %v3363
  %3406 = vst.msk [vmem:[#allocation2 + $0x38] sm:$0xff] %vm3398, %v3365
  %3407 = vst.msk [vmem:[#allocation2 + $0x40] sm:$0xff] %vm3398, %v3367
  %3408 = vst.msk [vmem:[#allocation2 + $0x48] sm:$0xff] %vm3398, %v3369
  %3409 = vst.msk [vmem:[#allocation2 + $0x50] sm:$0xff] %vm3398, %v3371
  %3410 = vst.msk [vmem:[#allocation2 + $0x58] sm:$0xff] %vm3398, %v3373
  %3411 = vst.msk [vmem:[#allocation2 + $0x60] sm:$0xff] %vm3398, %v3375
  %3412 = vst.msk [vmem:[#allocation2 + $0x68] sm:$0xff] %vm3398, %v3377
  %3413 = vst.msk [vmem:[#allocation2 + $0x70] sm:$0xff] %vm3398, %v3379
  %3414 = vst.msk [vmem:[#allocation2 + $0x78] sm:$0xff] %vm3398, %v3381
  %v3415 = vld [vmem:[%s3124] sm:$0xff]
  %v3416 = vld [vmem:[%s3124 + $0x10] sm:$0xff]
  %v3417 = vld [vmem:[%s3124 + $0x20] sm:$0xff]
  %v3418 = vld [vmem:[%s3124 + $0x30] sm:$0xff]
  %v3419 = vld [vmem:[%s3124 + $0x40] sm:$0xff]
  %v3420 = vld [vmem:[%s3124 + $0x50] sm:$0xff]
  %v3421 = vld [vmem:[%s3124 + $0x60] sm:$0xff]
  %v3422 = vld [vmem:[%s3124 + $0x70] sm:$0xff]
  %v3423 = vld [vmem:[%s3124 + $0xa0] sm:$0xff]
  %v3424 = vld [vmem:[%s3124 + $0xb0] sm:$0xff]
  %v3425 = vld [vmem:[%s3124 + $0xc0] sm:$0xff]
  %v3426 = vld [vmem:[%s3124 + $0xd0] sm:$0xff]
  %v3427 = vld [vmem:[%s3124 + $0xe0] sm:$0xff]
  %v3428 = vld [vmem:[%s3124 + $0xf0] sm:$0xff]
  %v3429 = vld [vmem:[%s3124 + $0x100] sm:$0xff]
  %v3430 = vld [vmem:[%s3124 + $0x110] sm:$0xff]
  %3447 = vrot.lane.b32.xlu0 %v3415, 24
  %v3448 = vpop.permute.xlu0 %3447
  %3449 = vrot.lane.b32.xlu0 %v3416, 24
  %v3450 = vpop.permute.xlu0 %3449
  %3451 = vrot.lane.b32.xlu0 %v3417, 24
  %v3452 = vpop.permute.xlu0 %3451
  %3453 = vrot.lane.b32.xlu0 %v3418, 24
  %v3454 = vpop.permute.xlu0 %3453
  %3455 = vrot.lane.b32.xlu0 %v3419, 24
  %v3456 = vpop.permute.xlu0 %3455
  %3457 = vrot.lane.b32.xlu0 %v3420, 24
  %v3458 = vpop.permute.xlu0 %3457
  %3459 = vrot.lane.b32.xlu0 %v3421, 24
  %v3460 = vpop.permute.xlu0 %3459
  %3461 = vrot.lane.b32.xlu0 %v3422, 24
  %v3462 = vpop.permute.xlu0 %3461
  %3463 = vrot.lane.b32.xlu0 %v3423, 24
  %v3464 = vpop.permute.xlu0 %3463
  %3465 = vrot.lane.b32.xlu0 %v3424, 24
  %v3466 = vpop.permute.xlu0 %3465
  %3467 = vrot.lane.b32.xlu0 %v3425, 24
  %v3468 = vpop.permute.xlu0 %3467
  %3469 = vrot.lane.b32.xlu0 %v3426, 24
  %v3470 = vpop.permute.xlu0 %3469
  %3471 = vrot.lane.b32.xlu0 %v3427, 24
  %v3472 = vpop.permute.xlu0 %3471
  %3473 = vrot.lane.b32.xlu0 %v3428, 24
  %v3474 = vpop.permute.xlu0 %3473
  %3475 = vrot.lane.b32.xlu0 %v3429, 24
  %v3476 = vpop.permute.xlu0 %3475
  %3477 = vrot.lane.b32.xlu0 %v3430, 24
  %v3478 = vpop.permute.xlu0 %3477
  %vm3495 = vcmask 261312
  %3496 = vst.msk [vmem:[#allocation2] sm:$0xff] %vm3495, %v3448
  %3497 = vst.msk [vmem:[#allocation2 + $0x8] sm:$0xff] %vm3495, %v3450
  %3498 = vst.msk [vmem:[#allocation2 + $0x10] sm:$0xff] %vm3495, %v3452
  %3499 = vst.msk [vmem:[#allocation2 + $0x18] sm:$0xff] %vm3495, %v3454
  %3500 = vst.msk [vmem:[#allocation2 + $0x20] sm:$0xff] %vm3495, %v3456
  %3501 = vst.msk [vmem:[#allocation2 + $0x28] sm:$0xff] %vm3495, %v3458
  %3502 = vst.msk [vmem:[#allocation2 + $0x30] sm:$0xff] %vm3495, %v3460
  %3503 = vst.msk [vmem:[#allocation2 + $0x38] sm:$0xff] %vm3495, %v3462
  %3504 = vst.msk [vmem:[#allocation2 + $0x40] sm:$0xff] %vm3495, %v3464
  %3505 = vst.msk [vmem:[#allocation2 + $0x48] sm:$0xff] %vm3495, %v3466
  %3506 = vst.msk [vmem:[#allocation2 + $0x50] sm:$0xff] %vm3495, %v3468
  %3507 = vst.msk [vmem:[#allocation2 + $0x58] sm:$0xff] %vm3495, %v3470
  %3508 = vst.msk [vmem:[#allocation2 + $0x60] sm:$0xff] %vm3495, %v3472
  %3509 = vst.msk [vmem:[#allocation2 + $0x68] sm:$0xff] %vm3495, %v3474
  %3510 = vst.msk [vmem:[#allocation2 + $0x70] sm:$0xff] %vm3495, %v3476
  %3511 = vst.msk [vmem:[#allocation2 + $0x78] sm:$0xff] %vm3495, %v3478
  %v3512 = vld [vmem:[%s3124 + $0x1] sm:$0xff]
  %v3513 = vld [vmem:[%s3124 + $0x11] sm:$0xff]
  %v3514 = vld [vmem:[%s3124 + $0x21] sm:$0xff]
  %v3515 = vld [vmem:[%s3124 + $0x31] sm:$0xff]
  %v3516 = vld [vmem:[%s3124 + $0x41] sm:$0xff]
  %v3517 = vld [vmem:[%s3124 + $0x51] sm:$0xff]
  %v3518 = vld [vmem:[%s3124 + $0x61] sm:$0xff]
  %v3519 = vld [vmem:[%s3124 + $0x71] sm:$0xff]
  %v3520 = vld [vmem:[%s3124 + $0xa1] sm:$0xff]
  %v3521 = vld [vmem:[%s3124 + $0xb1] sm:$0xff]
  %v3522 = vld [vmem:[%s3124 + $0xc1] sm:$0xff]
  %v3523 = vld [vmem:[%s3124 + $0xd1] sm:$0xff]
  %v3524 = vld [vmem:[%s3124 + $0xe1] sm:$0xff]
  %v3525 = vld [vmem:[%s3124 + $0xf1] sm:$0xff]
  %v3526 = vld [vmem:[%s3124 + $0x101] sm:$0xff]
  %v3527 = vld [vmem:[%s3124 + $0x111] sm:$0xff]
  %3544 = vrot.lane.b32.xlu0 %v3512, 32
  %v3545 = vpop.permute.xlu0 %3544
  %3546 = vrot.lane.b32.xlu0 %v3513, 32
  %v3547 = vpop.permute.xlu0 %3546
  %3548 = vrot.lane.b32.xlu0 %v3514, 32
  %v3549 = vpop.permute.xlu0 %3548
  %3550 = vrot.lane.b32.xlu0 %v3515, 32
  %v3551 = vpop.permute.xlu0 %3550
  %3552 = vrot.lane.b32.xlu0 %v3516, 32
  %v3553 = vpop.permute.xlu0 %3552
  %3554 = vrot.lane.b32.xlu0 %v3517, 32
  %v3555 = vpop.permute.xlu0 %3554
  %3556 = vrot.lane.b32.xlu0 %v3518, 32
  %v3557 = vpop.permute.xlu0 %3556
  %3558 = vrot.lane.b32.xlu0 %v3519, 32
  %v3559 = vpop.permute.xlu0 %3558
  %3560 = vrot.lane.b32.xlu0 %v3520, 32
  %v3561 = vpop.permute.xlu0 %3560
  %3562 = vrot.lane.b32.xlu0 %v3521, 32
  %v3563 = vpop.permute.xlu0 %3562
  %3564 = vrot.lane.b32.xlu0 %v3522, 32
  %v3565 = vpop.permute.xlu0 %3564
  %3566 = vrot.lane.b32.xlu0 %v3523, 32
  %v3567 = vpop.permute.xlu0 %3566
  %3568 = vrot.lane.b32.xlu0 %v3524, 32
  %v3569 = vpop.permute.xlu0 %3568
  %3570 = vrot.lane.b32.xlu0 %v3525, 32
  %v3571 = vpop.permute.xlu0 %3570
  %3572 = vrot.lane.b32.xlu0 %v3526, 32
  %v3573 = vpop.permute.xlu0 %3572
  %3574 = vrot.lane.b32.xlu0 %v3527, 32
  %v3575 = vpop.permute.xlu0 %3574
  %vm3592 = vcmask 326912
  %3593 = vst.msk [vmem:[#allocation2] sm:$0xff] %vm3592, %v3545
  %3594 = vst.msk [vmem:[#allocation2 + $0x8] sm:$0xff] %vm3592, %v3547
  %3595 = vst.msk [vmem:[#allocation2 + $0x10] sm:$0xff] %vm3592, %v3549
  %3596 = vst.msk [vmem:[#allocation2 + $0x18] sm:$0xff] %vm3592, %v3551
  %3597 = vst.msk [vmem:[#allocation2 + $0x20] sm:$0xff] %vm3592, %v3553
  %3598 = vst.msk [vmem:[#allocation2 + $0x28] sm:$0xff] %vm3592, %v3555
  %3599 = vst.msk [vmem:[#allocation2 + $0x30] sm:$0xff] %vm3592, %v3557
  %3600 = vst.msk [vmem:[#allocation2 + $0x38] sm:$0xff] %vm3592, %v3559
  %3601 = vst.msk [vmem:[#allocation2 + $0x40] sm:$0xff] %vm3592, %v3561
  %3602 = vst.msk [vmem:[#allocation2 + $0x48] sm:$0xff] %vm3592, %v3563
  %3603 = vst.msk [vmem:[#allocation2 + $0x50] sm:$0xff] %vm3592, %v3565
  %3604 = vst.msk [vmem:[#allocation2 + $0x58] sm:$0xff] %vm3592, %v3567
  %3605 = vst.msk [vmem:[#allocation2 + $0x60] sm:$0xff] %vm3592, %v3569
  %3606 = vst.msk [vmem:[#allocation2 + $0x68] sm:$0xff] %vm3592, %v3571
  %3607 = vst.msk [vmem:[#allocation2 + $0x70] sm:$0xff] %vm3592, %v3573
  %3608 = vst.msk [vmem:[#allocation2 + $0x78] sm:$0xff] %vm3592, %v3575
  %v3609 = vld [vmem:[%s3124 + $0x2] sm:$0xff]
  %v3610 = vld [vmem:[%s3124 + $0x12] sm:$0xff]
  %v3611 = vld [vmem:[%s3124 + $0x22] sm:$0xff]
  %v3612 = vld [vmem:[%s3124 + $0x32] sm:$0xff]
  %v3613 = vld [vmem:[%s3124 + $0x42] sm:$0xff]
  %v3614 = vld [vmem:[%s3124 + $0x52] sm:$0xff]
  %v3615 = vld [vmem:[%s3124 + $0x62] sm:$0xff]
  %v3616 = vld [vmem:[%s3124 + $0x72] sm:$0xff]
  %v3617 = vld [vmem:[%s3124 + $0xa2] sm:$0xff]
  %v3618 = vld [vmem:[%s3124 + $0xb2] sm:$0xff]
  %v3619 = vld [vmem:[%s3124 + $0xc2] sm:$0xff]
  %v3620 = vld [vmem:[%s3124 + $0xd2] sm:$0xff]
  %v3621 = vld [vmem:[%s3124 + $0xe2] sm:$0xff]
  %v3622 = vld [vmem:[%s3124 + $0xf2] sm:$0xff]
  %v3623 = vld [vmem:[%s3124 + $0x102] sm:$0xff]
  %v3624 = vld [vmem:[%s3124 + $0x112] sm:$0xff]
  %3641 = vrot.lane.b32.xlu0 %v3609, 40
  %v3642 = vpop.permute.xlu0 %3641
  %3643 = vrot.lane.b32.xlu0 %v3610, 40
  %v3644 = vpop.permute.xlu0 %3643
  %3645 = vrot.lane.b32.xlu0 %v3611, 40
  %v3646 = vpop.permute.xlu0 %3645
  %3647 = vrot.lane.b32.xlu0 %v3612, 40
  %v3648 = vpop.permute.xlu0 %3647
  %3649 = vrot.lane.b32.xlu0 %v3613, 40
  %v3650 = vpop.permute.xlu0 %3649
  %3651 = vrot.lane.b32.xlu0 %v3614, 40
  %v3652 = vpop.permute.xlu0 %3651
  %3653 = vrot.lane.b32.xlu0 %v3615, 40
  %v3654 = vpop.permute.xlu0 %3653
  %3655 = vrot.lane.b32.xlu0 %v3616, 40
  %v3656 = vpop.permute.xlu0 %3655
  %3657 = vrot.lane.b32.xlu0 %v3617, 40
  %v3658 = vpop.permute.xlu0 %3657
  %3659 = vrot.lane.b32.xlu0 %v3618, 40
  %v3660 = vpop.permute.xlu0 %3659
  %3661 = vrot.lane.b32.xlu0 %v3619, 40
  %v3662 = vpop.permute.xlu0 %3661
  %3663 = vrot.lane.b32.xlu0 %v3620, 40
  %v3664 = vpop.permute.xlu0 %3663
  %3665 = vrot.lane.b32.xlu0 %v3621, 40
  %v3666 = vpop.permute.xlu0 %3665
  %3667 = vrot.lane.b32.xlu0 %v3622, 40
  %v3668 = vpop.permute.xlu0 %3667
  %3669 = vrot.lane.b32.xlu0 %v3623, 40
  %v3670 = vpop.permute.xlu0 %3669
  %3671 = vrot.lane.b32.xlu0 %v3624, 40
  %v3672 = vpop.permute.xlu0 %3671
  %vm3689 = vcmask 392512
  %3690 = vst.msk [vmem:[#allocation2] sm:$0xff] %vm3689, %v3642
  %3691 = vst.msk [vmem:[#allocation2 + $0x8] sm:$0xff] %vm3689, %v3644
  %3692 = vst.msk [vmem:[#allocation2 + $0x10] sm:$0xff] %vm3689, %v3646
  %3693 = vst.msk [vmem:[#allocation2 + $0x18] sm:$0xff] %vm3689, %v3648
  %3694 = vst.msk [vmem:[#allocation2 + $0x20] sm:$0xff] %vm3689, %v3650
  %3695 = vst.msk [vmem:[#allocation2 + $0x28] sm:$0xff] %vm3689, %v3652
  %3696 = vst.msk [vmem:[#allocation2 + $0x30] sm:$0xff] %vm3689, %v3654
  %3697 = vst.msk [vmem:[#allocation2 + $0x38] sm:$0xff] %vm3689, %v3656
  %3698 = vst.msk [vmem:[#allocation2 + $0x40] sm:$0xff] %vm3689, %v3658
  %3699 = vst.msk [vmem:[#allocation2 + $0x48] sm:$0xff] %vm3689, %v3660
  %3700 = vst.msk [vmem:[#allocation2 + $0x50] sm:$0xff] %vm3689, %v3662
  %3701 = vst.msk [vmem:[#allocation2 + $0x58] sm:$0xff] %vm3689, %v3664
  %3702 = vst.msk [vmem:[#allocation2 + $0x60] sm:$0xff] %vm3689, %v3666
  %3703 = vst.msk [vmem:[#allocation2 + $0x68] sm:$0xff] %vm3689, %v3668
  %3704 = vst.msk [vmem:[#allocation2 + $0x70] sm:$0xff] %vm3689, %v3670
  %3705 = vst.msk [vmem:[#allocation2 + $0x78] sm:$0xff] %vm3689, %v3672
  %s3706 = scalar_lea.vmem [#allocation4], 32
  %v3707 = vld [vmem:[%s3706] sm:$0xff]
  %v3708 = vld [vmem:[%s3706 + $0x10] sm:$0xff]
  %v3709 = vld [vmem:[%s3706 + $0x20] sm:$0xff]
  %v3710 = vld [vmem:[%s3706 + $0x30] sm:$0xff]
  %v3711 = vld [vmem:[%s3706 + $0x40] sm:$0xff]
  %v3712 = vld [vmem:[%s3706 + $0x50] sm:$0xff]
  %v3713 = vld [vmem:[%s3706 + $0x60] sm:$0xff]
  %v3714 = vld [vmem:[%s3706 + $0x70] sm:$0xff]
  %v3715 = vld [vmem:[%s3706 + $0xa0] sm:$0xff]
  %v3716 = vld [vmem:[%s3706 + $0xb0] sm:$0xff]
  %v3717 = vld [vmem:[%s3706 + $0xc0] sm:$0xff]
  %v3718 = vld [vmem:[%s3706 + $0xd0] sm:$0xff]
  %v3719 = vld [vmem:[%s3706 + $0xe0] sm:$0xff]
  %v3720 = vld [vmem:[%s3706 + $0xf0] sm:$0xff]
  %v3721 = vld [vmem:[%s3706 + $0x100] sm:$0xff]
  %v3722 = vld [vmem:[%s3706 + $0x110] sm:$0xff]
  %3739 = vrot.lane.b32.xlu0 %v3707, 48
  %v3740 = vpop.permute.xlu0 %3739
  %3741 = vrot.lane.b32.xlu0 %v3708, 48
  %v3742 = vpop.permute.xlu0 %3741
  %3743 = vrot.lane.b32.xlu0 %v3709, 48
  %v3744 = vpop.permute.xlu0 %3743
  %3745 = vrot.lane.b32.xlu0 %v3710, 48
  %v3746 = vpop.permute.xlu0 %3745
  %3747 = vrot.lane.b32.xlu0 %v3711, 48
  %v3748 = vpop.permute.xlu0 %3747
  %3749 = vrot.lane.b32.xlu0 %v3712, 48
  %v3750 = vpop.permute.xlu0 %3749
  %3751 = vrot.lane.b32.xlu0 %v3713, 48
  %v3752 = vpop.permute.xlu0 %3751
  %3753 = vrot.lane.b32.xlu0 %v3714, 48
  %v3754 = vpop.permute.xlu0 %3753
  %3755 = vrot.lane.b32.xlu0 %v3715, 48
  %v3756 = vpop.permute.xlu0 %3755
  %3757 = vrot.lane.b32.xlu0 %v3716, 48
  %v3758 = vpop.permute.xlu0 %3757
  %3759 = vrot.lane.b32.xlu0 %v3717, 48
  %v3760 = vpop.permute.xlu0 %3759
  %3761 = vrot.lane.b32.xlu0 %v3718, 48
  %v3762 = vpop.permute.xlu0 %3761
  %3763 = vrot.lane.b32.xlu0 %v3719, 48
  %v3764 = vpop.permute.xlu0 %3763
  %3765 = vrot.lane.b32.xlu0 %v3720, 48
  %v3766 = vpop.permute.xlu0 %3765
  %3767 = vrot.lane.b32.xlu0 %v3721, 48
  %v3768 = vpop.permute.xlu0 %3767
  %3769 = vrot.lane.b32.xlu0 %v3722, 48
  %v3770 = vpop.permute.xlu0 %3769
  %vm3787 = vcmask 458112
  %3788 = vst.msk [vmem:[#allocation2] sm:$0xff] %vm3787, %v3740
  %3789 = vst.msk [vmem:[#allocation2 + $0x8] sm:$0xff] %vm3787, %v3742
  %3790 = vst.msk [vmem:[#allocation2 + $0x10] sm:$0xff] %vm3787, %v3744
  %3791 = vst.msk [vmem:[#allocation2 + $0x18] sm:$0xff] %vm3787, %v3746
  %3792 = vst.msk [vmem:[#allocation2 + $0x20] sm:$0xff] %vm3787, %v3748
  %3793 = vst.msk [vmem:[#allocation2 + $0x28] sm:$0xff] %vm3787, %v3750
  %3794 = vst.msk [vmem:[#allocation2 + $0x30] sm:$0xff] %vm3787, %v3752
  %3795 = vst.msk [vmem:[#allocation2 + $0x38] sm:$0xff] %vm3787, %v3754
  %3796 = vst.msk [vmem:[#allocation2 + $0x40] sm:$0xff] %vm3787, %v3756
  %3797 = vst.msk [vmem:[#allocation2 + $0x48] sm:$0xff] %vm3787, %v3758
  %3798 = vst.msk [vmem:[#allocation2 + $0x50] sm:$0xff] %vm3787, %v3760
  %3799 = vst.msk [vmem:[#allocation2 + $0x58] sm:$0xff] %vm3787, %v3762
  %3800 = vst.msk [vmem:[#allocation2 + $0x60] sm:$0xff] %vm3787, %v3764
  %3801 = vst.msk [vmem:[#allocation2 + $0x68] sm:$0xff] %vm3787, %v3766
  %3802 = vst.msk [vmem:[#allocation2 + $0x70] sm:$0xff] %vm3787, %v3768
  %3803 = vst.msk [vmem:[#allocation2 + $0x78] sm:$0xff] %vm3787, %v3770
  %v3804 = vld [vmem:[%s3706 + $0x1] sm:$0xff]
  %v3805 = vld [vmem:[%s3706 + $0x11] sm:$0xff]
  %v3806 = vld [vmem:[%s3706 + $0x21] sm:$0xff]
  %v3807 = vld [vmem:[%s3706 + $0x31] sm:$0xff]
  %v3808 = vld [vmem:[%s3706 + $0x41] sm:$0xff]
  %v3809 = vld [vmem:[%s3706 + $0x51] sm:$0xff]
  %v3810 = vld [vmem:[%s3706 + $0x61] sm:$0xff]
  %v3811 = vld [vmem:[%s3706 + $0x71] sm:$0xff]
  %v3812 = vld [vmem:[%s3706 + $0xa1] sm:$0xff]
  %v3813 = vld [vmem:[%s3706 + $0xb1] sm:$0xff]
  %v3814 = vld [vmem:[%s3706 + $0xc1] sm:$0xff]
  %v3815 = vld [vmem:[%s3706 + $0xd1] sm:$0xff]
  %v3816 = vld [vmem:[%s3706 + $0xe1] sm:$0xff]
  %v3817 = vld [vmem:[%s3706 + $0xf1] sm:$0xff]
  %v3818 = vld [vmem:[%s3706 + $0x101] sm:$0xff]
  %v3819 = vld [vmem:[%s3706 + $0x111] sm:$0xff]
  %3836 = vrot.lane.b32.xlu0 %v3804, 56
  %v3837 = vpop.permute.xlu0 %3836
  %3838 = vrot.lane.b32.xlu0 %v3805, 56
  %v3839 = vpop.permute.xlu0 %3838
  %3840 = vrot.lane.b32.xlu0 %v3806, 56
  %v3841 = vpop.permute.xlu0 %3840
  %3842 = vrot.lane.b32.xlu0 %v3807, 56
  %v3843 = vpop.permute.xlu0 %3842
  %3844 = vrot.lane.b32.xlu0 %v3808, 56
  %v3845 = vpop.permute.xlu0 %3844
  %3846 = vrot.lane.b32.xlu0 %v3809, 56
  %v3847 = vpop.permute.xlu0 %3846
  %3848 = vrot.lane.b32.xlu0 %v3810, 56
  %v3849 = vpop.permute.xlu0 %3848
  %3850 = vrot.lane.b32.xlu0 %v3811, 56
  %v3851 = vpop.permute.xlu0 %3850
  %3852 = vrot.lane.b32.xlu0 %v3812, 56
  %v3853 = vpop.permute.xlu0 %3852
  %3854 = vrot.lane.b32.xlu0 %v3813, 56
  %v3855 = vpop.permute.xlu0 %3854
  %3856 = vrot.lane.b32.xlu0 %v3814, 56
  %v3857 = vpop.permute.xlu0 %3856
  %3858 = vrot.lane.b32.xlu0 %v3815, 56
  %v3859 = vpop.permute.xlu0 %3858
  %3860 = vrot.lane.b32.xlu0 %v3816, 56
  %v3861 = vpop.permute.xlu0 %3860
  %3862 = vrot.lane.b32.xlu0 %v3817, 56
  %v3863 = vpop.permute.xlu0 %3862
  %3864 = vrot.lane.b32.xlu0 %v3818, 56
  %v3865 = vpop.permute.xlu0 %3864
  %3866 = vrot.lane.b32.xlu0 %v3819, 56
  %v3867 = vpop.permute.xlu0 %3866
  %vm3884 = vcmask 523712
  %3885 = vst.msk [vmem:[#allocation2] sm:$0xff] %vm3884, %v3837
  %3886 = vst.msk [vmem:[#allocation2 + $0x8] sm:$0xff] %vm3884, %v3839
  %3887 = vst.msk [vmem:[#allocation2 + $0x10] sm:$0xff] %vm3884, %v3841
  %3888 = vst.msk [vmem:[#allocation2 + $0x18] sm:$0xff] %vm3884, %v3843
  %3889 = vst.msk [vmem:[#allocation2 + $0x20] sm:$0xff] %vm3884, %v3845
  %3890 = vst.msk [vmem:[#allocation2 + $0x28] sm:$0xff] %vm3884, %v3847
  %3891 = vst.msk [vmem:[#allocation2 + $0x30] sm:$0xff] %vm3884, %v3849
  %3892 = vst.msk [vmem:[#allocation2 + $0x38] sm:$0xff] %vm3884, %v3851
  %3893 = vst.msk [vmem:[#allocation2 + $0x40] sm:$0xff] %vm3884, %v3853
  %3894 = vst.msk [vmem:[#allocation2 + $0x48] sm:$0xff] %vm3884, %v3855
  %3895 = vst.msk [vmem:[#allocation2 + $0x50] sm:$0xff] %vm3884, %v3857
  %3896 = vst.msk [vmem:[#allocation2 + $0x58] sm:$0xff] %vm3884, %v3859
  %3897 = vst.msk [vmem:[#allocation2 + $0x60] sm:$0xff] %vm3884, %v3861
  %3898 = vst.msk [vmem:[#allocation2 + $0x68] sm:$0xff] %vm3884, %v3863
  %3899 = vst.msk [vmem:[#allocation2 + $0x70] sm:$0xff] %vm3884, %v3865
  %3900 = vst.msk [vmem:[#allocation2 + $0x78] sm:$0xff] %vm3884, %v3867
  %v3901 = vld [vmem:[%s3706 + $0x2] sm:$0xff]
  %v3902 = vld [vmem:[%s3706 + $0x12] sm:$0xff]
  %v3903 = vld [vmem:[%s3706 + $0x22] sm:$0xff]
  %v3904 = vld [vmem:[%s3706 + $0x32] sm:$0xff]
  %v3905 = vld [vmem:[%s3706 + $0x42] sm:$0xff]
  %v3906 = vld [vmem:[%s3706 + $0x52] sm:$0xff]
  %v3907 = vld [vmem:[%s3706 + $0x62] sm:$0xff]
  %v3908 = vld [vmem:[%s3706 + $0x72] sm:$0xff]
  %v3909 = vld [vmem:[%s3706 + $0xa2] sm:$0xff]
  %v3910 = vld [vmem:[%s3706 + $0xb2] sm:$0xff]
  %v3911 = vld [vmem:[%s3706 + $0xc2] sm:$0xff]
  %v3912 = vld [vmem:[%s3706 + $0xd2] sm:$0xff]
  %v3913 = vld [vmem:[%s3706 + $0xe2] sm:$0xff]
  %v3914 = vld [vmem:[%s3706 + $0xf2] sm:$0xff]
  %v3915 = vld [vmem:[%s3706 + $0x102] sm:$0xff]
  %v3916 = vld [vmem:[%s3706 + $0x112] sm:$0xff]
  %3933 = vrot.lane.b32.xlu0 %v3901, 64
  %v3934 = vpop.permute.xlu0 %3933
  %3935 = vrot.lane.b32.xlu0 %v3902, 64
  %v3936 = vpop.permute.xlu0 %3935
  %3937 = vrot.lane.b32.xlu0 %v3903, 64
  %v3938 = vpop.permute.xlu0 %3937
  %3939 = vrot.lane.b32.xlu0 %v3904, 64
  %v3940 = vpop.permute.xlu0 %3939
  %3941 = vrot.lane.b32.xlu0 %v3905, 64
  %v3942 = vpop.permute.xlu0 %3941
  %3943 = vrot.lane.b32.xlu0 %v3906, 64
  %v3944 = vpop.permute.xlu0 %3943
  %3945 = vrot.lane.b32.xlu0 %v3907, 64
  %v3946 = vpop.permute.xlu0 %3945
  %3947 = vrot.lane.b32.xlu0 %v3908, 64
  %v3948 = vpop.permute.xlu0 %3947
  %3949 = vrot.lane.b32.xlu0 %v3909, 64
  %v3950 = vpop.permute.xlu0 %3949
  %3951 = vrot.lane.b32.xlu0 %v3910, 64
  %v3952 = vpop.permute.xlu0 %3951
  %3953 = vrot.lane.b32.xlu0 %v3911, 64
  %v3954 = vpop.permute.xlu0 %3953
  %3955 = vrot.lane.b32.xlu0 %v3912, 64
  %v3956 = vpop.permute.xlu0 %3955
  %3957 = vrot.lane.b32.xlu0 %v3913, 64
  %v3958 = vpop.permute.xlu0 %3957
  %3959 = vrot.lane.b32.xlu0 %v3914, 64
  %v3960 = vpop.permute.xlu0 %3959
  %3961 = vrot.lane.b32.xlu0 %v3915, 64
  %v3962 = vpop.permute.xlu0 %3961
  %3963 = vrot.lane.b32.xlu0 %v3916, 64
  %v3964 = vpop.permute.xlu0 %3963
  %vm3981 = vcmask 589312
  %3982 = vst.msk [vmem:[#allocation2] sm:$0xff] %vm3981, %v3934
  %3983 = vst.msk [vmem:[#allocation2 + $0x8] sm:$0xff] %vm3981, %v3936
  %3984 = vst.msk [vmem:[#allocation2 + $0x10] sm:$0xff] %vm3981, %v3938
  %3985 = vst.msk [vmem:[#allocation2 + $0x18] sm:$0xff] %vm3981, %v3940
  %3986 = vst.msk [vmem:[#allocation2 + $0x20] sm:$0xff] %vm3981, %v3942
  %3987 = vst.msk [vmem:[#allocation2 + $0x28] sm:$0xff] %vm3981, %v3944
  %3988 = vst.msk [vmem:[#allocation2 + $0x30] sm:$0xff] %vm3981, %v3946
  %3989 = vst.msk [vmem:[#allocation2 + $0x38] sm:$0xff] %vm3981, %v3948
  %3990 = vst.msk [vmem:[#allocation2 + $0x40] sm:$0xff] %vm3981, %v3950
  %3991 = vst.msk [vmem:[#allocation2 + $0x48] sm:$0xff] %vm3981, %v3952
  %3992 = vst.msk [vmem:[#allocation2 + $0x50] sm:$0xff] %vm3981, %v3954
  %3993 = vst.msk [vmem:[#allocation2 + $0x58] sm:$0xff] %vm3981, %v3956
  %3994 = vst.msk [vmem:[#allocation2 + $0x60] sm:$0xff] %vm3981, %v3958
  %3995 = vst.msk [vmem:[#allocation2 + $0x68] sm:$0xff] %vm3981, %v3960
  %3996 = vst.msk [vmem:[#allocation2 + $0x70] sm:$0xff] %vm3981, %v3962
  %3997 = vst.msk [vmem:[#allocation2 + $0x78] sm:$0xff] %vm3981, %v3964
  %v3998 = vld [vmem:[#allocation2] sm:$0xff]
  %v3999 = vld [vmem:[#allocation2 + $0x8] sm:$0xff]
  %v4000 = vld [vmem:[#allocation2 + $0x10] sm:$0xff]
  %v4001 = vld [vmem:[#allocation2 + $0x18] sm:$0xff]
  %v4002 = vld [vmem:[#allocation2 + $0x20] sm:$0xff]
  %v4003 = vld [vmem:[#allocation2 + $0x28] sm:$0xff]
  %v4004 = vld [vmem:[#allocation2 + $0x30] sm:$0xff]
  %v4005 = vld [vmem:[#allocation2 + $0x38] sm:$0xff]
  %v4006 = vld [vmem:[#allocation2 + $0x40] sm:$0xff]
  %v4007 = vld [vmem:[#allocation2 + $0x48] sm:$0xff]
  %v4008 = vld [vmem:[#allocation2 + $0x50] sm:$0xff]
  %v4009 = vld [vmem:[#allocation2 + $0x58] sm:$0xff]
  %v4010 = vld [vmem:[#allocation2 + $0x60] sm:$0xff]
  %v4011 = vld [vmem:[#allocation2 + $0x68] sm:$0xff]
  %v4012 = vld [vmem:[#allocation2 + $0x70] sm:$0xff]
  %v4013 = vld [vmem:[#allocation2 + $0x78] sm:$0xff]
  %v4014 = vld [vmem:[%s3] sm:$0xff]
  %v4015 = vld [vmem:[%s3 + $0x8] sm:$0xff]
  %v4016 = vld [vmem:[%s3 + $0x10] sm:$0xff]
  %v4017 = vld [vmem:[%s3 + $0x18] sm:$0xff]
  %v4018 = vld [vmem:[%s3 + $0x20] sm:$0xff]
  %v4019 = vld [vmem:[%s3 + $0x28] sm:$0xff]
  %v4020 = vld [vmem:[%s3 + $0x30] sm:$0xff]
  %v4021 = vld [vmem:[%s3 + $0x38] sm:$0xff]
  %v4022 = vld [vmem:[%s3 + $0x40] sm:$0xff]
  %v4023 = vld [vmem:[%s3 + $0x48] sm:$0xff]
  %v4024 = vld [vmem:[%s3 + $0x50] sm:$0xff]
  %v4025 = vld [vmem:[%s3 + $0x58] sm:$0xff]
  %v4026 = vld [vmem:[%s3 + $0x60] sm:$0xff]
  %v4027 = vld [vmem:[%s3 + $0x68] sm:$0xff]
  %v4028 = vld [vmem:[%s3 + $0x70] sm:$0xff]
  %v4029 = vld [vmem:[%s3 + $0x78] sm:$0xff]
  %4030 = vmatprep.subr.mxu0 0.0
  %4031 = vmatpush1.msra.mxu0 %v4029
  %4032 = vmatprep.subr.mxu0 0.0
  %4033 = vmatpush1.msra.mxu0 %v4028
  %4034 = vmatprep.subr.mxu0 0.0
  %4035 = vmatpush1.msra.mxu0 %v4027
  %4036 = vmatprep.subr.mxu0 0.0
  %4037 = vmatpush1.msra.mxu0 %v4026
  %4038 = vmatprep.subr.mxu0 0.0
  %4039 = vmatpush1.msra.mxu0 %v4025
  %4040 = vmatprep.subr.mxu0 0.0
  %4041 = vmatpush1.msra.mxu0 %v4024
  %4042 = vmatprep.subr.mxu0 0.0
  %4043 = vmatpush1.msra.mxu0 %v4023
  %4044 = vmatprep.subr.mxu0 0.0
  %4045 = vmatpush1.msra.mxu0 %v4022
  %4046 = vmatprep.subr.mxu0 0.0
  %4047 = vmatpush1.msra.mxu0 %v4021
  %4048 = vmatprep.subr.mxu0 0.0
  %4049 = vmatpush1.msra.mxu0 %v4020
  %4050 = vmatprep.subr.mxu0 0.0
  %4051 = vmatpush1.msra.mxu0 %v4019
  %4052 = vmatprep.subr.mxu0 0.0
  %4053 = vmatpush1.msra.mxu0 %v4018
  %4054 = vmatprep.subr.mxu0 0.0
  %4055 = vmatpush1.msra.mxu0 %v4017
  %4056 = vmatprep.subr.mxu0 0.0
  %4057 = vmatpush1.msra.mxu0 %v4016
  %4058 = vmatprep.subr.mxu0 0.0
  %4059 = vmatpush1.msra.mxu0 %v4015
  %4060 = vmatprep.subr.mxu0 0.0
  %4061 = vmatpush1.msra.mxu0 %v4014
  %4062 = vmatprep.subr.mxu0 0.0
  %4063 = vmatpush2.msra.mxu0 0.0
  %4064 = vmatprep.subr.mxu0 0.0
  %4065 = vmatpush2.msra.mxu0 0.0
  %4066 = vmatprep.subr.mxu0 0.0
  %4067 = vmatpush2.msra.mxu0 0.0
  %4068 = vmatprep.subr.mxu0 0.0
  %4069 = vmatpush2.msra.mxu0 0.0
  %4070 = vmatprep.subr.mxu0 0.0
  %4071 = vmatpush2.msra.mxu0 0.0
  %4072 = vmatprep.subr.mxu0 0.0
  %4073 = vmatpush2.msra.mxu0 0.0
  %4074 = vmatprep.subr.mxu0 0.0
  %4075 = vmatpush2.msra.mxu0 0.0
  %4076 = vmatprep.subr.mxu0 0.0
  %4077 = vmatpush2.msra.mxu0 0.0
  %4078 = vmatprep.subr.mxu0 0.0
  %4079 = vmatpush2.msra.mxu0 0.0
  %4080 = vmatprep.subr.mxu0 0.0
  %4081 = vmatpush2.msra.mxu0 0.0
  %4082 = vmatprep.subr.mxu0 0.0
  %4083 = vmatpush2.msra.mxu0 0.0
  %4084 = vmatprep.subr.mxu0 0.0
  %4085 = vmatpush2.msra.mxu0 0.0
  %4086 = vmatprep.subr.mxu0 0.0
  %4087 = vmatpush2.msra.mxu0 0.0
  %4088 = vmatprep.subr.mxu0 0.0
  %4089 = vmatpush2.msra.mxu0 0.0
  %4090 = vmatprep.subr.mxu0 0.0
  %4091 = vmatpush2.msra.mxu0 0.0
  %4092 = vmatprep.subr.mxu0 0.0
  %4093 = vmatpush2.msra.mxu0 0.0
  %4094 = vmatprep.mubr.f32.mxu0 0.0
  %4095 = vmatmul.mubr.f32.gmra.mxu0 %v3998
  %v4096 = vpop.f32.mrf.mxu0
  %v4097 = vadd.f32 0.0, %v4096
  %v4098 = vpop.f32.mrf.mxu0
  %4099 = vmatprep.mubr.f32.mxu0 0.0
  %4100 = vmatmul.mubr.f32.gmra.mxu0 %v3999
  %v4101 = vpop.f32.mrf.mxu0
  %v4102 = vadd.f32 0.0, %v4101
  %v4103 = vpop.f32.mrf.mxu0
  %4104 = vmatprep.mubr.f32.mxu0 0.0
  %4105 = vmatmul.mubr.f32.gmra.mxu0 %v4000
  %v4106 = vpop.f32.mrf.mxu0
  %v4107 = vadd.f32 0.0, %v4106
  %v4108 = vpop.f32.mrf.mxu0
  %4109 = vmatprep.mubr.f32.mxu0 0.0
  %4110 = vmatmul.mubr.f32.gmra.mxu0 %v4001
  %v4111 = vpop.f32.mrf.mxu0
  %v4112 = vadd.f32 0.0, %v4111
  %v4113 = vpop.f32.mrf.mxu0
  %4114 = vmatprep.mubr.f32.mxu0 0.0
  %4115 = vmatmul.mubr.f32.gmra.mxu0 %v4002
  %v4116 = vpop.f32.mrf.mxu0
  %v4117 = vadd.f32 0.0, %v4116
  %v4118 = vpop.f32.mrf.mxu0
  %4119 = vmatprep.mubr.f32.mxu0 0.0
  %4120 = vmatmul.mubr.f32.gmra.mxu0 %v4003
  %v4121 = vpop.f32.mrf.mxu0
  %v4122 = vadd.f32 0.0, %v4121
  %v4123 = vpop.f32.mrf.mxu0
  %4124 = vmatprep.mubr.f32.mxu0 0.0
  %4125 = vmatmul.mubr.f32.gmra.mxu0 %v4004
  %v4126 = vpop.f32.mrf.mxu0
  %v4127 = vadd.f32 0.0, %v4126
  %v4128 = vpop.f32.mrf.mxu0
  %4129 = vmatprep.mubr.f32.mxu0 0.0
  %4130 = vmatmul.mubr.f32.gmra.mxu0 %v4005
  %v4131 = vpop.f32.mrf.mxu0
  %v4132 = vadd.f32 0.0, %v4131
  %v4133 = vpop.f32.mrf.mxu0
  %4134 = vmatprep.mubr.f32.mxu0 0.0
  %4135 = vmatmul.mubr.f32.gmra.mxu0 %v4006
  %v4136 = vpop.f32.mrf.mxu0
  %v4137 = vadd.f32 0.0, %v4136
  %v4138 = vpop.f32.mrf.mxu0
  %4139 = vmatprep.mubr.f32.mxu0 0.0
  %4140 = vmatmul.mubr.f32.gmra.mxu0 %v4007
  %v4141 = vpop.f32.mrf.mxu0
  %v4142 = vadd.f32 0.0, %v4141
  %v4143 = vpop.f32.mrf.mxu0
  %4144 = vmatprep.mubr.f32.mxu0 0.0
  %4145 = vmatmul.mubr.f32.gmra.mxu0 %v4008
  %v4146 = vpop.f32.mrf.mxu0
  %v4147 = vadd.f32 0.0, %v4146
  %v4148 = vpop.f32.mrf.mxu0
  %4149 = vmatprep.mubr.f32.mxu0 0.0
  %4150 = vmatmul.mubr.f32.gmra.mxu0 %v4009
  %v4151 = vpop.f32.mrf.mxu0
  %v4152 = vadd.f32 0.0, %v4151
  %v4153 = vpop.f32.mrf.mxu0
  %4154 = vmatprep.mubr.f32.mxu0 0.0
  %4155 = vmatmul.mubr.f32.gmra.mxu0 %v4010
  %v4156 = vpop.f32.mrf.mxu0
  %v4157 = vadd.f32 0.0, %v4156
  %v4158 = vpop.f32.mrf.mxu0
  %4159 = vmatprep.mubr.f32.mxu0 0.0
  %4160 = vmatmul.mubr.f32.gmra.mxu0 %v4011
  %v4161 = vpop.f32.mrf.mxu0
  %v4162 = vadd.f32 0.0, %v4161
  %v4163 = vpop.f32.mrf.mxu0
  %4164 = vmatprep.mubr.f32.mxu0 0.0
  %4165 = vmatmul.mubr.f32.gmra.mxu0 %v4012
  %v4166 = vpop.f32.mrf.mxu0
  %v4167 = vadd.f32 0.0, %v4166
  %v4168 = vpop.f32.mrf.mxu0
  %4169 = vmatprep.mubr.f32.mxu0 0.0
  %4170 = vmatmul.mubr.f32.gmra.mxu0 %v4013
  %v4171 = vpop.f32.mrf.mxu0
  %v4172 = vadd.f32 0.0, %v4171
  %v4173 = vpop.f32.mrf.mxu0
  %4174 = vdwg.mxu0
  %v4175 = vld [vmem:[%s6] sm:$0x1]
  %v4176 = vlaneseq
  %v4177 = vshrl.u32 %v4176, 7
  %v4178 = vsub.s32 0, %v4177
  %v4179 = vrot.slane %v4175, %v4178
  %v4180 = vmul.f32 %v4097, %v4179
  %v4181 = vmul.f32 %v4102, %v4179
  %v4182 = vmul.f32 %v4107, %v4179
  %v4183 = vmul.f32 %v4112, %v4179
  %v4184 = vmul.f32 %v4117, %v4179
  %v4185 = vmul.f32 %v4122, %v4179
  %v4186 = vmul.f32 %v4127, %v4179
  %v4187 = vmul.f32 %v4132, %v4179
  %v4188 = vmul.f32 %v4137, %v4179
  %v4189 = vmul.f32 %v4142, %v4179
  %v4190 = vmul.f32 %v4147, %v4179
  %v4191 = vmul.f32 %v4152, %v4179
  %v4192 = vmul.f32 %v4157, %v4179
  %v4193 = vmul.f32 %v4162, %v4179
  %v4194 = vmul.f32 %v4167, %v4179
  %v4195 = vmul.f32 %v4172, %v4179
  %v4196 = vld [vmem:[%s6 + $0x1] sm:$0x1]
  %v4197 = vlaneseq
  %v4198 = vshrl.u32 %v4197, 7
  %v4199 = vsub.s32 0, %v4198
  %v4200 = vrot.slane %v4196, %v4199
  %v4201 = vadd.f32 %v4180, %v4200
  %v4202 = vadd.f32 %v4181, %v4200
  %v4203 = vadd.f32 %v4182, %v4200
  %v4204 = vadd.f32 %v4183, %v4200
  %v4205 = vadd.f32 %v4184, %v4200
  %v4206 = vadd.f32 %v4185, %v4200
  %v4207 = vadd.f32 %v4186, %v4200
  %v4208 = vadd.f32 %v4187, %v4200
  %v4209 = vadd.f32 %v4188, %v4200
  %v4210 = vadd.f32 %v4189, %v4200
  %v4211 = vadd.f32 %v4190, %v4200
  %v4212 = vadd.f32 %v4191, %v4200
  %v4213 = vadd.f32 %v4192, %v4200
  %v4214 = vadd.f32 %v4193, %v4200
  %v4215 = vadd.f32 %v4194, %v4200
  %v4216 = vadd.f32 %v4195, %v4200
  %v4217 = vmax.f32 %v4201, 0.0
  %v4218 = vmax.f32 %v4202, 0.0
  %v4219 = vmax.f32 %v4203, 0.0
  %v4220 = vmax.f32 %v4204, 0.0
  %v4221 = vmax.f32 %v4205, 0.0
  %v4222 = vmax.f32 %v4206, 0.0
  %v4223 = vmax.f32 %v4207, 0.0
  %v4224 = vmax.f32 %v4208, 0.0
  %v4225 = vmax.f32 %v4209, 0.0
  %v4226 = vmax.f32 %v4210, 0.0
  %v4227 = vmax.f32 %v4211, 0.0
  %v4228 = vmax.f32 %v4212, 0.0
  %v4229 = vmax.f32 %v4213, 0.0
  %v4230 = vmax.f32 %v4214, 0.0
  %v4231 = vmax.f32 %v4215, 0.0
  %v4232 = vmax.f32 %v4216, 0.0
  %v4233 = vadd.f32 %v3108, %v4217
  %v4234 = vadd.f32 %v3109, %v4218
  %v4235 = vadd.f32 %v3110, %v4219
  %v4236 = vadd.f32 %v3111, %v4220
  %v4237 = vadd.f32 %v3112, %v4221
  %v4238 = vadd.f32 %v3113, %v4222
  %v4239 = vadd.f32 %v3114, %v4223
  %v4240 = vadd.f32 %v3115, %v4224
  %v4241 = vadd.f32 %v3116, %v4225
  %v4242 = vadd.f32 %v3117, %v4226
  %v4243 = vadd.f32 %v3118, %v4227
  %v4244 = vadd.f32 %v3119, %v4228
  %v4245 = vadd.f32 %v3120, %v4229
  %v4246 = vadd.f32 %v3121, %v4230
  %v4247 = vadd.f32 %v3122, %v4231
  %v4248 = vadd.f32 %v3123, %v4232
  %4249 = vxpose.xlu0.b32.start [1/16] %v4233, 128
  %4250 = vxpose.xlu0.b32.cont [2/16] %v4234, 128
  %4251 = vxpose.xlu0.b32.cont [3/16] %v4235, 128
  %4252 = vxpose.xlu0.b32.cont [4/16] %v4236, 128
  %4253 = vxpose.xlu0.b32.cont [5/16] %v4237, 128
  %4254 = vxpose.xlu0.b32.cont [6/16] %v4238, 128
  %4255 = vxpose.xlu0.b32.cont [7/16] %v4239, 128
  %4256 = vxpose.xlu0.b32.cont [8/16] %v4240, 128
  %4257 = vxpose.xlu0.b32.cont [9/16] 0.0, 128
  %4258 = vxpose.xlu0.b32.cont [10/16] 0.0, 128
  %4259 = vxpose.xlu0.b32.cont [11/16] 0.0, 128
  %4260 = vxpose.xlu0.b32.cont [12/16] 0.0, 128
  %4261 = vxpose.xlu0.b32.cont [13/16] 0.0, 128
  %4262 = vxpose.xlu0.b32.cont [14/16] 0.0, 128
  %4263 = vxpose.xlu0.b32.cont [15/16] 0.0, 128
  %4264 = vxpose.xlu0.b32.end [16/16] 0.0, 128
  %v4265 = vpop.trf.xlu0
  %v4266 = vpop.trf.xlu0
  %v4267 = vpop.trf.xlu0
  %v4268 = vpop.trf.xlu0
  %v4269 = vpop.trf.xlu0
  %v4270 = vpop.trf.xlu0
  %v4271 = vpop.trf.xlu0
  %v4272 = vpop.trf.xlu0
  %v4273 = vpop.trf.xlu0
  %v4274 = vpop.trf.xlu0
  %v4275 = vpop.trf.xlu0
  %v4276 = vpop.trf.xlu0
  %v4277 = vpop.trf.xlu0
  %v4278 = vpop.trf.xlu0
  %v4279 = vpop.trf.xlu0
  %v4280 = vpop.trf.xlu0
  %vm4281 = vcmask 523264
  %4282 = vst.msk [vmem:[%s7] sm:$0xff] %vm4281, %v4265
  %4283 = vxpose.xlu0.b32.start [1/16] %v4241, 128
  %4284 = vxpose.xlu0.b32.cont [2/16] %v4242, 128
  %4285 = vxpose.xlu0.b32.cont [3/16] %v4243, 128
  %4286 = vxpose.xlu0.b32.cont [4/16] %v4244, 128
  %4287 = vxpose.xlu0.b32.cont [5/16] %v4245, 128
  %4288 = vxpose.xlu0.b32.cont [6/16] %v4246, 128
  %4289 = vxpose.xlu0.b32.cont [7/16] %v4247, 128
  %4290 = vxpose.xlu0.b32.cont [8/16] %v4248, 128
  %4291 = vxpose.xlu0.b32.cont [9/16] 0.0, 128
  %4292 = vxpose.xlu0.b32.cont [10/16] 0.0, 128
  %4293 = vxpose.xlu0.b32.cont [11/16] 0.0, 128
  %4294 = vxpose.xlu0.b32.cont [12/16] 0.0, 128
  %4295 = vxpose.xlu0.b32.cont [13/16] 0.0, 128
  %4296 = vxpose.xlu0.b32.cont [14/16] 0.0, 128
  %4297 = vxpose.xlu0.b32.cont [15/16] 0.0, 128
  %4298 = vxpose.xlu0.b32.end [16/16] 0.0, 128
  %v4299 = vpop.trf.xlu0
  %v4300 = vpop.trf.xlu0
  %v4301 = vpop.trf.xlu0
  %v4302 = vpop.trf.xlu0
  %v4303 = vpop.trf.xlu0
  %v4304 = vpop.trf.xlu0
  %v4305 = vpop.trf.xlu0
  %v4306 = vpop.trf.xlu0
  %v4307 = vpop.trf.xlu0
  %v4308 = vpop.trf.xlu0
  %v4309 = vpop.trf.xlu0
  %v4310 = vpop.trf.xlu0
  %v4311 = vpop.trf.xlu0
  %v4312 = vpop.trf.xlu0
  %v4313 = vpop.trf.xlu0
  %v4314 = vpop.trf.xlu0
  %s4315 = scalar_lea.vmem %s7, 8
  %4316 = vst.msk [vmem:[%s4315] sm:$0xff] %vm4281, %v4299
  // Predicated region
  $region34: #{down_conv_block_forward.1} parent=0 // pred_check
    _
  $region35: #{down_conv_block_forward.1} parent=0 // pred_check_branch
    %4318 = sbr.rel (0) target = $region37
  $region36: #{down_conv_block_forward.1} parent=0 // pred_region
    _
  $region37: #{down_conv_block_forward.1} parent=0 // pred_fallthru
    _
  // Predicated region
  $region38: #{down_conv_block_forward.1} parent=0 // pred_check
    _
  $region39: #{down_conv_block_forward.1} parent=0 // pred_check_branch
    %4320 = sbr.rel (0) target = $region41
  $region40: #{down_conv_block_forward.1} parent=0 // pred_region
    _
  $region41: #{down_conv_block_forward.1} parent=0 // pred_fallthru
    _

</llo_original>
